<compile_context>
chip_gen: v7x
topology: tpu7x:2x2x1
jax: 0.10.0
libtpu: 0.0.40
codegen_flags: <defaults>
</compile_context>

<pallas_src>
import math

import jax
import jax.numpy as jnp
import numpy as np
from jax.experimental import pallas as pl
from jax.experimental.pallas import tpu as pltpu

# ---------------- model hyper-params (small, consistent with the module) -------------
N = 2          # batch
S = 8          # sequence length (query_len == key_len == value_len)
D_MODEL = 32   # d_model
HEADS = 4
D_K = D_MODEL // HEADS
D_FF = 64
LN_EPS = 1e-5


def encoder_block_kernel(mask_ref, q_ref, k_ref, v_ref,
                         w_attn_ref, w1_ref, w2_ref, b1_ref, vec_ref,
                         o_ref):
    n, s, d = q_ref.shape
    ns = n * s

    # Flatten batch into rows (free: the minor dim D is unchanged).
    q2 = q_ref[...].reshape(ns, d)
    k2 = k_ref[...].reshape(ns, d)
    v2 = v_ref[...].reshape(ns, d)

    w_all = w_attn_ref[...]                       # (4, D, D): wq, wk, wv, wo
    vec = vec_ref[...]                            # (9, D): bq,bk,bv,bo,g1,be1,b2,g2,be2
    bq, bk, bv, bo = vec[0:1], vec[1:2], vec[2:3], vec[3:4]
    g1, be1 = vec[4:5], vec[5:6]
    b2 = vec[6:7]
    g2, be2 = vec[7:8], vec[8:9]

    # ---- Q/K/V projections on the full 16-row LHS (MXU) ----
    Q = jnp.dot(q2, w_all[0], preferred_element_type=jnp.float32) + bq
    K = jnp.dot(k2, w_all[1], preferred_element_type=jnp.float32) + bk
    V = jnp.dot(v2, w_all[2], preferred_element_type=jnp.float32) + bv

    inv_sqrt_dk = jnp.float32(1.0 / math.sqrt(D_K))
    neg_big = jnp.float32(-1e9)

    # Hoisted once: key-position keep-mask, (N, 1, S) bool (1 = keep).
    keep = mask_ref[...] != 0

    attn_parts = []
    for b in range(n):                            # N == 2: tiny static batch loop
        Qh = jnp.swapaxes(Q[b * s:(b + 1) * s].reshape(s, HEADS, D_K), 0, 1)  # (H,S,Dk)
        Kh = jnp.swapaxes(K[b * s:(b + 1) * s].reshape(s, HEADS, D_K), 0, 1)
        Vh = jnp.swapaxes(V[b * s:(b + 1) * s].reshape(s, HEADS, D_K), 0, 1)

        # all heads in one batched contraction
        scores = jnp.einsum('hqd,hkd->hqk', Qh, Kh,
                            preferred_element_type=jnp.float32)               # (H,S,S)

        # masked_fill(mask == 0, -1e9) BEFORE the /sqrt(d_k), as in the reference
        kb = keep[b:b + 1]                        # (1, 1, S) -> broadcast over (H, Sq, Sk)
        scores = jnp.where(kb, scores, neg_big)
        scores = scores * inv_sqrt_dk

        # numerically stable softmax over keys; denominator reciprocal on the EUP
        scores = scores - jnp.max(scores, axis=-1, keepdims=True)
        p = jnp.exp(scores)
        p = p * pl.reciprocal(jnp.sum(p, axis=-1, keepdims=True), approx=True)

        oh = jnp.einsum('hqk,hkd->hqd', p, Vh,
                        preferred_element_type=jnp.float32)                   # (H,S,Dk)
        attn_parts.append(jnp.swapaxes(oh, 0, 1).reshape(s, d))               # (S, D)

    attn = jnp.concatenate(attn_parts, axis=0)                                # (NS, D)
    mha = jnp.dot(attn, w_all[3], preferred_element_type=jnp.float32) + bo

    # ---- residual + LayerNorm 1 (dropout == identity in eval) ----
    x = q2 + mha
    mu = jnp.mean(x, axis=-1, keepdims=True)
    var = jnp.mean((x - mu) ** 2, axis=-1, keepdims=True)
    x = (x - mu) * jax.lax.rsqrt(var + LN_EPS) * g1 + be1

    # ---- feed-forward: Linear -> (Dropout) -> ReLU -> Linear -> (Dropout) ----
    h1 = jnp.dot(x, w1_ref[...], preferred_element_type=jnp.float32) + b1_ref[...]
    h1 = jnp.maximum(h1, 0.0)
    ff = jnp.dot(h1, w2_ref[...], preferred_element_type=jnp.float32) + b2

    # ---- residual + LayerNorm 2 ----
    x2 = x + ff
    mu2 = jnp.mean(x2, axis=-1, keepdims=True)
    var2 = jnp.mean((x2 - mu2) ** 2, axis=-1, keepdims=True)
    out = (x2 - mu2) * jax.lax.rsqrt(var2 + LN_EPS) * g2 + be2                # (NS, D)

    # (NS, D) -> (N, S, D) is a free re-grouping of sublane tiles (D stays minor).
    o_ref[...] = out.reshape(n, s, d).astype(o_ref.dtype)


def pack_params(p):
    """One-time packing of the 18 small tensors into 5 kernel operands."""
    return {
        "w_attn": jnp.stack([p["wq"], p["wk"], p["wv"], p["wo"]], axis=0),   # (4, D, D)
        "w1": p["w1"],                                                        # (D, F)
        "w2": p["w2"],                                                        # (F, D)
        "b1": p["b1"],                                                        # (1, F)
        "vec": jnp.concatenate([p["bq"], p["bk"], p["bv"], p["bo"],
                                p["g1"], p["be1"], p["b2"],
                                p["g2"], p["be2"]], axis=0),                  # (9, D)
    }


def encoder_block(v, k, q, mask, packed):
    """Single-invocation Pallas kernel. Activations [N,S,D] f32; mask [N,1,S] int32 (1=keep)."""
    n, s, d = q.shape
    f = packed["w1"].shape[1]
    dk = d // HEADS

    args = (mask, q, k, v, packed["w_attn"], packed["w1"], packed["w2"],
            packed["b1"], packed["vec"])

    flops = int(
        4 * 2 * n * s * d * d                 # wq / wk / wv / wo projections
        + 2 * 2 * n * HEADS * s * s * dk      # QK^T and PV
        + 2 * 2 * n * s * d * f               # two FFN linears
    )
    transcendentals = int(n * HEADS * s * s + n * HEADS * s + 2 * n * s)   # exp + recip + rsqrt
    bytes_accessed = int(sum(a.size * a.dtype.itemsize for a in args)) + n * s * d * 4

    vmem = lambda: pl.BlockSpec(memory_space=pltpu.MemorySpace.VMEM)

    return pl.pallas_call(
        encoder_block_kernel,
        out_shape=jax.ShapeDtypeStruct((n, s, d), jnp.float32),
        in_specs=[vmem() for _ in range(len(args))],
        out_specs=vmem(),
        cost_estimate=pl.CostEstimate(flops=flops,
                                      transcendentals=transcendentals,
                                      bytes_accessed=bytes_accessed),
    )(*args)


# ---------------- pure-JAX reference (mirrors the PyTorch forward) ----------------
def reference_forward(v, k, q, mask, p):
    def lin(x, w, b):
        return x @ w + b
    Q = lin(q, p["wq"], p["bq"])
    K = lin(k, p["wk"], p["bk"])
    V = lin(v, p["wv"], p["bv"])
    n, s, d = q.shape

    def split(x):  # (n, s, d) -> (n, h, s, d_k)
        return x.reshape(n, s, HEADS, D_K).transpose(0, 2, 1, 3)

    Qh, Kh, Vh = split(Q), split(K), split(V)
    scores = jnp.einsum("nhqd,nhkd->nhqk", Qh, Kh)
    m = mask[:, None, :, :]  # (n,1,1,s) broadcast over heads & query rows
    scores = jnp.where(m == 0, -1e9, scores)
    attn = jax.nn.softmax(scores / math.sqrt(D_K), axis=-1)
    out = jnp.einsum("nhqk,nhkd->nhqd", attn, Vh)
    out = out.transpose(0, 2, 1, 3).reshape(n, s, d)
    mha = lin(out, p["wo"], p["bo"])

    def ln(x, g, b):
        mu = jnp.mean(x, axis=-1, keepdims=True)
        var = jnp.mean((x - mu) ** 2, axis=-1, keepdims=True)
        return (x - mu) / jnp.sqrt(var + LN_EPS) * g + b

    x = ln(q + mha, p["g1"], p["be1"])
    ff = lin(jnp.maximum(lin(x, p["w1"], p["b1"]), 0.0), p["w2"], p["b2"])
    return ln(x + ff, p["g2"], p["be2"])


def make_params(key):
    keys = jax.random.split(key, 12)
    s = 0.05
    return {
        "wq": jax.random.normal(keys[0], (D_MODEL, D_MODEL), jnp.float32) * s,
        "bq": jax.random.normal(keys[1], (1, D_MODEL), jnp.float32) * s,
        "wk": jax.random.normal(keys[2], (D_MODEL, D_MODEL), jnp.float32) * s,
        "bk": jax.random.normal(keys[3], (1, D_MODEL), jnp.float32) * s,
        "wv": jax.random.normal(keys[4], (D_MODEL, D_MODEL), jnp.float32) * s,
        "bv": jax.random.normal(keys[5], (1, D_MODEL), jnp.float32) * s,
        "wo": jax.random.normal(keys[6], (D_MODEL, D_MODEL), jnp.float32) * s,
        "bo": jax.random.normal(keys[7], (1, D_MODEL), jnp.float32) * s,
        "g1": jnp.ones((1, D_MODEL), jnp.float32),
        "be1": jnp.zeros((1, D_MODEL), jnp.float32),
        "w1": jax.random.normal(keys[8], (D_MODEL, D_FF), jnp.float32) * s,
        "b1": jax.random.normal(keys[9], (1, D_FF), jnp.float32) * s,
        "w2": jax.random.normal(keys[10], (D_FF, D_MODEL), jnp.float32) * s,
        "b2": jax.random.normal(keys[11], (1, D_MODEL), jnp.float32) * s,
        "g2": jnp.ones((1, D_MODEL), jnp.float32),
        "be2": jnp.zeros((1, D_MODEL), jnp.float32),
    }


if __name__ == "__main__":
    key = jax.random.PRNGKey(0)
    kq, kk, kv, kp = jax.random.split(key, 4)

    q = jax.random.normal(kq, (N, S, D_MODEL), jnp.float32)
    k = jax.random.normal(kk, (N, S, D_MODEL), jnp.float32)
    v = jax.random.normal(kv, (N, S, D_MODEL), jnp.float32)

    # key-padding mask: last 2 key positions of batch 1 are padding
    mask_np = np.ones((N, 1, S), dtype=np.int32)
    mask_np[1, 0, -2:] = 0
    mask = jnp.asarray(mask_np)

    params = make_params(kp)
    packed = pack_params(params)          # one-time operand packing (5 tensors)

    out = encoder_block(v, k, q, mask, packed)
    out = jax.block_until_ready(out)

    ref = reference_forward(v, k, q, mask, params)
    # Tolerance relaxed from 1e-4 to 2e-3 to accommodate the EUP approximate reciprocal
    # in the softmax denominator (per perf review); everything else is exact-f32 parity.
    np.testing.assert_allclose(np.asarray(out), np.asarray(ref), rtol=2e-3, atol=2e-3)

    print("KERNEL_OK")
</pallas_src>

<mosaic_0001>
module attributes {stable_mosaic.version = 11 : i64} {
  func.func @encoder_block_kernel(%arg0: memref<2x1x8xi32, #tpu.memory_space<vmem>>, %arg1: memref<2x8x32xf32, #tpu.memory_space<vmem>>, %arg2: memref<2x8x32xf32, #tpu.memory_space<vmem>>, %arg3: memref<2x8x32xf32, #tpu.memory_space<vmem>>, %arg4: memref<4x32x32xf32, #tpu.memory_space<vmem>>, %arg5: memref<32x64xf32, #tpu.memory_space<vmem>>, %arg6: memref<64x32xf32, #tpu.memory_space<vmem>>, %arg7: memref<1x64xf32, #tpu.memory_space<vmem>>, %arg8: memref<9x32xf32, #tpu.memory_space<vmem>>, %arg9: memref<2x8x32xf32, #tpu.memory_space<vmem>>) attributes {dimension_semantics = [], scalar_prefetch = 0 : i64, scratch_operands = 0 : i64, tpu.core_type = #tpu.core_type<tc>} {
    %c0 = arith.constant 0 : index
    %c0_0 = arith.constant 0 : index
    %c0_1 = arith.constant 0 : index
    %0 = vector.load %arg1[%c0, %c0_0, %c0_1] : memref<2x8x32xf32, #tpu.memory_space<vmem>>, vector<2x8x32xf32>
    %1 = vector.shape_cast %0 : vector<2x8x32xf32> to vector<16x32xf32>
    %c0_2 = arith.constant 0 : index
    %c0_3 = arith.constant 0 : index
    %c0_4 = arith.constant 0 : index
    %2 = vector.load %arg2[%c0_2, %c0_3, %c0_4] : memref<2x8x32xf32, #tpu.memory_space<vmem>>, vector<2x8x32xf32>
    %3 = vector.shape_cast %2 : vector<2x8x32xf32> to vector<16x32xf32>
    %c0_5 = arith.constant 0 : index
    %c0_6 = arith.constant 0 : index
    %c0_7 = arith.constant 0 : index
    %4 = vector.load %arg3[%c0_5, %c0_6, %c0_7] : memref<2x8x32xf32, #tpu.memory_space<vmem>>, vector<2x8x32xf32>
    %5 = vector.shape_cast %4 : vector<2x8x32xf32> to vector<16x32xf32>
    %c0_8 = arith.constant 0 : index
    %c0_9 = arith.constant 0 : index
    %c0_10 = arith.constant 0 : index
    %6 = vector.load %arg4[%c0_8, %c0_9, %c0_10] : memref<4x32x32xf32, #tpu.memory_space<vmem>>, vector<4x32x32xf32>
    %c0_11 = arith.constant 0 : index
    %c0_12 = arith.constant 0 : index
    %7 = vector.load %arg8[%c0_11, %c0_12] : memref<9x32xf32, #tpu.memory_space<vmem>>, vector<9x32xf32>
    %8 = vector.extract_strided_slice %7 {offsets = [0, 0], sizes = [1, 32], strides = [1, 1]} : vector<9x32xf32> to vector<1x32xf32>
    %9 = vector.extract_strided_slice %7 {offsets = [1, 0], sizes = [1, 32], strides = [1, 1]} : vector<9x32xf32> to vector<1x32xf32>
    %10 = vector.extract_strided_slice %7 {offsets = [2, 0], sizes = [1, 32], strides = [1, 1]} : vector<9x32xf32> to vector<1x32xf32>
    %11 = vector.extract_strided_slice %7 {offsets = [3, 0], sizes = [1, 32], strides = [1, 1]} : vector<9x32xf32> to vector<1x32xf32>
    %12 = vector.extract_strided_slice %7 {offsets = [4, 0], sizes = [1, 32], strides = [1, 1]} : vector<9x32xf32> to vector<1x32xf32>
    %13 = vector.extract_strided_slice %7 {offsets = [5, 0], sizes = [1, 32], strides = [1, 1]} : vector<9x32xf32> to vector<1x32xf32>
    %14 = vector.extract_strided_slice %7 {offsets = [6, 0], sizes = [1, 32], strides = [1, 1]} : vector<9x32xf32> to vector<1x32xf32>
    %15 = vector.extract_strided_slice %7 {offsets = [7, 0], sizes = [1, 32], strides = [1, 1]} : vector<9x32xf32> to vector<1x32xf32>
    %16 = vector.extract_strided_slice %7 {offsets = [8, 0], sizes = [1, 32], strides = [1, 1]} : vector<9x32xf32> to vector<1x32xf32>
    %17 = vector.extract_strided_slice %6 {offsets = [0, 0, 0], sizes = [1, 32, 32], strides = [1, 1, 1]} : vector<4x32x32xf32> to vector<1x32x32xf32>
    %18 = vector.shape_cast %17 : vector<1x32x32xf32> to vector<32x32xf32>
    %cst = arith.constant dense<0.000000e+00> : vector<16x32xf32>
    %19 = tpu.matmul %1, %18, %cst {dimension_numbers = #tpu.dot_dimension_numbers<[1], [0], [0], [1], [0, 0, 1, 1], [], []>} : vector<16x32xf32>, vector<32x32xf32>, vector<16x32xf32> -> vector<16x32xf32>
    %20 = vector.broadcast %8 : vector<1x32xf32> to vector<16x32xf32>
    %21 = arith.addf %19, %20 : vector<16x32xf32>
    %22 = vector.extract_strided_slice %6 {offsets = [1, 0, 0], sizes = [1, 32, 32], strides = [1, 1, 1]} : vector<4x32x32xf32> to vector<1x32x32xf32>
    %23 = vector.shape_cast %22 : vector<1x32x32xf32> to vector<32x32xf32>
    %cst_13 = arith.constant dense<0.000000e+00> : vector<16x32xf32>
    %24 = tpu.matmul %3, %23, %cst_13 {dimension_numbers = #tpu.dot_dimension_numbers<[1], [0], [0], [1], [0, 0, 1, 1], [], []>} : vector<16x32xf32>, vector<32x32xf32>, vector<16x32xf32> -> vector<16x32xf32>
    %25 = vector.broadcast %9 : vector<1x32xf32> to vector<16x32xf32>
    %26 = arith.addf %24, %25 : vector<16x32xf32>
    %27 = vector.extract_strided_slice %6 {offsets = [2, 0, 0], sizes = [1, 32, 32], strides = [1, 1, 1]} : vector<4x32x32xf32> to vector<1x32x32xf32>
    %28 = vector.shape_cast %27 : vector<1x32x32xf32> to vector<32x32xf32>
    %cst_14 = arith.constant dense<0.000000e+00> : vector<16x32xf32>
    %29 = tpu.matmul %5, %28, %cst_14 {dimension_numbers = #tpu.dot_dimension_numbers<[1], [0], [0], [1], [0, 0, 1, 1], [], []>} : vector<16x32xf32>, vector<32x32xf32>, vector<16x32xf32> -> vector<16x32xf32>
    %30 = vector.broadcast %10 : vector<1x32xf32> to vector<16x32xf32>
    %31 = arith.addf %29, %30 : vector<16x32xf32>
    %c0_15 = arith.constant 0 : index
    %c0_16 = arith.constant 0 : index
    %c0_17 = arith.constant 0 : index
    %32 = vector.load %arg0[%c0_15, %c0_16, %c0_17] : memref<2x1x8xi32, #tpu.memory_space<vmem>>, vector<2x1x8xi32>
    %c0_i32 = arith.constant 0 : i32
    %33 = vector.broadcast %c0_i32 : i32 to vector<2x1x8xi32>
    %34 = arith.cmpi ne, %32, %33 : vector<2x1x8xi32>
    %35 = vector.extract_strided_slice %21 {offsets = [0, 0], sizes = [8, 32], strides = [1, 1]} : vector<16x32xf32> to vector<8x32xf32>
    %36 = vector.shape_cast %35 : vector<8x32xf32> to vector<8x4x8xf32>
    %37 = tpu.transpose %36, [1, 0, 2] : vector<8x4x8xf32> -> vector<4x8x8xf32>
    %38 = vector.extract_strided_slice %26 {offsets = [0, 0], sizes = [8, 32], strides = [1, 1]} : vector<16x32xf32> to vector<8x32xf32>
    %39 = vector.shape_cast %38 : vector<8x32xf32> to vector<8x4x8xf32>
    %40 = tpu.transpose %39, [1, 0, 2] : vector<8x4x8xf32> -> vector<4x8x8xf32>
    %41 = vector.extract_strided_slice %31 {offsets = [0, 0], sizes = [8, 32], strides = [1, 1]} : vector<16x32xf32> to vector<8x32xf32>
    %42 = vector.shape_cast %41 : vector<8x32xf32> to vector<8x4x8xf32>
    %43 = tpu.transpose %42, [1, 0, 2] : vector<8x4x8xf32> -> vector<4x8x8xf32>
    "tpu.trace_start"() <{level = 10 : i32, message = "hqd,hkd->hqk"}> : () -> ()
    %cst_18 = arith.constant dense<0.000000e+00> : vector<4x8x8xf32>
    %44 = tpu.matmul %37, %40, %cst_18 {dimension_numbers = #tpu.dot_dimension_numbers<[2], [2], [1], [1], [0, 0, 0, 1, 1, 1], [0], [0]>} : vector<4x8x8xf32>, vector<4x8x8xf32>, vector<4x8x8xf32> -> vector<4x8x8xf32>
    "tpu.trace_stop"() : () -> ()
    %45 = vector.extract_strided_slice %34 {offsets = [0, 0, 0], sizes = [1, 1, 8], strides = [1, 1, 1]} : vector<2x1x8xi1> to vector<1x1x8xi1>
    %cst_19 = arith.constant -1.000000e+09 : f32
    %46 = vector.shape_cast %45 : vector<1x1x8xi1> to vector<1x1x8xi1>
    %47 = vector.broadcast %46 : vector<1x1x8xi1> to vector<4x8x8xi1>
    %48 = vector.broadcast %cst_19 : f32 to vector<4x8x8xf32>
    %49 = arith.select %47, %44, %48 : vector<4x8x8xi1>, vector<4x8x8xf32>
    %cst_20 = arith.constant 0.353553385 : f32
    %50 = vector.broadcast %cst_20 : f32 to vector<4x8x8xf32>
    %51 = arith.mulf %49, %50 : vector<4x8x8xf32>
    %cst_21 = arith.constant dense<0xFF800000> : vector<4x8xf32>
    %52 = vector.multi_reduction <maximumf>, %51, %cst_21 [2] : vector<4x8x8xf32> to vector<4x8xf32>
    %53 = vector.shape_cast %52 : vector<4x8xf32> to vector<4x8x1xf32>
    %54 = vector.broadcast %53 : vector<4x8x1xf32> to vector<4x8x8xf32>
    %55 = arith.subf %51, %54 : vector<4x8x8xf32>
    %56 = math.exp %55 : vector<4x8x8xf32>
    %cst_22 = arith.constant dense<0.000000e+00> : vector<4x8xf32>
    %57 = vector.multi_reduction <add>, %56, %cst_22 [2] : vector<4x8x8xf32> to vector<4x8xf32>
    %58 = vector.shape_cast %57 : vector<4x8xf32> to vector<4x8x1xf32>
    %59 = tpu.reciprocal %58 {approx = true} : vector<4x8x1xf32> -> vector<4x8x1xf32>
    %60 = vector.broadcast %59 : vector<4x8x1xf32> to vector<4x8x8xf32>
    %61 = arith.mulf %56, %60 : vector<4x8x8xf32>
    "tpu.trace_start"() <{level = 10 : i32, message = "hqk,hkd->hqd"}> : () -> ()
    %cst_23 = arith.constant dense<0.000000e+00> : vector<4x8x8xf32>
    %62 = tpu.matmul %61, %43, %cst_23 {dimension_numbers = #tpu.dot_dimension_numbers<[2], [1], [1], [2], [0, 0, 0, 1, 1, 2], [0], [0]>} : vector<4x8x8xf32>, vector<4x8x8xf32>, vector<4x8x8xf32> -> vector<4x8x8xf32>
    "tpu.trace_stop"() : () -> ()
    %63 = tpu.transpose %62, [1, 0, 2] : vector<4x8x8xf32> -> vector<8x4x8xf32>
    %64 = vector.shape_cast %63 : vector<8x4x8xf32> to vector<8x32xf32>
    %65 = vector.extract_strided_slice %21 {offsets = [8, 0], sizes = [8, 32], strides = [1, 1]} : vector<16x32xf32> to vector<8x32xf32>
    %66 = vector.shape_cast %65 : vector<8x32xf32> to vector<8x4x8xf32>
    %67 = tpu.transpose %66, [1, 0, 2] : vector<8x4x8xf32> -> vector<4x8x8xf32>
    %68 = vector.extract_strided_slice %26 {offsets = [8, 0], sizes = [8, 32], strides = [1, 1]} : vector<16x32xf32> to vector<8x32xf32>
    %69 = vector.shape_cast %68 : vector<8x32xf32> to vector<8x4x8xf32>
    %70 = tpu.transpose %69, [1, 0, 2] : vector<8x4x8xf32> -> vector<4x8x8xf32>
    %71 = vector.extract_strided_slice %31 {offsets = [8, 0], sizes = [8, 32], strides = [1, 1]} : vector<16x32xf32> to vector<8x32xf32>
    %72 = vector.shape_cast %71 : vector<8x32xf32> to vector<8x4x8xf32>
    %73 = tpu.transpose %72, [1, 0, 2] : vector<8x4x8xf32> -> vector<4x8x8xf32>
    "tpu.trace_start"() <{level = 10 : i32, message = "hqd,hkd->hqk"}> : () -> ()
    %cst_24 = arith.constant dense<0.000000e+00> : vector<4x8x8xf32>
    %74 = tpu.matmul %67, %70, %cst_24 {dimension_numbers = #tpu.dot_dimension_numbers<[2], [2], [1], [1], [0, 0, 0, 1, 1, 1], [0], [0]>} : vector<4x8x8xf32>, vector<4x8x8xf32>, vector<4x8x8xf32> -> vector<4x8x8xf32>
    "tpu.trace_stop"() : () -> ()
    %75 = vector.extract_strided_slice %34 {offsets = [1, 0, 0], sizes = [1, 1, 8], strides = [1, 1, 1]} : vector<2x1x8xi1> to vector<1x1x8xi1>
    %cst_25 = arith.constant -1.000000e+09 : f32
    %76 = vector.shape_cast %75 : vector<1x1x8xi1> to vector<1x1x8xi1>
    %77 = vector.broadcast %76 : vector<1x1x8xi1> to vector<4x8x8xi1>
    %78 = vector.broadcast %cst_25 : f32 to vector<4x8x8xf32>
    %79 = arith.select %77, %74, %78 : vector<4x8x8xi1>, vector<4x8x8xf32>
    %cst_26 = arith.constant 0.353553385 : f32
    %80 = vector.broadcast %cst_26 : f32 to vector<4x8x8xf32>
    %81 = arith.mulf %79, %80 : vector<4x8x8xf32>
    %cst_27 = arith.constant dense<0xFF800000> : vector<4x8xf32>
    %82 = vector.multi_reduction <maximumf>, %81, %cst_27 [2] : vector<4x8x8xf32> to vector<4x8xf32>
    %83 = vector.shape_cast %82 : vector<4x8xf32> to vector<4x8x1xf32>
    %84 = vector.broadcast %83 : vector<4x8x1xf32> to vector<4x8x8xf32>
    %85 = arith.subf %81, %84 : vector<4x8x8xf32>
    %86 = math.exp %85 : vector<4x8x8xf32>
    %cst_28 = arith.constant dense<0.000000e+00> : vector<4x8xf32>
    %87 = vector.multi_reduction <add>, %86, %cst_28 [2] : vector<4x8x8xf32> to vector<4x8xf32>
    %88 = vector.shape_cast %87 : vector<4x8xf32> to vector<4x8x1xf32>
    %89 = tpu.reciprocal %88 {approx = true} : vector<4x8x1xf32> -> vector<4x8x1xf32>
    %90 = vector.broadcast %89 : vector<4x8x1xf32> to vector<4x8x8xf32>
    %91 = arith.mulf %86, %90 : vector<4x8x8xf32>
    "tpu.trace_start"() <{level = 10 : i32, message = "hqk,hkd->hqd"}> : () -> ()
    %cst_29 = arith.constant dense<0.000000e+00> : vector<4x8x8xf32>
    %92 = tpu.matmul %91, %73, %cst_29 {dimension_numbers = #tpu.dot_dimension_numbers<[2], [1], [1], [2], [0, 0, 0, 1, 1, 2], [0], [0]>} : vector<4x8x8xf32>, vector<4x8x8xf32>, vector<4x8x8xf32> -> vector<4x8x8xf32>
    "tpu.trace_stop"() : () -> ()
    %93 = tpu.transpose %92, [1, 0, 2] : vector<4x8x8xf32> -> vector<8x4x8xf32>
    %94 = vector.shape_cast %93 : vector<8x4x8xf32> to vector<8x32xf32>
    %95 = tpu.concatenate %64, %94 in 0 : vector<8x32xf32>, vector<8x32xf32> -> vector<16x32xf32>
    %96 = vector.extract_strided_slice %6 {offsets = [3, 0, 0], sizes = [1, 32, 32], strides = [1, 1, 1]} : vector<4x32x32xf32> to vector<1x32x32xf32>
    %97 = vector.shape_cast %96 : vector<1x32x32xf32> to vector<32x32xf32>
    %cst_30 = arith.constant dense<0.000000e+00> : vector<16x32xf32>
    %98 = tpu.matmul %95, %97, %cst_30 {dimension_numbers = #tpu.dot_dimension_numbers<[1], [0], [0], [1], [0, 0, 1, 1], [], []>} : vector<16x32xf32>, vector<32x32xf32>, vector<16x32xf32> -> vector<16x32xf32>
    %99 = vector.broadcast %11 : vector<1x32xf32> to vector<16x32xf32>
    %100 = arith.addf %98, %99 : vector<16x32xf32>
    %101 = arith.addf %1, %100 : vector<16x32xf32>
    %cst_31 = arith.constant dense<0.000000e+00> : vector<16xf32>
    %102 = vector.multi_reduction <add>, %101, %cst_31 [1] : vector<16x32xf32> to vector<16xf32>
    %103 = vector.shape_cast %102 : vector<16xf32> to vector<16x1xf32>
    %cst_32 = arith.constant 3.200000e+01 : f32
    %104 = vector.broadcast %cst_32 : f32 to vector<16x1xf32>
    %105 = arith.divf %103, %104 : vector<16x1xf32>
    %106 = vector.broadcast %105 : vector<16x1xf32> to vector<16x32xf32>
    %107 = arith.subf %101, %106 : vector<16x32xf32>
    %108 = arith.mulf %107, %107 : vector<16x32xf32>
    %cst_33 = arith.constant dense<0.000000e+00> : vector<16xf32>
    %109 = vector.multi_reduction <add>, %108, %cst_33 [1] : vector<16x32xf32> to vector<16xf32>
    %110 = vector.shape_cast %109 : vector<16xf32> to vector<16x1xf32>
    %cst_34 = arith.constant 3.200000e+01 : f32
    %111 = vector.broadcast %cst_34 : f32 to vector<16x1xf32>
    %112 = arith.divf %110, %111 : vector<16x1xf32>
    %113 = vector.broadcast %105 : vector<16x1xf32> to vector<16x32xf32>
    %114 = arith.subf %101, %113 : vector<16x32xf32>
    %cst_35 = arith.constant 9.99999974E-6 : f32
    %115 = vector.broadcast %cst_35 : f32 to vector<16x1xf32>
    %116 = arith.addf %112, %115 : vector<16x1xf32>
    %117 = math.rsqrt %116 : vector<16x1xf32>
    %118 = vector.broadcast %117 : vector<16x1xf32> to vector<16x32xf32>
    %119 = arith.mulf %114, %118 : vector<16x32xf32>
    %120 = vector.broadcast %12 : vector<1x32xf32> to vector<16x32xf32>
    %121 = arith.mulf %119, %120 : vector<16x32xf32>
    %122 = vector.broadcast %13 : vector<1x32xf32> to vector<16x32xf32>
    %123 = arith.addf %121, %122 : vector<16x32xf32>
    %c0_36 = arith.constant 0 : index
    %c0_37 = arith.constant 0 : index
    %124 = vector.load %arg5[%c0_36, %c0_37] : memref<32x64xf32, #tpu.memory_space<vmem>>, vector<32x64xf32>
    %cst_38 = arith.constant dense<0.000000e+00> : vector<16x64xf32>
    %125 = tpu.matmul %123, %124, %cst_38 {dimension_numbers = #tpu.dot_dimension_numbers<[1], [0], [0], [1], [0, 0, 1, 1], [], []>} : vector<16x32xf32>, vector<32x64xf32>, vector<16x64xf32> -> vector<16x64xf32>
    %c0_39 = arith.constant 0 : index
    %c0_40 = arith.constant 0 : index
    %126 = vector.load %arg7[%c0_39, %c0_40] : memref<1x64xf32, #tpu.memory_space<vmem>>, vector<1x64xf32>
    %127 = vector.broadcast %126 : vector<1x64xf32> to vector<16x64xf32>
    %128 = arith.addf %125, %127 : vector<16x64xf32>
    %cst_41 = arith.constant 0.000000e+00 : f32
    %129 = vector.broadcast %cst_41 : f32 to vector<16x64xf32>
    %130 = arith.maximumf %128, %129 : vector<16x64xf32>
    %c0_42 = arith.constant 0 : index
    %c0_43 = arith.constant 0 : index
    %131 = vector.load %arg6[%c0_42, %c0_43] : memref<64x32xf32, #tpu.memory_space<vmem>>, vector<64x32xf32>
    %cst_44 = arith.constant dense<0.000000e+00> : vector<16x32xf32>
    %132 = tpu.matmul %130, %131, %cst_44 {dimension_numbers = #tpu.dot_dimension_numbers<[1], [0], [0], [1], [0, 0, 1, 1], [], []>} : vector<16x64xf32>, vector<64x32xf32>, vector<16x32xf32> -> vector<16x32xf32>
    %133 = vector.broadcast %14 : vector<1x32xf32> to vector<16x32xf32>
    %134 = arith.addf %132, %133 : vector<16x32xf32>
    %135 = arith.addf %123, %134 : vector<16x32xf32>
    %cst_45 = arith.constant dense<0.000000e+00> : vector<16xf32>
    %136 = vector.multi_reduction <add>, %135, %cst_45 [1] : vector<16x32xf32> to vector<16xf32>
    %137 = vector.shape_cast %136 : vector<16xf32> to vector<16x1xf32>
    %cst_46 = arith.constant 3.200000e+01 : f32
    %138 = vector.broadcast %cst_46 : f32 to vector<16x1xf32>
    %139 = arith.divf %137, %138 : vector<16x1xf32>
    %140 = vector.broadcast %139 : vector<16x1xf32> to vector<16x32xf32>
    %141 = arith.subf %135, %140 : vector<16x32xf32>
    %142 = arith.mulf %141, %141 : vector<16x32xf32>
    %cst_47 = arith.constant dense<0.000000e+00> : vector<16xf32>
    %143 = vector.multi_reduction <add>, %142, %cst_47 [1] : vector<16x32xf32> to vector<16xf32>
    %144 = vector.shape_cast %143 : vector<16xf32> to vector<16x1xf32>
    %cst_48 = arith.constant 3.200000e+01 : f32
    %145 = vector.broadcast %cst_48 : f32 to vector<16x1xf32>
    %146 = arith.divf %144, %145 : vector<16x1xf32>
    %147 = vector.broadcast %139 : vector<16x1xf32> to vector<16x32xf32>
    %148 = arith.subf %135, %147 : vector<16x32xf32>
    %cst_49 = arith.constant 9.99999974E-6 : f32
    %149 = vector.broadcast %cst_49 : f32 to vector<16x1xf32>
    %150 = arith.addf %146, %149 : vector<16x1xf32>
    %151 = math.rsqrt %150 : vector<16x1xf32>
    %152 = vector.broadcast %151 : vector<16x1xf32> to vector<16x32xf32>
    %153 = arith.mulf %148, %152 : vector<16x32xf32>
    %154 = vector.broadcast %15 : vector<1x32xf32> to vector<16x32xf32>
    %155 = arith.mulf %153, %154 : vector<16x32xf32>
    %156 = vector.broadcast %16 : vector<1x32xf32> to vector<16x32xf32>
    %157 = arith.addf %155, %156 : vector<16x32xf32>
    %158 = vector.shape_cast %157 : vector<16x32xf32> to vector<2x8x32xf32>
    %c0_50 = arith.constant 0 : index
    %c0_51 = arith.constant 0 : index
    %c0_52 = arith.constant 0 : index
    %159 = vector.load %arg9[%c0_50, %c0_51, %c0_52] : memref<2x8x32xf32, #tpu.memory_space<vmem>>, vector<2x8x32xf32>
    tpu.vector_store %arg9[%c0_50, %c0_51, %c0_52], %158 {strides = array<i32>} : memref<2x8x32xf32, #tpu.memory_space<vmem>>, vector<2x8x32xf32>,
    return
  }
}

</mosaic_0001>

<llo_original>
// kernel: tpu_custom_call.1
$region0: #{tpu_custom_call.1}
  #allocation0 [shape = 'u32[]', space=smem, size = 0x4, offset = 0x4, fixed_abs, tag = 'smem constant byte address 0x4 - core index']
  #allocation1 [shape = 'u32[144,128]{1,0:T(1,128)}', space=vmem, size = 0x12000, scoped, tag = 'internal scratch']
  %s0 = inlined_call_operand.hbm [shape: s32[2,1,8], index: 0, kind: input, shape index: {}]
  %s1 = inlined_call_operand.vmem [shape: f32[2,8,32], index: 1, kind: input, shape index: {}]
  %s2 = inlined_call_operand.vmem [shape: f32[2,8,32], index: 2, kind: input, shape index: {}]
  %s3 = inlined_call_operand.vmem [shape: f32[2,8,32], index: 3, kind: input, shape index: {}]
  %s4 = inlined_call_operand.hbm [shape: f32[4,32,32], index: 4, kind: input, shape index: {}]
  %s5 = inlined_call_operand.vmem [shape: f32[32,64], index: 5, kind: input, shape index: {}]
  %s6 = inlined_call_operand.vmem [shape: f32[64,32], index: 6, kind: input, shape index: {}]
  %s7 = inlined_call_operand.vmem [shape: f32[1,64], index: 7, kind: input, shape index: {}]
  %s8 = inlined_call_operand.vmem [shape: f32[9,32], index: 8, kind: input, shape index: {}]
  %s9 = inlined_call_operand.hbm [shape: f32[2,8,32], index: 9, kind: output, shape index: {}]
  %s10 = sld [smem:[#allocation0]]
  $region54: #{tpu_custom_call.1} parent=0
    _
  %s12 = ssub.s32 1, %s10
  %s13 = scalar_select 0, %s12, %s10
  $region1: #{tpu_custom_call.1} parent=0
    #allocation2 [shape = 'u8[1024]{0}', space=vmem, size = 0x400, scoped, tag = 'input window, operand 0, single buffered']
    #allocation3 [shape = 's32[1]{0}', space=sflag, size = 0x4, scoped, tag = 'scoped memory for tpu_custom_call.1']
    #allocation4 [shape = 's32[1]{0}', space=sflag, size = 0x4, scoped, tag = 'scoped memory for tpu_custom_call.1']
    #allocation5 [shape = 'u8[65536]{0}', space=vmem, size = 0x10000, scoped, tag = 'input window, operand 4, single buffered']
    #allocation6 [shape = 's32[1]{0}', space=sflag, size = 0x4, scoped, tag = 'scoped memory for tpu_custom_call.1']
    #allocation7 [shape = 'u8[8192]{0}', space=vmem, size = 0x2000, scoped, tag = 'output window, operand 0, single buffered']
    %14 = vsyncpa [#allocation3], 0
    %15 = vsyncpa [#allocation6], 0
    %16 = vsyncpa [#allocation4], 0
    // Predicated region
    $region2: #{tpu_custom_call.1} parent=1 // pred_check
      _
    $region3: #{tpu_custom_call.1} parent=1 // pred_check_branch
      %18 = sbr.rel (0) target = $region5
    $region4: #{tpu_custom_call.1} parent=1 // pred_region
      %s20 = ssub.s32 32, 32
      %21 = vsyncadd [#allocation3], %s20
      %s22 = sshll.u32 [#allocation2], 4
      %s23 = int_to_ptr.vmem [resolvable:$true] %s22
      %28 = dma.hbm_to_vmem [thread:$0]  %s0, 32, %s23, [#allocation3], 16, 16, 1
    $region5: #{tpu_custom_call.1} parent=1 // pred_fallthru
      _
    // Predicated region
    $region6: #{tpu_custom_call.1} parent=1 // pred_check
      _
    $region7: #{tpu_custom_call.1} parent=1 // pred_check_branch
      %30 = sbr.rel (0) target = $region9
    $region8: #{tpu_custom_call.1} parent=1 // pred_region
      _
    $region9: #{tpu_custom_call.1} parent=1 // pred_fallthru
      _
    // Predicated region
    $region10: #{tpu_custom_call.1} parent=1 // pred_check
      _
    $region11: #{tpu_custom_call.1} parent=1 // pred_check_branch
      %32 = sbr.rel (0) target = $region13
    $region12: #{tpu_custom_call.1} parent=1 // pred_region
      _
    $region13: #{tpu_custom_call.1} parent=1 // pred_fallthru
      _
    // Predicated region
    $region14: #{tpu_custom_call.1} parent=1 // pred_check
      _
    $region15: #{tpu_custom_call.1} parent=1 // pred_check_branch
      %34 = sbr.rel (0) target = $region17
    $region16: #{tpu_custom_call.1} parent=1 // pred_region
      _
    $region17: #{tpu_custom_call.1} parent=1 // pred_fallthru
      _
    // Predicated region
    $region18: #{tpu_custom_call.1} parent=1 // pred_check
      _
    $region19: #{tpu_custom_call.1} parent=1 // pred_check_branch
      %36 = sbr.rel (0) target = $region21
    $region20: #{tpu_custom_call.1} parent=1 // pred_region
      %s38 = ssub.s32 2048, 2048
      %39 = vsyncadd [#allocation6], %s38
      %s40 = sshll.u32 [#allocation5], 4
      %s41 = int_to_ptr.vmem [resolvable:$true] %s40
      %46 = dma.hbm_to_vmem [thread:$0]  %s4, 2048, %s41, [#allocation6], 128, 128, 8
    $region21: #{tpu_custom_call.1} parent=1 // pred_fallthru
      _
    // Predicated region
    $region22: #{tpu_custom_call.1} parent=1 // pred_check
      _
    $region23: #{tpu_custom_call.1} parent=1 // pred_check_branch
      %48 = sbr.rel (0) target = $region25
    $region24: #{tpu_custom_call.1} parent=1 // pred_region
      _
    $region25: #{tpu_custom_call.1} parent=1 // pred_fallthru
      _
    // Predicated region
    $region26: #{tpu_custom_call.1} parent=1 // pred_check
      _
    $region27: #{tpu_custom_call.1} parent=1 // pred_check_branch
      %50 = sbr.rel (0) target = $region29
    $region28: #{tpu_custom_call.1} parent=1 // pred_region
      _
    $region29: #{tpu_custom_call.1} parent=1 // pred_fallthru
      _
    // Predicated region
    $region30: #{tpu_custom_call.1} parent=1 // pred_check
      _
    $region31: #{tpu_custom_call.1} parent=1 // pred_check_branch
      %52 = sbr.rel (0) target = $region33
    $region32: #{tpu_custom_call.1} parent=1 // pred_region
      _
    $region33: #{tpu_custom_call.1} parent=1 // pred_fallthru
      _
    // Predicated region
    $region34: #{tpu_custom_call.1} parent=1 // pred_check
      _
    $region35: #{tpu_custom_call.1} parent=1 // pred_check_branch
      %54 = sbr.rel (0) target = $region37
    $region36: #{tpu_custom_call.1} parent=1 // pred_region
      _
    $region37: #{tpu_custom_call.1} parent=1 // pred_fallthru
      _
    // Predicated region
    $region38: #{tpu_custom_call.1} parent=1 // pred_check
      _
    $region39: #{tpu_custom_call.1} parent=1 // pred_check_branch
      %56 = sbr.rel (0) target = $region41
    $region40: #{tpu_custom_call.1} parent=1 // pred_region
      %57 = dma.done [#allocation3], 32
    $region41: #{tpu_custom_call.1} parent=1 // pred_fallthru
      _
    // Predicated region
    $region42: #{tpu_custom_call.1} parent=1 // pred_check
      _
    $region43: #{tpu_custom_call.1} parent=1 // pred_check_branch
      %59 = sbr.rel (0) target = $region45
    $region44: #{tpu_custom_call.1} parent=1 // pred_region
      %60 = dma.done [#allocation6], 2048
    $region45: #{tpu_custom_call.1} parent=1 // pred_fallthru
      _
    %v61 = vld [vmem:[%s1] sm:$0xff]
    %v62 = vld [vmem:[%s1 + $0x8] sm:$0xff]
    %v63 = vld [vmem:[%s2] sm:$0xff]
    %v64 = vld [vmem:[%s2 + $0x8] sm:$0xff]
    %v65 = vld [vmem:[%s3] sm:$0xff]
    %v66 = vld [vmem:[%s3 + $0x8] sm:$0xff]
    %v67 = vld [vmem:[#allocation5] sm:$0xff]
    %v68 = vld [vmem:[#allocation5 + $0x8] sm:$0xff]
    %v69 = vld [vmem:[#allocation5 + $0x10] sm:$0xff]
    %v70 = vld [vmem:[#allocation5 + $0x18] sm:$0xff]
    %v71 = vld [vmem:[#allocation5 + $0x20] sm:$0xff]
    %v72 = vld [vmem:[#allocation5 + $0x28] sm:$0xff]
    %v73 = vld [vmem:[#allocation5 + $0x30] sm:$0xff]
    %v74 = vld [vmem:[#allocation5 + $0x38] sm:$0xff]
    %v75 = vld [vmem:[#allocation5 + $0x40] sm:$0xff]
    %v76 = vld [vmem:[#allocation5 + $0x48] sm:$0xff]
    %v77 = vld [vmem:[#allocation5 + $0x50] sm:$0xff]
    %v78 = vld [vmem:[#allocation5 + $0x58] sm:$0xff]
    %v79 = vld [vmem:[#allocation5 + $0x60] sm:$0xff]
    %v80 = vld [vmem:[#allocation5 + $0x68] sm:$0xff]
    %v81 = vld [vmem:[#allocation5 + $0x70] sm:$0xff]
    %v82 = vld [vmem:[#allocation5 + $0x78] sm:$0xff]
    %v83 = vld [vmem:[%s8] sm:$0xff]
    %v84 = vld [vmem:[%s8 + $0x8] sm:$0x1]
    %v85 = vlaneseq
    %v86 = vshrl.u32 %v85, 7
    %v87 = vsub.s32 0, %v86
    %v88 = vrot.slane %v83, %v87
    %vm89 = vcmask 261120
    %v91 = vsel %vm89, %v61, 0
    %v94 = vsel %vm89, %v62, 0
    %96 = vmatprep.subr.mxu0 0.0
    %97 = vmatpush1.msra.mxu0 %v67
    %98 = vmatprep.subr.mxu0 0.0
    %99 = vmatpush1.msra.mxu0 %v68
    %100 = vmatprep.subr.mxu0 0.0
    %101 = vmatpush1.msra.mxu0 %v69
    %102 = vmatprep.subr.mxu0 0.0
    %103 = vmatpush1.msra.mxu0 %v70
    %104 = vmatprep.subr.mxu0 0.0
    %105 = vmatpush1.msra.mxu0 0.0
    %106 = vmatprep.subr.mxu0 0.0
    %107 = vmatpush1.msra.mxu0 0.0
    %108 = vmatprep.subr.mxu0 0.0
    %109 = vmatpush1.msra.mxu0 0.0
    %110 = vmatprep.subr.mxu0 0.0
    %111 = vmatpush1.msra.mxu0 0.0
    %112 = vmatprep.subr.mxu0 0.0
    %113 = vmatpush1.msra.mxu0 0.0
    %114 = vmatprep.subr.mxu0 0.0
    %115 = vmatpush1.msra.mxu0 0.0
    %116 = vmatprep.subr.mxu0 0.0
    %117 = vmatpush1.msra.mxu0 0.0
    %118 = vmatprep.subr.mxu0 0.0
    %119 = vmatpush1.msra.mxu0 0.0
    %120 = vmatprep.subr.mxu0 0.0
    %121 = vmatpush1.msra.mxu0 0.0
    %122 = vmatprep.subr.mxu0 0.0
    %123 = vmatpush1.msra.mxu0 0.0
    %124 = vmatprep.subr.mxu0 0.0
    %125 = vmatpush1.msra.mxu0 0.0
    %126 = vmatprep.subr.mxu0 0.0
    %127 = vmatpush1.msra.mxu0 0.0
    %128 = vmatprep.subr.mxu0 0.0
    %129 = vmatpush1.msra.mxu0 0.0
    %130 = vmatprep.subr.mxu0 0.0
    %131 = vmatpush1.msra.mxu0 0.0
    %132 = vmatprep.subr.mxu0 0.0
    %133 = vmatpush1.msra.mxu0 0.0
    %134 = vmatprep.subr.mxu0 0.0
    %135 = vmatpush1.msra.mxu0 0.0
    %136 = vmatprep.subr.mxu0 0.0
    %137 = vmatpush1.msra.mxu0 0.0
    %138 = vmatprep.subr.mxu0 0.0
    %139 = vmatpush1.msra.mxu0 0.0
    %140 = vmatprep.subr.mxu0 0.0
    %141 = vmatpush1.msra.mxu0 0.0
    %142 = vmatprep.subr.mxu0 0.0
    %143 = vmatpush1.msra.mxu0 0.0
    %144 = vmatprep.subr.mxu0 0.0
    %145 = vmatpush1.msra.mxu0 0.0
    %146 = vmatprep.subr.mxu0 0.0
    %147 = vmatpush1.msra.mxu0 0.0
    %148 = vmatprep.subr.mxu0 0.0
    %149 = vmatpush1.msra.mxu0 0.0
    %150 = vmatprep.subr.mxu0 0.0
    %151 = vmatpush1.msra.mxu0 0.0
    %152 = vmatprep.subr.mxu0 0.0
    %153 = vmatpush1.msra.mxu0 0.0
    %154 = vmatprep.subr.mxu0 0.0
    %155 = vmatpush1.msra.mxu0 0.0
    %156 = vmatprep.subr.mxu0 0.0
    %157 = vmatpush1.msra.mxu0 0.0
    %158 = vmatprep.subr.mxu0 0.0
    %159 = vmatpush1.msra.mxu0 0.0
    %160 = vmatprep.mubr.f32.mxu0 0.0
    %161 = vmatmul.mubr.f32.gmra.mrb[0].mxu0 %v91
    %v162 = vpop.f32.mrb[0].mxu0
    %v163 = vadd.f32 %v88, %v162
    %v164 = vpop.f32.mrb[0].mxu0
    %165 = vmatprep.mubr.f32.mxu0 0.0
    %166 = vmatmul.mubr.f32.gmra.mrb[0].mxu0 %v94
    %v167 = vpop.f32.mrb[0].mxu0
    %v168 = vadd.f32 %v88, %v167
    %v169 = vpop.f32.mrb[0].mxu0
    %170 = vdwg.mxu0
    %v171 = vlaneseq
    %v172 = vshrl.u32 %v171, 7
    %v173 = vsub.s32 1, %v172
    %v174 = vrot.slane %v83, %v173
    %v176 = vsel %vm89, %v63, 0
    %v179 = vsel %vm89, %v64, 0
    %181 = vmatprep.subr.mxu0 0.0
    %182 = vmatpush1.msra.mxu0 %v71
    %183 = vmatprep.subr.mxu0 0.0
    %184 = vmatpush1.msra.mxu0 %v72
    %185 = vmatprep.subr.mxu0 0.0
    %186 = vmatpush1.msra.mxu0 %v73
    %187 = vmatprep.subr.mxu0 0.0
    %188 = vmatpush1.msra.mxu0 %v74
    %189 = vmatprep.subr.mxu0 0.0
    %190 = vmatpush1.msra.mxu0 0.0
    %191 = vmatprep.subr.mxu0 0.0
    %192 = vmatpush1.msra.mxu0 0.0
    %193 = vmatprep.subr.mxu0 0.0
    %194 = vmatpush1.msra.mxu0 0.0
    %195 = vmatprep.subr.mxu0 0.0
    %196 = vmatpush1.msra.mxu0 0.0
    %197 = vmatprep.subr.mxu0 0.0
    %198 = vmatpush1.msra.mxu0 0.0
    %199 = vmatprep.subr.mxu0 0.0
    %200 = vmatpush1.msra.mxu0 0.0
    %201 = vmatprep.subr.mxu0 0.0
    %202 = vmatpush1.msra.mxu0 0.0
    %203 = vmatprep.subr.mxu0 0.0
    %204 = vmatpush1.msra.mxu0 0.0
    %205 = vmatprep.subr.mxu0 0.0
    %206 = vmatpush1.msra.mxu0 0.0
    %207 = vmatprep.subr.mxu0 0.0
    %208 = vmatpush1.msra.mxu0 0.0
    %209 = vmatprep.subr.mxu0 0.0
    %210 = vmatpush1.msra.mxu0 0.0
    %211 = vmatprep.subr.mxu0 0.0
    %212 = vmatpush1.msra.mxu0 0.0
    %213 = vmatprep.subr.mxu0 0.0
    %214 = vmatpush1.msra.mxu0 0.0
    %215 = vmatprep.subr.mxu0 0.0
    %216 = vmatpush1.msra.mxu0 0.0
    %217 = vmatprep.subr.mxu0 0.0
    %218 = vmatpush1.msra.mxu0 0.0
    %219 = vmatprep.subr.mxu0 0.0
    %220 = vmatpush1.msra.mxu0 0.0
    %221 = vmatprep.subr.mxu0 0.0
    %222 = vmatpush1.msra.mxu0 0.0
    %223 = vmatprep.subr.mxu0 0.0
    %224 = vmatpush1.msra.mxu0 0.0
    %225 = vmatprep.subr.mxu0 0.0
    %226 = vmatpush1.msra.mxu0 0.0
    %227 = vmatprep.subr.mxu0 0.0
    %228 = vmatpush1.msra.mxu0 0.0
    %229 = vmatprep.subr.mxu0 0.0
    %230 = vmatpush1.msra.mxu0 0.0
    %231 = vmatprep.subr.mxu0 0.0
    %232 = vmatpush1.msra.mxu0 0.0
    %233 = vmatprep.subr.mxu0 0.0
    %234 = vmatpush1.msra.mxu0 0.0
    %235 = vmatprep.subr.mxu0 0.0
    %236 = vmatpush1.msra.mxu0 0.0
    %237 = vmatprep.subr.mxu0 0.0
    %238 = vmatpush1.msra.mxu0 0.0
    %239 = vmatprep.subr.mxu0 0.0
    %240 = vmatpush1.msra.mxu0 0.0
    %241 = vmatprep.subr.mxu0 0.0
    %242 = vmatpush1.msra.mxu0 0.0
    %243 = vmatprep.subr.mxu0 0.0
    %244 = vmatpush1.msra.mxu0 0.0
    %245 = vmatprep.mubr.f32.mxu0 0.0
    %246 = vmatmul.mubr.f32.gmra.mrb[0].mxu0 %v176
    %v247 = vpop.f32.mrb[0].mxu0
    %v248 = vadd.f32 %v174, %v247
    %v249 = vpop.f32.mrb[0].mxu0
    %250 = vmatprep.mubr.f32.mxu0 0.0
    %251 = vmatmul.mubr.f32.gmra.mrb[0].mxu0 %v179
    %v252 = vpop.f32.mrb[0].mxu0
    %v253 = vadd.f32 %v174, %v252
    %v254 = vpop.f32.mrb[0].mxu0
    %255 = vdwg.mxu0
    %v256 = vlaneseq
    %v257 = vshrl.u32 %v256, 7
    %v258 = vsub.s32 2, %v257
    %v259 = vrot.slane %v83, %v258
    %v261 = vsel %vm89, %v65, 0
    %v264 = vsel %vm89, %v66, 0
    %266 = vmatprep.subr.mxu0 0.0
    %267 = vmatpush1.msra.mxu0 %v75
    %268 = vmatprep.subr.mxu0 0.0
    %269 = vmatpush1.msra.mxu0 %v76
    %270 = vmatprep.subr.mxu0 0.0
    %271 = vmatpush1.msra.mxu0 %v77
    %272 = vmatprep.subr.mxu0 0.0
    %273 = vmatpush1.msra.mxu0 %v78
    %274 = vmatprep.subr.mxu0 0.0
    %275 = vmatpush1.msra.mxu0 0.0
    %276 = vmatprep.subr.mxu0 0.0
    %277 = vmatpush1.msra.mxu0 0.0
    %278 = vmatprep.subr.mxu0 0.0
    %279 = vmatpush1.msra.mxu0 0.0
    %280 = vmatprep.subr.mxu0 0.0
    %281 = vmatpush1.msra.mxu0 0.0
    %282 = vmatprep.subr.mxu0 0.0
    %283 = vmatpush1.msra.mxu0 0.0
    %284 = vmatprep.subr.mxu0 0.0
    %285 = vmatpush1.msra.mxu0 0.0
    %286 = vmatprep.subr.mxu0 0.0
    %287 = vmatpush1.msra.mxu0 0.0
    %288 = vmatprep.subr.mxu0 0.0
    %289 = vmatpush1.msra.mxu0 0.0
    %290 = vmatprep.subr.mxu0 0.0
    %291 = vmatpush1.msra.mxu0 0.0
    %292 = vmatprep.subr.mxu0 0.0
    %293 = vmatpush1.msra.mxu0 0.0
    %294 = vmatprep.subr.mxu0 0.0
    %295 = vmatpush1.msra.mxu0 0.0
    %296 = vmatprep.subr.mxu0 0.0
    %297 = vmatpush1.msra.mxu0 0.0
    %298 = vmatprep.subr.mxu0 0.0
    %299 = vmatpush1.msra.mxu0 0.0
    %300 = vmatprep.subr.mxu0 0.0
    %301 = vmatpush1.msra.mxu0 0.0
    %302 = vmatprep.subr.mxu0 0.0
    %303 = vmatpush1.msra.mxu0 0.0
    %304 = vmatprep.subr.mxu0 0.0
    %305 = vmatpush1.msra.mxu0 0.0
    %306 = vmatprep.subr.mxu0 0.0
    %307 = vmatpush1.msra.mxu0 0.0
    %308 = vmatprep.subr.mxu0 0.0
    %309 = vmatpush1.msra.mxu0 0.0
    %310 = vmatprep.subr.mxu0 0.0
    %311 = vmatpush1.msra.mxu0 0.0
    %312 = vmatprep.subr.mxu0 0.0
    %313 = vmatpush1.msra.mxu0 0.0
    %314 = vmatprep.subr.mxu0 0.0
    %315 = vmatpush1.msra.mxu0 0.0
    %316 = vmatprep.subr.mxu0 0.0
    %317 = vmatpush1.msra.mxu0 0.0
    %318 = vmatprep.subr.mxu0 0.0
    %319 = vmatpush1.msra.mxu0 0.0
    %320 = vmatprep.subr.mxu0 0.0
    %321 = vmatpush1.msra.mxu0 0.0
    %322 = vmatprep.subr.mxu0 0.0
    %323 = vmatpush1.msra.mxu0 0.0
    %324 = vmatprep.subr.mxu0 0.0
    %325 = vmatpush1.msra.mxu0 0.0
    %326 = vmatprep.subr.mxu0 0.0
    %327 = vmatpush1.msra.mxu0 0.0
    %328 = vmatprep.subr.mxu0 0.0
    %329 = vmatpush1.msra.mxu0 0.0
    %330 = vmatprep.mubr.f32.mxu0 0.0
    %331 = vmatmul.mubr.f32.gmra.mrb[0].mxu0 %v261
    %v332 = vpop.f32.mrb[0].mxu0
    %v333 = vadd.f32 %v259, %v332
    %v334 = vpop.f32.mrb[0].mxu0
    %335 = vmatprep.mubr.f32.mxu0 0.0
    %336 = vmatmul.mubr.f32.gmra.mrb[0].mxu0 %v264
    %v337 = vpop.f32.mrb[0].mxu0
    %v338 = vadd.f32 %v259, %v337
    %v339 = vpop.f32.mrb[0].mxu0
    %340 = vdwg.mxu0
    %v341 = vld [vmem:[#allocation2] sm:$0x1]
    %v342 = vld [vmem:[#allocation2 + $0x1] sm:$0x1]
    %vm343 = vcmp.ne.s32.totalorder %v341, 0
    %vm344 = vcmp.ne.s32.totalorder %v342, 0
    %346 = vrot.lane.b32.xlu0 %v163, 120
    %v347 = vpop.permute.xlu0 %346
    %349 = vrot.lane.b32.xlu0 %v163, 112
    %v350 = vpop.permute.xlu0 %349
    %352 = vrot.lane.b32.xlu0 %v163, 104
    %v353 = vpop.permute.xlu0 %352
    %v355 = vcombine.low %v163, %v350
    %v356 = vcombine.high %v163, %v350
    %v358 = vunpack.c.l.s4 1983009808
    %v359 = vunpack.c.0.s8 %v358
    %v360 = vlaneseq
    %v361 = vshrl.u32 %v360, 7
    %v362 = vsub.s32 %v359, %v361
    %v363 = vrot.slane %v355, %v362
    %v365 = vunpack.c.l.s4 1983009808
    %v366 = vunpack.c.0.s8 %v365
    %v367 = vlaneseq
    %v368 = vshrl.u32 %v367, 7
    %v369 = vsub.s32 %v366, %v368
    %v370 = vrot.slane %v356, %v369
    %v371 = vcombine.low %v347, %v353
    %v372 = vcombine.high %v347, %v353
    %v374 = vunpack.c.l.s4 1983009808
    %v375 = vunpack.c.0.s8 %v374
    %v376 = vlaneseq
    %v377 = vshrl.u32 %v376, 7
    %v378 = vsub.s32 %v375, %v377
    %v379 = vrot.slane %v371, %v378
    %v381 = vunpack.c.l.s4 1983009808
    %v382 = vunpack.c.0.s8 %v381
    %v383 = vlaneseq
    %v384 = vshrl.u32 %v383, 7
    %v385 = vsub.s32 %v382, %v384
    %v386 = vrot.slane %v372, %v385
    %v387 = vcombine.low %v363, %v379
    %v388 = vcombine.high %v363, %v379
    %v390 = vunpack.c.l.s4 1934713408
    %v391 = vunpack.c.0.s8 %v390
    %v392 = vlaneseq
    %v393 = vshrl.u32 %v392, 7
    %v394 = vsub.s32 %v391, %v393
    %v395 = vrot.slane %v387, %v394
    %v397 = vunpack.c.l.s4 1934713408
    %v398 = vunpack.c.0.s8 %v397
    %v399 = vlaneseq
    %v400 = vshrl.u32 %v399, 7
    %v401 = vsub.s32 %v398, %v400
    %v402 = vrot.slane %v388, %v401
    %v403 = vcombine.low %v370, %v386
    %v404 = vcombine.high %v370, %v386
    %v406 = vunpack.c.l.s4 1934713408
    %v407 = vunpack.c.0.s8 %v406
    %v408 = vlaneseq
    %v409 = vshrl.u32 %v408, 7
    %v410 = vsub.s32 %v407, %v409
    %v411 = vrot.slane %v403, %v410
    %v413 = vunpack.c.l.s4 1934713408
    %v414 = vunpack.c.0.s8 %v413
    %v415 = vlaneseq
    %v416 = vshrl.u32 %v415, 7
    %v417 = vsub.s32 %v414, %v416
    %v418 = vrot.slane %v404, %v417
    %v419 = vcombine.high %v395, 0.0
    %v420 = vcombine.high %v402, 0.0
    %v421 = vcombine.high %v411, 0.0
    %v422 = vcombine.high %v418, 0.0
    %v423 = vcombine.low %v395, %v402
    %v425 = vunpack.c.l.s4 1983009808
    %v426 = vunpack.c.0.s8 %v425
    %v427 = vlaneseq
    %v428 = vshrl.u32 %v427, 7
    %v429 = vsub.s32 %v426, %v428
    %v430 = vrot.slane %v423, %v429
    %v431 = vcombine.low %v419, %v420
    %v433 = vunpack.c.l.s4 1983009808
    %v434 = vunpack.c.0.s8 %v433
    %v435 = vlaneseq
    %v436 = vshrl.u32 %v435, 7
    %v437 = vsub.s32 %v434, %v436
    %v438 = vrot.slane %v431, %v437
    %v439 = vcombine.low %v411, %v418
    %v441 = vunpack.c.l.s4 1983009808
    %v442 = vunpack.c.0.s8 %v441
    %v443 = vlaneseq
    %v444 = vshrl.u32 %v443, 7
    %v445 = vsub.s32 %v442, %v444
    %v446 = vrot.slane %v439, %v445
    %v447 = vcombine.low %v421, %v422
    %v449 = vunpack.c.l.s4 1983009808
    %v450 = vunpack.c.0.s8 %v449
    %v451 = vlaneseq
    %v452 = vshrl.u32 %v451, 7
    %v453 = vsub.s32 %v450, %v452
    %v454 = vrot.slane %v447, %v453
    %v455 = vcombine.low %v430, %v438
    %v456 = vcombine.high %v430, %v438
    %v458 = vunpack.c.l.s4 1934713408
    %v459 = vunpack.c.0.s8 %v458
    %v460 = vlaneseq
    %v461 = vshrl.u32 %v460, 7
    %v462 = vsub.s32 %v459, %v461
    %v463 = vrot.slane %v455, %v462
    %v465 = vunpack.c.l.s4 1934713408
    %v466 = vunpack.c.0.s8 %v465
    %v467 = vlaneseq
    %v468 = vshrl.u32 %v467, 7
    %v469 = vsub.s32 %v466, %v468
    %v470 = vrot.slane %v456, %v469
    %v471 = vcombine.low %v446, %v454
    %v472 = vcombine.high %v446, %v454
    %v474 = vunpack.c.l.s4 1934713408
    %v475 = vunpack.c.0.s8 %v474
    %v476 = vlaneseq
    %v477 = vshrl.u32 %v476, 7
    %v478 = vsub.s32 %v475, %v477
    %v479 = vrot.slane %v471, %v478
    %v481 = vunpack.c.l.s4 1934713408
    %v482 = vunpack.c.0.s8 %v481
    %v483 = vlaneseq
    %v484 = vshrl.u32 %v483, 7
    %v485 = vsub.s32 %v482, %v484
    %v486 = vrot.slane %v472, %v485
    %v487 = vcombine.low %v463, %v479
    %v488 = vcombine.high %v463, %v479
    %v489 = vcombine.low %v470, %v486
    %v490 = vcombine.high %v470, %v486
    %492 = vrot.lane.b32.xlu0 %v248, 120
    %v493 = vpop.permute.xlu0 %492
    %495 = vrot.lane.b32.xlu0 %v248, 112
    %v496 = vpop.permute.xlu0 %495
    %498 = vrot.lane.b32.xlu0 %v248, 104
    %v499 = vpop.permute.xlu0 %498
    %v501 = vcombine.low %v248, %v496
    %v502 = vcombine.high %v248, %v496
    %v504 = vunpack.c.l.s4 1983009808
    %v505 = vunpack.c.0.s8 %v504
    %v506 = vlaneseq
    %v507 = vshrl.u32 %v506, 7
    %v508 = vsub.s32 %v505, %v507
    %v509 = vrot.slane %v501, %v508
    %v511 = vunpack.c.l.s4 1983009808
    %v512 = vunpack.c.0.s8 %v511
    %v513 = vlaneseq
    %v514 = vshrl.u32 %v513, 7
    %v515 = vsub.s32 %v512, %v514
    %v516 = vrot.slane %v502, %v515
    %v517 = vcombine.low %v493, %v499
    %v518 = vcombine.high %v493, %v499
    %v520 = vunpack.c.l.s4 1983009808
    %v521 = vunpack.c.0.s8 %v520
    %v522 = vlaneseq
    %v523 = vshrl.u32 %v522, 7
    %v524 = vsub.s32 %v521, %v523
    %v525 = vrot.slane %v517, %v524
    %v527 = vunpack.c.l.s4 1983009808
    %v528 = vunpack.c.0.s8 %v527
    %v529 = vlaneseq
    %v530 = vshrl.u32 %v529, 7
    %v531 = vsub.s32 %v528, %v530
    %v532 = vrot.slane %v518, %v531
    %v533 = vcombine.low %v509, %v525
    %v534 = vcombine.high %v509, %v525
    %v536 = vunpack.c.l.s4 1934713408
    %v537 = vunpack.c.0.s8 %v536
    %v538 = vlaneseq
    %v539 = vshrl.u32 %v538, 7
    %v540 = vsub.s32 %v537, %v539
    %v541 = vrot.slane %v533, %v540
    %v543 = vunpack.c.l.s4 1934713408
    %v544 = vunpack.c.0.s8 %v543
    %v545 = vlaneseq
    %v546 = vshrl.u32 %v545, 7
    %v547 = vsub.s32 %v544, %v546
    %v548 = vrot.slane %v534, %v547
    %v549 = vcombine.low %v516, %v532
    %v550 = vcombine.high %v516, %v532
    %v552 = vunpack.c.l.s4 1934713408
    %v553 = vunpack.c.0.s8 %v552
    %v554 = vlaneseq
    %v555 = vshrl.u32 %v554, 7
    %v556 = vsub.s32 %v553, %v555
    %v557 = vrot.slane %v549, %v556
    %v559 = vunpack.c.l.s4 1934713408
    %v560 = vunpack.c.0.s8 %v559
    %v561 = vlaneseq
    %v562 = vshrl.u32 %v561, 7
    %v563 = vsub.s32 %v560, %v562
    %v564 = vrot.slane %v550, %v563
    %v565 = vcombine.high %v541, 0.0
    %v566 = vcombine.high %v548, 0.0
    %v567 = vcombine.high %v557, 0.0
    %v568 = vcombine.high %v564, 0.0
    %v569 = vcombine.low %v541, %v548
    %v571 = vunpack.c.l.s4 1983009808
    %v572 = vunpack.c.0.s8 %v571
    %v573 = vlaneseq
    %v574 = vshrl.u32 %v573, 7
    %v575 = vsub.s32 %v572, %v574
    %v576 = vrot.slane %v569, %v575
    %v577 = vcombine.low %v565, %v566
    %v579 = vunpack.c.l.s4 1983009808
    %v580 = vunpack.c.0.s8 %v579
    %v581 = vlaneseq
    %v582 = vshrl.u32 %v581, 7
    %v583 = vsub.s32 %v580, %v582
    %v584 = vrot.slane %v577, %v583
    %v585 = vcombine.low %v557, %v564
    %v587 = vunpack.c.l.s4 1983009808
    %v588 = vunpack.c.0.s8 %v587
    %v589 = vlaneseq
    %v590 = vshrl.u32 %v589, 7
    %v591 = vsub.s32 %v588, %v590
    %v592 = vrot.slane %v585, %v591
    %v593 = vcombine.low %v567, %v568
    %v595 = vunpack.c.l.s4 1983009808
    %v596 = vunpack.c.0.s8 %v595
    %v597 = vlaneseq
    %v598 = vshrl.u32 %v597, 7
    %v599 = vsub.s32 %v596, %v598
    %v600 = vrot.slane %v593, %v599
    %v601 = vcombine.low %v576, %v584
    %v602 = vcombine.high %v576, %v584
    %v604 = vunpack.c.l.s4 1934713408
    %v605 = vunpack.c.0.s8 %v604
    %v606 = vlaneseq
    %v607 = vshrl.u32 %v606, 7
    %v608 = vsub.s32 %v605, %v607
    %v609 = vrot.slane %v601, %v608
    %v611 = vunpack.c.l.s4 1934713408
    %v612 = vunpack.c.0.s8 %v611
    %v613 = vlaneseq
    %v614 = vshrl.u32 %v613, 7
    %v615 = vsub.s32 %v612, %v614
    %v616 = vrot.slane %v602, %v615
    %v617 = vcombine.low %v592, %v600
    %v618 = vcombine.high %v592, %v600
    %v620 = vunpack.c.l.s4 1934713408
    %v621 = vunpack.c.0.s8 %v620
    %v622 = vlaneseq
    %v623 = vshrl.u32 %v622, 7
    %v624 = vsub.s32 %v621, %v623
    %v625 = vrot.slane %v617, %v624
    %v627 = vunpack.c.l.s4 1934713408
    %v628 = vunpack.c.0.s8 %v627
    %v629 = vlaneseq
    %v630 = vshrl.u32 %v629, 7
    %v631 = vsub.s32 %v628, %v630
    %v632 = vrot.slane %v618, %v631
    %v633 = vcombine.low %v609, %v625
    %v634 = vcombine.high %v609, %v625
    %v635 = vcombine.low %v616, %v632
    %v636 = vcombine.high %v616, %v632
    %638 = vrot.lane.b32.xlu0 %v333, 120
    %v639 = vpop.permute.xlu0 %638
    %641 = vrot.lane.b32.xlu0 %v333, 112
    %v642 = vpop.permute.xlu0 %641
    %644 = vrot.lane.b32.xlu0 %v333, 104
    %v645 = vpop.permute.xlu0 %644
    %v647 = vcombine.low %v333, %v642
    %v648 = vcombine.high %v333, %v642
    %v650 = vunpack.c.l.s4 1983009808
    %v651 = vunpack.c.0.s8 %v650
    %v652 = vlaneseq
    %v653 = vshrl.u32 %v652, 7
    %v654 = vsub.s32 %v651, %v653
    %v655 = vrot.slane %v647, %v654
    %v657 = vunpack.c.l.s4 1983009808
    %v658 = vunpack.c.0.s8 %v657
    %v659 = vlaneseq
    %v660 = vshrl.u32 %v659, 7
    %v661 = vsub.s32 %v658, %v660
    %v662 = vrot.slane %v648, %v661
    %v663 = vcombine.low %v639, %v645
    %v664 = vcombine.high %v639, %v645
    %v666 = vunpack.c.l.s4 1983009808
    %v667 = vunpack.c.0.s8 %v666
    %v668 = vlaneseq
    %v669 = vshrl.u32 %v668, 7
    %v670 = vsub.s32 %v667, %v669
    %v671 = vrot.slane %v663, %v670
    %v673 = vunpack.c.l.s4 1983009808
    %v674 = vunpack.c.0.s8 %v673
    %v675 = vlaneseq
    %v676 = vshrl.u32 %v675, 7
    %v677 = vsub.s32 %v674, %v676
    %v678 = vrot.slane %v664, %v677
    %v679 = vcombine.low %v655, %v671
    %v680 = vcombine.high %v655, %v671
    %v682 = vunpack.c.l.s4 1934713408
    %v683 = vunpack.c.0.s8 %v682
    %v684 = vlaneseq
    %v685 = vshrl.u32 %v684, 7
    %v686 = vsub.s32 %v683, %v685
    %v687 = vrot.slane %v679, %v686
    %v689 = vunpack.c.l.s4 1934713408
    %v690 = vunpack.c.0.s8 %v689
    %v691 = vlaneseq
    %v692 = vshrl.u32 %v691, 7
    %v693 = vsub.s32 %v690, %v692
    %v694 = vrot.slane %v680, %v693
    %v695 = vcombine.low %v662, %v678
    %v696 = vcombine.high %v662, %v678
    %v698 = vunpack.c.l.s4 1934713408
    %v699 = vunpack.c.0.s8 %v698
    %v700 = vlaneseq
    %v701 = vshrl.u32 %v700, 7
    %v702 = vsub.s32 %v699, %v701
    %v703 = vrot.slane %v695, %v702
    %v705 = vunpack.c.l.s4 1934713408
    %v706 = vunpack.c.0.s8 %v705
    %v707 = vlaneseq
    %v708 = vshrl.u32 %v707, 7
    %v709 = vsub.s32 %v706, %v708
    %v710 = vrot.slane %v696, %v709
    %v711 = vcombine.high %v687, 0.0
    %v712 = vcombine.high %v694, 0.0
    %v713 = vcombine.high %v703, 0.0
    %v714 = vcombine.high %v710, 0.0
    %v715 = vcombine.low %v687, %v694
    %v717 = vunpack.c.l.s4 1983009808
    %v718 = vunpack.c.0.s8 %v717
    %v719 = vlaneseq
    %v720 = vshrl.u32 %v719, 7
    %v721 = vsub.s32 %v718, %v720
    %v722 = vrot.slane %v715, %v721
    %v723 = vcombine.low %v711, %v712
    %v725 = vunpack.c.l.s4 1983009808
    %v726 = vunpack.c.0.s8 %v725
    %v727 = vlaneseq
    %v728 = vshrl.u32 %v727, 7
    %v729 = vsub.s32 %v726, %v728
    %v730 = vrot.slane %v723, %v729
    %v731 = vcombine.low %v703, %v710
    %v733 = vunpack.c.l.s4 1983009808
    %v734 = vunpack.c.0.s8 %v733
    %v735 = vlaneseq
    %v736 = vshrl.u32 %v735, 7
    %v737 = vsub.s32 %v734, %v736
    %v738 = vrot.slane %v731, %v737
    %v739 = vcombine.low %v713, %v714
    %v741 = vunpack.c.l.s4 1983009808
    %v742 = vunpack.c.0.s8 %v741
    %v743 = vlaneseq
    %v744 = vshrl.u32 %v743, 7
    %v745 = vsub.s32 %v742, %v744
    %v746 = vrot.slane %v739, %v745
    %v747 = vcombine.low %v722, %v730
    %v748 = vcombine.high %v722, %v730
    %v750 = vunpack.c.l.s4 1934713408
    %v751 = vunpack.c.0.s8 %v750
    %v752 = vlaneseq
    %v753 = vshrl.u32 %v752, 7
    %v754 = vsub.s32 %v751, %v753
    %v755 = vrot.slane %v747, %v754
    %v757 = vunpack.c.l.s4 1934713408
    %v758 = vunpack.c.0.s8 %v757
    %v759 = vlaneseq
    %v760 = vshrl.u32 %v759, 7
    %v761 = vsub.s32 %v758, %v760
    %v762 = vrot.slane %v748, %v761
    %v763 = vcombine.low %v738, %v746
    %v764 = vcombine.high %v738, %v746
    %v766 = vunpack.c.l.s4 1934713408
    %v767 = vunpack.c.0.s8 %v766
    %v768 = vlaneseq
    %v769 = vshrl.u32 %v768, 7
    %v770 = vsub.s32 %v767, %v769
    %v771 = vrot.slane %v763, %v770
    %v773 = vunpack.c.l.s4 1934713408
    %v774 = vunpack.c.0.s8 %v773
    %v775 = vlaneseq
    %v776 = vshrl.u32 %v775, 7
    %v777 = vsub.s32 %v774, %v776
    %v778 = vrot.slane %v764, %v777
    %v779 = vcombine.low %v755, %v771
    %v780 = vcombine.high %v755, %v771
    %v781 = vcombine.low %v762, %v778
    %v782 = vcombine.high %v762, %v778
    %vm783 = vcmask 64512
    %v785 = vsel %vm783, %v487, 0
    %v788 = vsel %vm783, %v633, 0
    %790 = vmatprep.subr.mxu0 0.0
    %791 = vmatpush1.xpose.msra.mxu0 %v788
    %792 = vmatprep.subr.mxu0 0.0
    %793 = vmatpush1.xpose.msra.mxu0 0.0
    %794 = vmatprep.subr.mxu0 0.0
    %795 = vmatpush1.xpose.msra.mxu0 0.0
    %796 = vmatprep.subr.mxu0 0.0
    %797 = vmatpush1.xpose.msra.mxu0 0.0
    %798 = vmatprep.subr.mxu0 0.0
    %799 = vmatpush1.xpose.msra.mxu0 0.0
    %800 = vmatprep.subr.mxu0 0.0
    %801 = vmatpush1.xpose.msra.mxu0 0.0
    %802 = vmatprep.subr.mxu0 0.0
    %803 = vmatpush1.xpose.msra.mxu0 0.0
    %804 = vmatprep.subr.mxu0 0.0
    %805 = vmatpush1.xpose.msra.mxu0 0.0
    %806 = vmatprep.subr.mxu0 0.0
    %807 = vmatpush1.xpose.msra.mxu0 0.0
    %808 = vmatprep.subr.mxu0 0.0
    %809 = vmatpush1.xpose.msra.mxu0 0.0
    %810 = vmatprep.subr.mxu0 0.0
    %811 = vmatpush1.xpose.msra.mxu0 0.0
    %812 = vmatprep.subr.mxu0 0.0
    %813 = vmatpush1.xpose.msra.mxu0 0.0
    %814 = vmatprep.subr.mxu0 0.0
    %815 = vmatpush1.xpose.msra.mxu0 0.0
    %816 = vmatprep.subr.mxu0 0.0
    %817 = vmatpush1.xpose.msra.mxu0 0.0
    %818 = vmatprep.subr.mxu0 0.0
    %819 = vmatpush1.xpose.msra.mxu0 0.0
    %820 = vmatprep.subr.mxu0 0.0
    %821 = vmatpush1.xpose.msra.mxu0 0.0
    %822 = vmatprep.subr.mxu0 0.0
    %823 = vmatpush1.xpose.msra.mxu0 0.0
    %824 = vmatprep.subr.mxu0 0.0
    %825 = vmatpush1.xpose.msra.mxu0 0.0
    %826 = vmatprep.subr.mxu0 0.0
    %827 = vmatpush1.xpose.msra.mxu0 0.0
    %828 = vmatprep.subr.mxu0 0.0
    %829 = vmatpush1.xpose.msra.mxu0 0.0
    %830 = vmatprep.subr.mxu0 0.0
    %831 = vmatpush1.xpose.msra.mxu0 0.0
    %832 = vmatprep.subr.mxu0 0.0
    %833 = vmatpush1.xpose.msra.mxu0 0.0
    %834 = vmatprep.subr.mxu0 0.0
    %835 = vmatpush1.xpose.msra.mxu0 0.0
    %836 = vmatprep.subr.mxu0 0.0
    %837 = vmatpush1.xpose.msra.mxu0 0.0
    %838 = vmatprep.subr.mxu0 0.0
    %839 = vmatpush1.xpose.msra.mxu0 0.0
    %840 = vmatprep.subr.mxu0 0.0
    %841 = vmatpush1.xpose.msra.mxu0 0.0
    %842 = vmatprep.subr.mxu0 0.0
    %843 = vmatpush1.xpose.msra.mxu0 0.0
    %844 = vmatprep.subr.mxu0 0.0
    %845 = vmatpush1.xpose.msra.mxu0 0.0
    %846 = vmatprep.subr.mxu0 0.0
    %847 = vmatpush1.xpose.msra.mxu0 0.0
    %848 = vmatprep.subr.mxu0 0.0
    %849 = vmatpush1.xpose.msra.mxu0 0.0
    %850 = vmatprep.subr.mxu0 0.0
    %851 = vmatpush1.xpose.msra.mxu0 0.0
    %852 = vmatprep.subr.mxu0 0.0
    %853 = vmatpush1.xpose.msra.mxu0 0.0
    %854 = vmatprep.mubr.f32.mxu0 0.0
    %855 = vmatmul.mubr.f32.gmra.mrb[0].mxu0 %v785
    %v856 = vpop.f32.mrb[0].mxu0
    %v857 = vadd.f32 0.0, %v856
    %v858 = vpop.f32.mrb[0].mxu0
    %859 = vdwg.mxu0
    %v861 = vsel %vm783, %v488, 0
    %v864 = vsel %vm783, %v634, 0
    %866 = vmatprep.subr.mxu0 0.0
    %867 = vmatpush1.xpose.msra.mxu0 %v864
    %868 = vmatprep.subr.mxu0 0.0
    %869 = vmatpush1.xpose.msra.mxu0 0.0
    %870 = vmatprep.subr.mxu0 0.0
    %871 = vmatpush1.xpose.msra.mxu0 0.0
    %872 = vmatprep.subr.mxu0 0.0
    %873 = vmatpush1.xpose.msra.mxu0 0.0
    %874 = vmatprep.subr.mxu0 0.0
    %875 = vmatpush1.xpose.msra.mxu0 0.0
    %876 = vmatprep.subr.mxu0 0.0
    %877 = vmatpush1.xpose.msra.mxu0 0.0
    %878 = vmatprep.subr.mxu0 0.0
    %879 = vmatpush1.xpose.msra.mxu0 0.0
    %880 = vmatprep.subr.mxu0 0.0
    %881 = vmatpush1.xpose.msra.mxu0 0.0
    %882 = vmatprep.subr.mxu0 0.0
    %883 = vmatpush1.xpose.msra.mxu0 0.0
    %884 = vmatprep.subr.mxu0 0.0
    %885 = vmatpush1.xpose.msra.mxu0 0.0
    %886 = vmatprep.subr.mxu0 0.0
    %887 = vmatpush1.xpose.msra.mxu0 0.0
    %888 = vmatprep.subr.mxu0 0.0
    %889 = vmatpush1.xpose.msra.mxu0 0.0
    %890 = vmatprep.subr.mxu0 0.0
    %891 = vmatpush1.xpose.msra.mxu0 0.0
    %892 = vmatprep.subr.mxu0 0.0
    %893 = vmatpush1.xpose.msra.mxu0 0.0
    %894 = vmatprep.subr.mxu0 0.0
    %895 = vmatpush1.xpose.msra.mxu0 0.0
    %896 = vmatprep.subr.mxu0 0.0
    %897 = vmatpush1.xpose.msra.mxu0 0.0
    %898 = vmatprep.subr.mxu0 0.0
    %899 = vmatpush1.xpose.msra.mxu0 0.0
    %900 = vmatprep.subr.mxu0 0.0
    %901 = vmatpush1.xpose.msra.mxu0 0.0
    %902 = vmatprep.subr.mxu0 0.0
    %903 = vmatpush1.xpose.msra.mxu0 0.0
    %904 = vmatprep.subr.mxu0 0.0
    %905 = vmatpush1.xpose.msra.mxu0 0.0
    %906 = vmatprep.subr.mxu0 0.0
    %907 = vmatpush1.xpose.msra.mxu0 0.0
    %908 = vmatprep.subr.mxu0 0.0
    %909 = vmatpush1.xpose.msra.mxu0 0.0
    %910 = vmatprep.subr.mxu0 0.0
    %911 = vmatpush1.xpose.msra.mxu0 0.0
    %912 = vmatprep.subr.mxu0 0.0
    %913 = vmatpush1.xpose.msra.mxu0 0.0
    %914 = vmatprep.subr.mxu0 0.0
    %915 = vmatpush1.xpose.msra.mxu0 0.0
    %916 = vmatprep.subr.mxu0 0.0
    %917 = vmatpush1.xpose.msra.mxu0 0.0
    %918 = vmatprep.subr.mxu0 0.0
    %919 = vmatpush1.xpose.msra.mxu0 0.0
    %920 = vmatprep.subr.mxu0 0.0
    %921 = vmatpush1.xpose.msra.mxu0 0.0
    %922 = vmatprep.subr.mxu0 0.0
    %923 = vmatpush1.xpose.msra.mxu0 0.0
    %924 = vmatprep.subr.mxu0 0.0
    %925 = vmatpush1.xpose.msra.mxu0 0.0
    %926 = vmatprep.subr.mxu0 0.0
    %927 = vmatpush1.xpose.msra.mxu0 0.0
    %928 = vmatprep.subr.mxu0 0.0
    %929 = vmatpush1.xpose.msra.mxu0 0.0
    %930 = vmatprep.mubr.f32.mxu0 0.0
    %931 = vmatmul.mubr.f32.gmra.mrb[0].mxu0 %v861
    %v932 = vpop.f32.mrb[0].mxu0
    %v933 = vadd.f32 0.0, %v932
    %v934 = vpop.f32.mrb[0].mxu0
    %935 = vdwg.mxu0
    %v937 = vsel %vm783, %v489, 0
    %v940 = vsel %vm783, %v635, 0
    %942 = vmatprep.subr.mxu0 0.0
    %943 = vmatpush1.xpose.msra.mxu0 %v940
    %944 = vmatprep.subr.mxu0 0.0
    %945 = vmatpush1.xpose.msra.mxu0 0.0
    %946 = vmatprep.subr.mxu0 0.0
    %947 = vmatpush1.xpose.msra.mxu0 0.0
    %948 = vmatprep.subr.mxu0 0.0
    %949 = vmatpush1.xpose.msra.mxu0 0.0
    %950 = vmatprep.subr.mxu0 0.0
    %951 = vmatpush1.xpose.msra.mxu0 0.0
    %952 = vmatprep.subr.mxu0 0.0
    %953 = vmatpush1.xpose.msra.mxu0 0.0
    %954 = vmatprep.subr.mxu0 0.0
    %955 = vmatpush1.xpose.msra.mxu0 0.0
    %956 = vmatprep.subr.mxu0 0.0
    %957 = vmatpush1.xpose.msra.mxu0 0.0
    %958 = vmatprep.subr.mxu0 0.0
    %959 = vmatpush1.xpose.msra.mxu0 0.0
    %960 = vmatprep.subr.mxu0 0.0
    %961 = vmatpush1.xpose.msra.mxu0 0.0
    %962 = vmatprep.subr.mxu0 0.0
    %963 = vmatpush1.xpose.msra.mxu0 0.0
    %964 = vmatprep.subr.mxu0 0.0
    %965 = vmatpush1.xpose.msra.mxu0 0.0
    %966 = vmatprep.subr.mxu0 0.0
    %967 = vmatpush1.xpose.msra.mxu0 0.0
    %968 = vmatprep.subr.mxu0 0.0
    %969 = vmatpush1.xpose.msra.mxu0 0.0
    %970 = vmatprep.subr.mxu0 0.0
    %971 = vmatpush1.xpose.msra.mxu0 0.0
    %972 = vmatprep.subr.mxu0 0.0
    %973 = vmatpush1.xpose.msra.mxu0 0.0
    %974 = vmatprep.subr.mxu0 0.0
    %975 = vmatpush1.xpose.msra.mxu0 0.0
    %976 = vmatprep.subr.mxu0 0.0
    %977 = vmatpush1.xpose.msra.mxu0 0.0
    %978 = vmatprep.subr.mxu0 0.0
    %979 = vmatpush1.xpose.msra.mxu0 0.0
    %980 = vmatprep.subr.mxu0 0.0
    %981 = vmatpush1.xpose.msra.mxu0 0.0
    %982 = vmatprep.subr.mxu0 0.0
    %983 = vmatpush1.xpose.msra.mxu0 0.0
    %984 = vmatprep.subr.mxu0 0.0
    %985 = vmatpush1.xpose.msra.mxu0 0.0
    %986 = vmatprep.subr.mxu0 0.0
    %987 = vmatpush1.xpose.msra.mxu0 0.0
    %988 = vmatprep.subr.mxu0 0.0
    %989 = vmatpush1.xpose.msra.mxu0 0.0
    %990 = vmatprep.subr.mxu0 0.0
    %991 = vmatpush1.xpose.msra.mxu0 0.0
    %992 = vmatprep.subr.mxu0 0.0
    %993 = vmatpush1.xpose.msra.mxu0 0.0
    %994 = vmatprep.subr.mxu0 0.0
    %995 = vmatpush1.xpose.msra.mxu0 0.0
    %996 = vmatprep.subr.mxu0 0.0
    %997 = vmatpush1.xpose.msra.mxu0 0.0
    %998 = vmatprep.subr.mxu0 0.0
    %999 = vmatpush1.xpose.msra.mxu0 0.0
    %1000 = vmatprep.subr.mxu0 0.0
    %1001 = vmatpush1.xpose.msra.mxu0 0.0
    %1002 = vmatprep.subr.mxu0 0.0
    %1003 = vmatpush1.xpose.msra.mxu0 0.0
    %1004 = vmatprep.subr.mxu0 0.0
    %1005 = vmatpush1.xpose.msra.mxu0 0.0
    %1006 = vmatprep.mubr.f32.mxu0 0.0
    %1007 = vmatmul.mubr.f32.gmra.mrb[0].mxu0 %v937
    %v1008 = vpop.f32.mrb[0].mxu0
    %v1009 = vadd.f32 0.0, %v1008
    %v1010 = vpop.f32.mrb[0].mxu0
    %1011 = vdwg.mxu0
    %v1013 = vsel %vm783, %v490, 0
    %v1016 = vsel %vm783, %v636, 0
    %1018 = vmatprep.subr.mxu0 0.0
    %1019 = vmatpush1.xpose.msra.mxu0 %v1016
    %1020 = vmatprep.subr.mxu0 0.0
    %1021 = vmatpush1.xpose.msra.mxu0 0.0
    %1022 = vmatprep.subr.mxu0 0.0
    %1023 = vmatpush1.xpose.msra.mxu0 0.0
    %1024 = vmatprep.subr.mxu0 0.0
    %1025 = vmatpush1.xpose.msra.mxu0 0.0
    %1026 = vmatprep.subr.mxu0 0.0
    %1027 = vmatpush1.xpose.msra.mxu0 0.0
    %1028 = vmatprep.subr.mxu0 0.0
    %1029 = vmatpush1.xpose.msra.mxu0 0.0
    %1030 = vmatprep.subr.mxu0 0.0
    %1031 = vmatpush1.xpose.msra.mxu0 0.0
    %1032 = vmatprep.subr.mxu0 0.0
    %1033 = vmatpush1.xpose.msra.mxu0 0.0
    %1034 = vmatprep.subr.mxu0 0.0
    %1035 = vmatpush1.xpose.msra.mxu0 0.0
    %1036 = vmatprep.subr.mxu0 0.0
    %1037 = vmatpush1.xpose.msra.mxu0 0.0
    %1038 = vmatprep.subr.mxu0 0.0
    %1039 = vmatpush1.xpose.msra.mxu0 0.0
    %1040 = vmatprep.subr.mxu0 0.0
    %1041 = vmatpush1.xpose.msra.mxu0 0.0
    %1042 = vmatprep.subr.mxu0 0.0
    %1043 = vmatpush1.xpose.msra.mxu0 0.0
    %1044 = vmatprep.subr.mxu0 0.0
    %1045 = vmatpush1.xpose.msra.mxu0 0.0
    %1046 = vmatprep.subr.mxu0 0.0
    %1047 = vmatpush1.xpose.msra.mxu0 0.0
    %1048 = vmatprep.subr.mxu0 0.0
    %1049 = vmatpush1.xpose.msra.mxu0 0.0
    %1050 = vmatprep.subr.mxu0 0.0
    %1051 = vmatpush1.xpose.msra.mxu0 0.0
    %1052 = vmatprep.subr.mxu0 0.0
    %1053 = vmatpush1.xpose.msra.mxu0 0.0
    %1054 = vmatprep.subr.mxu0 0.0
    %1055 = vmatpush1.xpose.msra.mxu0 0.0
    %1056 = vmatprep.subr.mxu0 0.0
    %1057 = vmatpush1.xpose.msra.mxu0 0.0
    %1058 = vmatprep.subr.mxu0 0.0
    %1059 = vmatpush1.xpose.msra.mxu0 0.0
    %1060 = vmatprep.subr.mxu0 0.0
    %1061 = vmatpush1.xpose.msra.mxu0 0.0
    %1062 = vmatprep.subr.mxu0 0.0
    %1063 = vmatpush1.xpose.msra.mxu0 0.0
    %1064 = vmatprep.subr.mxu0 0.0
    %1065 = vmatpush1.xpose.msra.mxu0 0.0
    %1066 = vmatprep.subr.mxu0 0.0
    %1067 = vmatpush1.xpose.msra.mxu0 0.0
    %1068 = vmatprep.subr.mxu0 0.0
    %1069 = vmatpush1.xpose.msra.mxu0 0.0
    %1070 = vmatprep.subr.mxu0 0.0
    %1071 = vmatpush1.xpose.msra.mxu0 0.0
    %1072 = vmatprep.subr.mxu0 0.0
    %1073 = vmatpush1.xpose.msra.mxu0 0.0
    %1074 = vmatprep.subr.mxu0 0.0
    %1075 = vmatpush1.xpose.msra.mxu0 0.0
    %1076 = vmatprep.subr.mxu0 0.0
    %1077 = vmatpush1.xpose.msra.mxu0 0.0
    %1078 = vmatprep.subr.mxu0 0.0
    %1079 = vmatpush1.xpose.msra.mxu0 0.0
    %1080 = vmatprep.subr.mxu0 0.0
    %1081 = vmatpush1.xpose.msra.mxu0 0.0
    %1082 = vmatprep.mubr.f32.mxu0 0.0
    %1083 = vmatmul.mubr.f32.gmra.mrb[0].mxu0 %v1013
    %v1084 = vpop.f32.mrb[0].mxu0
    %v1085 = vadd.f32 0.0, %v1084
    %v1086 = vpop.f32.mrb[0].mxu0
    %1087 = vdwg.mxu0
    %v1088 = vsel %vm343, 1, 0
    %vm1089 = vcmp.eq.s32.totalorder %v1088, 1
    %v1094 = vcombine.high %v857, %v857
    %v1096 = vunpack.c.l.s4 1966171168
    %v1097 = vunpack.c.0.s8 %v1096
    %v1098 = vlaneseq
    %v1099 = vshrl.u32 %v1098, 7
    %v1100 = vsub.s32 %v1097, %v1099
    %v1101 = vrot.slane %v857, %v1100
    %v1103 = vunpack.c.l.s4 1966171168
    %v1104 = vunpack.c.0.s8 %v1103
    %v1105 = vlaneseq
    %v1106 = vshrl.u32 %v1105, 7
    %v1107 = vsub.s32 %v1104, %v1106
    %v1108 = vrot.slane %v1094, %v1107
    %v1109 = vcombine.high %v1101, %v1101
    %v1110 = vcombine.high %v1108, %v1108
    %v1112 = vunpack.c.l.s4 1966171168
    %v1113 = vunpack.c.0.s8 %v1112
    %v1114 = vlaneseq
    %v1115 = vshrl.u32 %v1114, 7
    %v1116 = vsub.s32 %v1113, %v1115
    %v1117 = vrot.slane %v1101, %v1116
    %v1119 = vunpack.c.l.s4 1966171168
    %v1120 = vunpack.c.0.s8 %v1119
    %v1121 = vlaneseq
    %v1122 = vshrl.u32 %v1121, 7
    %v1123 = vsub.s32 %v1120, %v1122
    %v1124 = vrot.slane %v1108, %v1123
    %v1126 = vunpack.c.l.s4 1966171168
    %v1127 = vunpack.c.0.s8 %v1126
    %v1128 = vlaneseq
    %v1129 = vshrl.u32 %v1128, 7
    %v1130 = vsub.s32 %v1127, %v1129
    %v1131 = vrot.slane %v1109, %v1130
    %v1133 = vunpack.c.l.s4 1966171168
    %v1134 = vunpack.c.0.s8 %v1133
    %v1135 = vlaneseq
    %v1136 = vshrl.u32 %v1135, 7
    %v1137 = vsub.s32 %v1134, %v1136
    %v1138 = vrot.slane %v1110, %v1137
    %v1139 = vcombine.high %v1117, %v1117
    %v1140 = vcombine.high %v1124, %v1124
    %v1141 = vcombine.high %v1131, %v1131
    %v1142 = vcombine.high %v1138, %v1138
    %v1143 = vcombine.high %v933, %v933
    %v1145 = vunpack.c.l.s4 1966171168
    %v1146 = vunpack.c.0.s8 %v1145
    %v1147 = vlaneseq
    %v1148 = vshrl.u32 %v1147, 7
    %v1149 = vsub.s32 %v1146, %v1148
    %v1150 = vrot.slane %v933, %v1149
    %v1152 = vunpack.c.l.s4 1966171168
    %v1153 = vunpack.c.0.s8 %v1152
    %v1154 = vlaneseq
    %v1155 = vshrl.u32 %v1154, 7
    %v1156 = vsub.s32 %v1153, %v1155
    %v1157 = vrot.slane %v1143, %v1156
    %v1158 = vcombine.high %v1150, %v1150
    %v1159 = vcombine.high %v1157, %v1157
    %v1161 = vunpack.c.l.s4 1966171168
    %v1162 = vunpack.c.0.s8 %v1161
    %v1163 = vlaneseq
    %v1164 = vshrl.u32 %v1163, 7
    %v1165 = vsub.s32 %v1162, %v1164
    %v1166 = vrot.slane %v1150, %v1165
    %v1168 = vunpack.c.l.s4 1966171168
    %v1169 = vunpack.c.0.s8 %v1168
    %v1170 = vlaneseq
    %v1171 = vshrl.u32 %v1170, 7
    %v1172 = vsub.s32 %v1169, %v1171
    %v1173 = vrot.slane %v1157, %v1172
    %v1175 = vunpack.c.l.s4 1966171168
    %v1176 = vunpack.c.0.s8 %v1175
    %v1177 = vlaneseq
    %v1178 = vshrl.u32 %v1177, 7
    %v1179 = vsub.s32 %v1176, %v1178
    %v1180 = vrot.slane %v1158, %v1179
    %v1182 = vunpack.c.l.s4 1966171168
    %v1183 = vunpack.c.0.s8 %v1182
    %v1184 = vlaneseq
    %v1185 = vshrl.u32 %v1184, 7
    %v1186 = vsub.s32 %v1183, %v1185
    %v1187 = vrot.slane %v1159, %v1186
    %v1188 = vcombine.high %v1166, %v1166
    %v1189 = vcombine.high %v1173, %v1173
    %v1190 = vcombine.high %v1180, %v1180
    %v1191 = vcombine.high %v1187, %v1187
    %v1192 = vcombine.high %v1009, %v1009
    %v1194 = vunpack.c.l.s4 1966171168
    %v1195 = vunpack.c.0.s8 %v1194
    %v1196 = vlaneseq
    %v1197 = vshrl.u32 %v1196, 7
    %v1198 = vsub.s32 %v1195, %v1197
    %v1199 = vrot.slane %v1009, %v1198
    %v1201 = vunpack.c.l.s4 1966171168
    %v1202 = vunpack.c.0.s8 %v1201
    %v1203 = vlaneseq
    %v1204 = vshrl.u32 %v1203, 7
    %v1205 = vsub.s32 %v1202, %v1204
    %v1206 = vrot.slane %v1192, %v1205
    %v1207 = vcombine.high %v1199, %v1199
    %v1208 = vcombine.high %v1206, %v1206
    %v1210 = vunpack.c.l.s4 1966171168
    %v1211 = vunpack.c.0.s8 %v1210
    %v1212 = vlaneseq
    %v1213 = vshrl.u32 %v1212, 7
    %v1214 = vsub.s32 %v1211, %v1213
    %v1215 = vrot.slane %v1199, %v1214
    %v1217 = vunpack.c.l.s4 1966171168
    %v1218 = vunpack.c.0.s8 %v1217
    %v1219 = vlaneseq
    %v1220 = vshrl.u32 %v1219, 7
    %v1221 = vsub.s32 %v1218, %v1220
    %v1222 = vrot.slane %v1206, %v1221
    %v1224 = vunpack.c.l.s4 1966171168
    %v1225 = vunpack.c.0.s8 %v1224
    %v1226 = vlaneseq
    %v1227 = vshrl.u32 %v1226, 7
    %v1228 = vsub.s32 %v1225, %v1227
    %v1229 = vrot.slane %v1207, %v1228
    %v1231 = vunpack.c.l.s4 1966171168
    %v1232 = vunpack.c.0.s8 %v1231
    %v1233 = vlaneseq
    %v1234 = vshrl.u32 %v1233, 7
    %v1235 = vsub.s32 %v1232, %v1234
    %v1236 = vrot.slane %v1208, %v1235
    %v1237 = vcombine.high %v1215, %v1215
    %v1238 = vcombine.high %v1222, %v1222
    %v1239 = vcombine.high %v1229, %v1229
    %v1240 = vcombine.high %v1236, %v1236
    %v1241 = vcombine.high %v1085, %v1085
    %v1243 = vunpack.c.l.s4 1966171168
    %v1244 = vunpack.c.0.s8 %v1243
    %v1245 = vlaneseq
    %v1246 = vshrl.u32 %v1245, 7
    %v1247 = vsub.s32 %v1244, %v1246
    %v1248 = vrot.slane %v1085, %v1247
    %v1250 = vunpack.c.l.s4 1966171168
    %v1251 = vunpack.c.0.s8 %v1250
    %v1252 = vlaneseq
    %v1253 = vshrl.u32 %v1252, 7
    %v1254 = vsub.s32 %v1251, %v1253
    %v1255 = vrot.slane %v1241, %v1254
    %v1256 = vcombine.high %v1248, %v1248
    %v1257 = vcombine.high %v1255, %v1255
    %v1259 = vunpack.c.l.s4 1966171168
    %v1260 = vunpack.c.0.s8 %v1259
    %v1261 = vlaneseq
    %v1262 = vshrl.u32 %v1261, 7
    %v1263 = vsub.s32 %v1260, %v1262
    %v1264 = vrot.slane %v1248, %v1263
    %v1266 = vunpack.c.l.s4 1966171168
    %v1267 = vunpack.c.0.s8 %v1266
    %v1268 = vlaneseq
    %v1269 = vshrl.u32 %v1268, 7
    %v1270 = vsub.s32 %v1267, %v1269
    %v1271 = vrot.slane %v1255, %v1270
    %v1273 = vunpack.c.l.s4 1966171168
    %v1274 = vunpack.c.0.s8 %v1273
    %v1275 = vlaneseq
    %v1276 = vshrl.u32 %v1275, 7
    %v1277 = vsub.s32 %v1274, %v1276
    %v1278 = vrot.slane %v1256, %v1277
    %v1280 = vunpack.c.l.s4 1966171168
    %v1281 = vunpack.c.0.s8 %v1280
    %v1282 = vlaneseq
    %v1283 = vshrl.u32 %v1282, 7
    %v1284 = vsub.s32 %v1281, %v1283
    %v1285 = vrot.slane %v1257, %v1284
    %v1286 = vcombine.high %v1264, %v1264
    %v1287 = vcombine.high %v1271, %v1271
    %v1288 = vcombine.high %v1278, %v1278
    %v1289 = vcombine.high %v1285, %v1285
    %v1322 = vsel %vm1089, %v1117, -1e+09
    %v1323 = vsel %vm1089, %v1131, -1e+09
    %v1324 = vsel %vm1089, %v1139, -1e+09
    %v1325 = vsel %vm1089, %v1141, -1e+09
    %v1326 = vsel %vm1089, %v1124, -1e+09
    %v1327 = vsel %vm1089, %v1138, -1e+09
    %v1328 = vsel %vm1089, %v1140, -1e+09
    %v1329 = vsel %vm1089, %v1142, -1e+09
    %v1330 = vsel %vm1089, %v1166, -1e+09
    %v1331 = vsel %vm1089, %v1180, -1e+09
    %v1332 = vsel %vm1089, %v1188, -1e+09
    %v1333 = vsel %vm1089, %v1190, -1e+09
    %v1334 = vsel %vm1089, %v1173, -1e+09
    %v1335 = vsel %vm1089, %v1187, -1e+09
    %v1336 = vsel %vm1089, %v1189, -1e+09
    %v1337 = vsel %vm1089, %v1191, -1e+09
    %v1338 = vsel %vm1089, %v1215, -1e+09
    %v1339 = vsel %vm1089, %v1229, -1e+09
    %v1340 = vsel %vm1089, %v1237, -1e+09
    %v1341 = vsel %vm1089, %v1239, -1e+09
    %v1342 = vsel %vm1089, %v1222, -1e+09
    %v1343 = vsel %vm1089, %v1236, -1e+09
    %v1344 = vsel %vm1089, %v1238, -1e+09
    %v1345 = vsel %vm1089, %v1240, -1e+09
    %v1346 = vsel %vm1089, %v1264, -1e+09
    %v1347 = vsel %vm1089, %v1278, -1e+09
    %v1348 = vsel %vm1089, %v1286, -1e+09
    %v1349 = vsel %vm1089, %v1288, -1e+09
    %v1350 = vsel %vm1089, %v1271, -1e+09
    %v1351 = vsel %vm1089, %v1285, -1e+09
    %v1352 = vsel %vm1089, %v1287, -1e+09
    %v1353 = vsel %vm1089, %v1289, -1e+09
    %v1354 = vmul.f32 %v1322, 0.35355338
    %v1355 = vmul.f32 %v1323, 0.35355338
    %v1356 = vmul.f32 %v1324, 0.35355338
    %v1357 = vmul.f32 %v1325, 0.35355338
    %v1358 = vmul.f32 %v1326, 0.35355338
    %v1359 = vmul.f32 %v1327, 0.35355338
    %v1360 = vmul.f32 %v1328, 0.35355338
    %v1361 = vmul.f32 %v1329, 0.35355338
    %v1362 = vmul.f32 %v1330, 0.35355338
    %v1363 = vmul.f32 %v1331, 0.35355338
    %v1364 = vmul.f32 %v1332, 0.35355338
    %v1365 = vmul.f32 %v1333, 0.35355338
    %v1366 = vmul.f32 %v1334, 0.35355338
    %v1367 = vmul.f32 %v1335, 0.35355338
    %v1368 = vmul.f32 %v1336, 0.35355338
    %v1369 = vmul.f32 %v1337, 0.35355338
    %v1370 = vmul.f32 %v1338, 0.35355338
    %v1371 = vmul.f32 %v1339, 0.35355338
    %v1372 = vmul.f32 %v1340, 0.35355338
    %v1373 = vmul.f32 %v1341, 0.35355338
    %v1374 = vmul.f32 %v1342, 0.35355338
    %v1375 = vmul.f32 %v1343, 0.35355338
    %v1376 = vmul.f32 %v1344, 0.35355338
    %v1377 = vmul.f32 %v1345, 0.35355338
    %v1378 = vmul.f32 %v1346, 0.35355338
    %v1379 = vmul.f32 %v1347, 0.35355338
    %v1380 = vmul.f32 %v1348, 0.35355338
    %v1381 = vmul.f32 %v1349, 0.35355338
    %v1382 = vmul.f32 %v1350, 0.35355338
    %v1383 = vmul.f32 %v1351, 0.35355338
    %v1384 = vmul.f32 %v1352, 0.35355338
    %v1385 = vmul.f32 %v1353, 0.35355338
    %v1418 = vcombine.low %v1354, %v1355
    %v1419 = vcombine.low %v1356, %v1357
    %v1420 = vcombine.low %v1358, %v1359
    %v1421 = vcombine.low %v1360, %v1361
    %v1423 = vunpack.c.l.s4 1966171168
    %v1424 = vunpack.c.0.s8 %v1423
    %v1425 = vlaneseq
    %v1426 = vshrl.u32 %v1425, 7
    %v1427 = vsub.s32 %v1424, %v1426
    %v1428 = vrot.slane %v1418, %v1427
    %v1430 = vunpack.c.l.s4 1966171168
    %v1431 = vunpack.c.0.s8 %v1430
    %v1432 = vlaneseq
    %v1433 = vshrl.u32 %v1432, 7
    %v1434 = vsub.s32 %v1431, %v1433
    %v1435 = vrot.slane %v1419, %v1434
    %v1437 = vunpack.c.l.s4 1966171168
    %v1438 = vunpack.c.0.s8 %v1437
    %v1439 = vlaneseq
    %v1440 = vshrl.u32 %v1439, 7
    %v1441 = vsub.s32 %v1438, %v1440
    %v1442 = vrot.slane %v1420, %v1441
    %v1444 = vunpack.c.l.s4 1966171168
    %v1445 = vunpack.c.0.s8 %v1444
    %v1446 = vlaneseq
    %v1447 = vshrl.u32 %v1446, 7
    %v1448 = vsub.s32 %v1445, %v1447
    %v1449 = vrot.slane %v1421, %v1448
    %v1450 = vcombine.low %v1428, %v1435
    %v1451 = vcombine.low %v1442, %v1449
    %v1453 = vunpack.c.l.s4 1966171168
    %v1454 = vunpack.c.0.s8 %v1453
    %v1455 = vlaneseq
    %v1456 = vshrl.u32 %v1455, 7
    %v1457 = vsub.s32 %v1454, %v1456
    %v1458 = vrot.slane %v1450, %v1457
    %v1460 = vunpack.c.l.s4 1966171168
    %v1461 = vunpack.c.0.s8 %v1460
    %v1462 = vlaneseq
    %v1463 = vshrl.u32 %v1462, 7
    %v1464 = vsub.s32 %v1461, %v1463
    %v1465 = vrot.slane %v1451, %v1464
    %v1466 = vcombine.low %v1458, %v1465
    %v1467 = vcombine.low %v1362, %v1363
    %v1468 = vcombine.low %v1364, %v1365
    %v1469 = vcombine.low %v1366, %v1367
    %v1470 = vcombine.low %v1368, %v1369
    %v1472 = vunpack.c.l.s4 1966171168
    %v1473 = vunpack.c.0.s8 %v1472
    %v1474 = vlaneseq
    %v1475 = vshrl.u32 %v1474, 7
    %v1476 = vsub.s32 %v1473, %v1475
    %v1477 = vrot.slane %v1467, %v1476
    %v1479 = vunpack.c.l.s4 1966171168
    %v1480 = vunpack.c.0.s8 %v1479
    %v1481 = vlaneseq
    %v1482 = vshrl.u32 %v1481, 7
    %v1483 = vsub.s32 %v1480, %v1482
    %v1484 = vrot.slane %v1468, %v1483
    %v1486 = vunpack.c.l.s4 1966171168
    %v1487 = vunpack.c.0.s8 %v1486
    %v1488 = vlaneseq
    %v1489 = vshrl.u32 %v1488, 7
    %v1490 = vsub.s32 %v1487, %v1489
    %v1491 = vrot.slane %v1469, %v1490
    %v1493 = vunpack.c.l.s4 1966171168
    %v1494 = vunpack.c.0.s8 %v1493
    %v1495 = vlaneseq
    %v1496 = vshrl.u32 %v1495, 7
    %v1497 = vsub.s32 %v1494, %v1496
    %v1498 = vrot.slane %v1470, %v1497
    %v1499 = vcombine.low %v1477, %v1484
    %v1500 = vcombine.low %v1491, %v1498
    %v1502 = vunpack.c.l.s4 1966171168
    %v1503 = vunpack.c.0.s8 %v1502
    %v1504 = vlaneseq
    %v1505 = vshrl.u32 %v1504, 7
    %v1506 = vsub.s32 %v1503, %v1505
    %v1507 = vrot.slane %v1499, %v1506
    %v1509 = vunpack.c.l.s4 1966171168
    %v1510 = vunpack.c.0.s8 %v1509
    %v1511 = vlaneseq
    %v1512 = vshrl.u32 %v1511, 7
    %v1513 = vsub.s32 %v1510, %v1512
    %v1514 = vrot.slane %v1500, %v1513
    %v1515 = vcombine.low %v1507, %v1514
    %v1516 = vcombine.low %v1370, %v1371
    %v1517 = vcombine.low %v1372, %v1373
    %v1518 = vcombine.low %v1374, %v1375
    %v1519 = vcombine.low %v1376, %v1377
    %v1521 = vunpack.c.l.s4 1966171168
    %v1522 = vunpack.c.0.s8 %v1521
    %v1523 = vlaneseq
    %v1524 = vshrl.u32 %v1523, 7
    %v1525 = vsub.s32 %v1522, %v1524
    %v1526 = vrot.slane %v1516, %v1525
    %v1528 = vunpack.c.l.s4 1966171168
    %v1529 = vunpack.c.0.s8 %v1528
    %v1530 = vlaneseq
    %v1531 = vshrl.u32 %v1530, 7
    %v1532 = vsub.s32 %v1529, %v1531
    %v1533 = vrot.slane %v1517, %v1532
    %v1535 = vunpack.c.l.s4 1966171168
    %v1536 = vunpack.c.0.s8 %v1535
    %v1537 = vlaneseq
    %v1538 = vshrl.u32 %v1537, 7
    %v1539 = vsub.s32 %v1536, %v1538
    %v1540 = vrot.slane %v1518, %v1539
    %v1542 = vunpack.c.l.s4 1966171168
    %v1543 = vunpack.c.0.s8 %v1542
    %v1544 = vlaneseq
    %v1545 = vshrl.u32 %v1544, 7
    %v1546 = vsub.s32 %v1543, %v1545
    %v1547 = vrot.slane %v1519, %v1546
    %v1548 = vcombine.low %v1526, %v1533
    %v1549 = vcombine.low %v1540, %v1547
    %v1551 = vunpack.c.l.s4 1966171168
    %v1552 = vunpack.c.0.s8 %v1551
    %v1553 = vlaneseq
    %v1554 = vshrl.u32 %v1553, 7
    %v1555 = vsub.s32 %v1552, %v1554
    %v1556 = vrot.slane %v1548, %v1555
    %v1558 = vunpack.c.l.s4 1966171168
    %v1559 = vunpack.c.0.s8 %v1558
    %v1560 = vlaneseq
    %v1561 = vshrl.u32 %v1560, 7
    %v1562 = vsub.s32 %v1559, %v1561
    %v1563 = vrot.slane %v1549, %v1562
    %v1564 = vcombine.low %v1556, %v1563
    %v1565 = vcombine.low %v1378, %v1379
    %v1566 = vcombine.low %v1380, %v1381
    %v1567 = vcombine.low %v1382, %v1383
    %v1568 = vcombine.low %v1384, %v1385
    %v1570 = vunpack.c.l.s4 1966171168
    %v1571 = vunpack.c.0.s8 %v1570
    %v1572 = vlaneseq
    %v1573 = vshrl.u32 %v1572, 7
    %v1574 = vsub.s32 %v1571, %v1573
    %v1575 = vrot.slane %v1565, %v1574
    %v1577 = vunpack.c.l.s4 1966171168
    %v1578 = vunpack.c.0.s8 %v1577
    %v1579 = vlaneseq
    %v1580 = vshrl.u32 %v1579, 7
    %v1581 = vsub.s32 %v1578, %v1580
    %v1582 = vrot.slane %v1566, %v1581
    %v1584 = vunpack.c.l.s4 1966171168
    %v1585 = vunpack.c.0.s8 %v1584
    %v1586 = vlaneseq
    %v1587 = vshrl.u32 %v1586, 7
    %v1588 = vsub.s32 %v1585, %v1587
    %v1589 = vrot.slane %v1567, %v1588
    %v1591 = vunpack.c.l.s4 1966171168
    %v1592 = vunpack.c.0.s8 %v1591
    %v1593 = vlaneseq
    %v1594 = vshrl.u32 %v1593, 7
    %v1595 = vsub.s32 %v1592, %v1594
    %v1596 = vrot.slane %v1568, %v1595
    %v1597 = vcombine.low %v1575, %v1582
    %v1598 = vcombine.low %v1589, %v1596
    %v1600 = vunpack.c.l.s4 1966171168
    %v1601 = vunpack.c.0.s8 %v1600
    %v1602 = vlaneseq
    %v1603 = vshrl.u32 %v1602, 7
    %v1604 = vsub.s32 %v1601, %v1603
    %v1605 = vrot.slane %v1597, %v1604
    %v1607 = vunpack.c.l.s4 1966171168
    %v1608 = vunpack.c.0.s8 %v1607
    %v1609 = vlaneseq
    %v1610 = vshrl.u32 %v1609, 7
    %v1611 = vsub.s32 %v1608, %v1610
    %v1612 = vrot.slane %v1598, %v1611
    %v1613 = vcombine.low %v1605, %v1612
    %v1618 = vsel %vm783, %v1466, -inf
    %1619 = vmax.xlane.f32.xlu0 %v1618
    %v1620 = vpop.xlane.xlu0 %1619
    %v1621 = vsel %vm783, %v1515, -inf
    %1622 = vmax.xlane.f32.xlu0 %v1621
    %v1623 = vpop.xlane.xlu0 %1622
    %v1624 = vsel %vm783, %v1564, -inf
    %1625 = vmax.xlane.f32.xlu0 %v1624
    %v1626 = vpop.xlane.xlu0 %1625
    %v1627 = vsel %vm783, %v1613, -inf
    %1628 = vmax.xlane.f32.xlu0 %v1627
    %v1629 = vpop.xlane.xlu0 %1628
    %v1634 = vlaneseq
    %v1635 = vshrl.u32 %v1634, 7
    %v1636 = vsub.s32 0, %v1635
    %v1637 = vrot.slane %v1620, %v1636
    %v1638 = vlaneseq
    %v1639 = vshrl.u32 %v1638, 7
    %v1640 = vsub.s32 1, %v1639
    %v1641 = vrot.slane %v1620, %v1640
    %v1642 = vlaneseq
    %v1643 = vshrl.u32 %v1642, 7
    %v1644 = vsub.s32 2, %v1643
    %v1645 = vrot.slane %v1620, %v1644
    %v1646 = vlaneseq
    %v1647 = vshrl.u32 %v1646, 7
    %v1648 = vsub.s32 3, %v1647
    %v1649 = vrot.slane %v1620, %v1648
    %v1650 = vlaneseq
    %v1651 = vshrl.u32 %v1650, 7
    %v1652 = vsub.s32 4, %v1651
    %v1653 = vrot.slane %v1620, %v1652
    %v1654 = vlaneseq
    %v1655 = vshrl.u32 %v1654, 7
    %v1656 = vsub.s32 5, %v1655
    %v1657 = vrot.slane %v1620, %v1656
    %v1658 = vlaneseq
    %v1659 = vshrl.u32 %v1658, 7
    %v1660 = vsub.s32 6, %v1659
    %v1661 = vrot.slane %v1620, %v1660
    %v1662 = vlaneseq
    %v1663 = vshrl.u32 %v1662, 7
    %v1664 = vsub.s32 7, %v1663
    %v1665 = vrot.slane %v1620, %v1664
    %v1666 = vlaneseq
    %v1667 = vshrl.u32 %v1666, 7
    %v1668 = vsub.s32 0, %v1667
    %v1669 = vrot.slane %v1623, %v1668
    %v1670 = vlaneseq
    %v1671 = vshrl.u32 %v1670, 7
    %v1672 = vsub.s32 1, %v1671
    %v1673 = vrot.slane %v1623, %v1672
    %v1674 = vlaneseq
    %v1675 = vshrl.u32 %v1674, 7
    %v1676 = vsub.s32 2, %v1675
    %v1677 = vrot.slane %v1623, %v1676
    %v1678 = vlaneseq
    %v1679 = vshrl.u32 %v1678, 7
    %v1680 = vsub.s32 3, %v1679
    %v1681 = vrot.slane %v1623, %v1680
    %v1682 = vlaneseq
    %v1683 = vshrl.u32 %v1682, 7
    %v1684 = vsub.s32 4, %v1683
    %v1685 = vrot.slane %v1623, %v1684
    %v1686 = vlaneseq
    %v1687 = vshrl.u32 %v1686, 7
    %v1688 = vsub.s32 5, %v1687
    %v1689 = vrot.slane %v1623, %v1688
    %v1690 = vlaneseq
    %v1691 = vshrl.u32 %v1690, 7
    %v1692 = vsub.s32 6, %v1691
    %v1693 = vrot.slane %v1623, %v1692
    %v1694 = vlaneseq
    %v1695 = vshrl.u32 %v1694, 7
    %v1696 = vsub.s32 7, %v1695
    %v1697 = vrot.slane %v1623, %v1696
    %v1698 = vlaneseq
    %v1699 = vshrl.u32 %v1698, 7
    %v1700 = vsub.s32 0, %v1699
    %v1701 = vrot.slane %v1626, %v1700
    %v1702 = vlaneseq
    %v1703 = vshrl.u32 %v1702, 7
    %v1704 = vsub.s32 1, %v1703
    %v1705 = vrot.slane %v1626, %v1704
    %v1706 = vlaneseq
    %v1707 = vshrl.u32 %v1706, 7
    %v1708 = vsub.s32 2, %v1707
    %v1709 = vrot.slane %v1626, %v1708
    %v1710 = vlaneseq
    %v1711 = vshrl.u32 %v1710, 7
    %v1712 = vsub.s32 3, %v1711
    %v1713 = vrot.slane %v1626, %v1712
    %v1714 = vlaneseq
    %v1715 = vshrl.u32 %v1714, 7
    %v1716 = vsub.s32 4, %v1715
    %v1717 = vrot.slane %v1626, %v1716
    %v1718 = vlaneseq
    %v1719 = vshrl.u32 %v1718, 7
    %v1720 = vsub.s32 5, %v1719
    %v1721 = vrot.slane %v1626, %v1720
    %v1722 = vlaneseq
    %v1723 = vshrl.u32 %v1722, 7
    %v1724 = vsub.s32 6, %v1723
    %v1725 = vrot.slane %v1626, %v1724
    %v1726 = vlaneseq
    %v1727 = vshrl.u32 %v1726, 7
    %v1728 = vsub.s32 7, %v1727
    %v1729 = vrot.slane %v1626, %v1728
    %v1730 = vlaneseq
    %v1731 = vshrl.u32 %v1730, 7
    %v1732 = vsub.s32 0, %v1731
    %v1733 = vrot.slane %v1629, %v1732
    %v1734 = vlaneseq
    %v1735 = vshrl.u32 %v1734, 7
    %v1736 = vsub.s32 1, %v1735
    %v1737 = vrot.slane %v1629, %v1736
    %v1738 = vlaneseq
    %v1739 = vshrl.u32 %v1738, 7
    %v1740 = vsub.s32 2, %v1739
    %v1741 = vrot.slane %v1629, %v1740
    %v1742 = vlaneseq
    %v1743 = vshrl.u32 %v1742, 7
    %v1744 = vsub.s32 3, %v1743
    %v1745 = vrot.slane %v1629, %v1744
    %v1746 = vlaneseq
    %v1747 = vshrl.u32 %v1746, 7
    %v1748 = vsub.s32 4, %v1747
    %v1749 = vrot.slane %v1629, %v1748
    %v1750 = vlaneseq
    %v1751 = vshrl.u32 %v1750, 7
    %v1752 = vsub.s32 5, %v1751
    %v1753 = vrot.slane %v1629, %v1752
    %v1754 = vlaneseq
    %v1755 = vshrl.u32 %v1754, 7
    %v1756 = vsub.s32 6, %v1755
    %v1757 = vrot.slane %v1629, %v1756
    %v1758 = vlaneseq
    %v1759 = vshrl.u32 %v1758, 7
    %v1760 = vsub.s32 7, %v1759
    %v1761 = vrot.slane %v1629, %v1760
    %v1794 = vsub.f32 %v1354, %v1637
    %v1795 = vsub.f32 %v1355, %v1641
    %v1796 = vsub.f32 %v1356, %v1645
    %v1797 = vsub.f32 %v1357, %v1649
    %v1798 = vsub.f32 %v1358, %v1653
    %v1799 = vsub.f32 %v1359, %v1657
    %v1800 = vsub.f32 %v1360, %v1661
    %v1801 = vsub.f32 %v1361, %v1665
    %v1802 = vsub.f32 %v1362, %v1669
    %v1803 = vsub.f32 %v1363, %v1673
    %v1804 = vsub.f32 %v1364, %v1677
    %v1805 = vsub.f32 %v1365, %v1681
    %v1806 = vsub.f32 %v1366, %v1685
    %v1807 = vsub.f32 %v1367, %v1689
    %v1808 = vsub.f32 %v1368, %v1693
    %v1809 = vsub.f32 %v1369, %v1697
    %v1810 = vsub.f32 %v1370, %v1701
    %v1811 = vsub.f32 %v1371, %v1705
    %v1812 = vsub.f32 %v1372, %v1709
    %v1813 = vsub.f32 %v1373, %v1713
    %v1814 = vsub.f32 %v1374, %v1717
    %v1815 = vsub.f32 %v1375, %v1721
    %v1816 = vsub.f32 %v1376, %v1725
    %v1817 = vsub.f32 %v1377, %v1729
    %v1818 = vsub.f32 %v1378, %v1733
    %v1819 = vsub.f32 %v1379, %v1737
    %v1820 = vsub.f32 %v1380, %v1741
    %v1821 = vsub.f32 %v1381, %v1745
    %v1822 = vsub.f32 %v1382, %v1749
    %v1823 = vsub.f32 %v1383, %v1753
    %v1824 = vsub.f32 %v1384, %v1757
    %v1825 = vsub.f32 %v1385, %v1761
    %v1826 = vmul.f32 %v1794, 1.442695
    %v1827 = vpow.pop %v1826
    %v1828 = vmul.f32 %v1795, 1.442695
    %v1829 = vpow.pop %v1828
    %v1830 = vmul.f32 %v1796, 1.442695
    %v1831 = vpow.pop %v1830
    %v1832 = vmul.f32 %v1797, 1.442695
    %v1833 = vpow.pop %v1832
    %v1834 = vmul.f32 %v1798, 1.442695
    %v1835 = vpow.pop %v1834
    %v1836 = vmul.f32 %v1799, 1.442695
    %v1837 = vpow.pop %v1836
    %v1838 = vmul.f32 %v1800, 1.442695
    %v1839 = vpow.pop %v1838
    %v1840 = vmul.f32 %v1801, 1.442695
    %v1841 = vpow.pop %v1840
    %v1842 = vmul.f32 %v1802, 1.442695
    %v1843 = vpow.pop %v1842
    %v1844 = vmul.f32 %v1803, 1.442695
    %v1845 = vpow.pop %v1844
    %v1846 = vmul.f32 %v1804, 1.442695
    %v1847 = vpow.pop %v1846
    %v1848 = vmul.f32 %v1805, 1.442695
    %v1849 = vpow.pop %v1848
    %v1850 = vmul.f32 %v1806, 1.442695
    %v1851 = vpow.pop %v1850
    %v1852 = vmul.f32 %v1807, 1.442695
    %v1853 = vpow.pop %v1852
    %v1854 = vmul.f32 %v1808, 1.442695
    %v1855 = vpow.pop %v1854
    %v1856 = vmul.f32 %v1809, 1.442695
    %v1857 = vpow.pop %v1856
    %v1858 = vmul.f32 %v1810, 1.442695
    %v1859 = vpow.pop %v1858
    %v1860 = vmul.f32 %v1811, 1.442695
    %v1861 = vpow.pop %v1860
    %v1862 = vmul.f32 %v1812, 1.442695
    %v1863 = vpow.pop %v1862
    %v1864 = vmul.f32 %v1813, 1.442695
    %v1865 = vpow.pop %v1864
    %v1866 = vmul.f32 %v1814, 1.442695
    %v1867 = vpow.pop %v1866
    %v1868 = vmul.f32 %v1815, 1.442695
    %v1869 = vpow.pop %v1868
    %v1870 = vmul.f32 %v1816, 1.442695
    %v1871 = vpow.pop %v1870
    %v1872 = vmul.f32 %v1817, 1.442695
    %v1873 = vpow.pop %v1872
    %v1874 = vmul.f32 %v1818, 1.442695
    %v1875 = vpow.pop %v1874
    %v1876 = vmul.f32 %v1819, 1.442695
    %v1877 = vpow.pop %v1876
    %v1878 = vmul.f32 %v1820, 1.442695
    %v1879 = vpow.pop %v1878
    %v1880 = vmul.f32 %v1821, 1.442695
    %v1881 = vpow.pop %v1880
    %v1882 = vmul.f32 %v1822, 1.442695
    %v1883 = vpow.pop %v1882
    %v1884 = vmul.f32 %v1823, 1.442695
    %v1885 = vpow.pop %v1884
    %v1886 = vmul.f32 %v1824, 1.442695
    %v1887 = vpow.pop %v1886
    %v1888 = vmul.f32 %v1825, 1.442695
    %v1889 = vpow.pop %v1888
    %v1922 = vcombine.low %v1827, %v1829
    %v1923 = vcombine.low %v1831, %v1833
    %v1924 = vcombine.low %v1835, %v1837
    %v1925 = vcombine.low %v1839, %v1841
    %v1927 = vunpack.c.l.s4 1966171168
    %v1928 = vunpack.c.0.s8 %v1927
    %v1929 = vlaneseq
    %v1930 = vshrl.u32 %v1929, 7
    %v1931 = vsub.s32 %v1928, %v1930
    %v1932 = vrot.slane %v1922, %v1931
    %v1934 = vunpack.c.l.s4 1966171168
    %v1935 = vunpack.c.0.s8 %v1934
    %v1936 = vlaneseq
    %v1937 = vshrl.u32 %v1936, 7
    %v1938 = vsub.s32 %v1935, %v1937
    %v1939 = vrot.slane %v1923, %v1938
    %v1941 = vunpack.c.l.s4 1966171168
    %v1942 = vunpack.c.0.s8 %v1941
    %v1943 = vlaneseq
    %v1944 = vshrl.u32 %v1943, 7
    %v1945 = vsub.s32 %v1942, %v1944
    %v1946 = vrot.slane %v1924, %v1945
    %v1948 = vunpack.c.l.s4 1966171168
    %v1949 = vunpack.c.0.s8 %v1948
    %v1950 = vlaneseq
    %v1951 = vshrl.u32 %v1950, 7
    %v1952 = vsub.s32 %v1949, %v1951
    %v1953 = vrot.slane %v1925, %v1952
    %v1954 = vcombine.low %v1932, %v1939
    %v1955 = vcombine.low %v1946, %v1953
    %v1957 = vunpack.c.l.s4 1966171168
    %v1958 = vunpack.c.0.s8 %v1957
    %v1959 = vlaneseq
    %v1960 = vshrl.u32 %v1959, 7
    %v1961 = vsub.s32 %v1958, %v1960
    %v1962 = vrot.slane %v1954, %v1961
    %v1964 = vunpack.c.l.s4 1966171168
    %v1965 = vunpack.c.0.s8 %v1964
    %v1966 = vlaneseq
    %v1967 = vshrl.u32 %v1966, 7
    %v1968 = vsub.s32 %v1965, %v1967
    %v1969 = vrot.slane %v1955, %v1968
    %v1970 = vcombine.low %v1962, %v1969
    %v1971 = vcombine.low %v1843, %v1845
    %v1972 = vcombine.low %v1847, %v1849
    %v1973 = vcombine.low %v1851, %v1853
    %v1974 = vcombine.low %v1855, %v1857
    %v1976 = vunpack.c.l.s4 1966171168
    %v1977 = vunpack.c.0.s8 %v1976
    %v1978 = vlaneseq
    %v1979 = vshrl.u32 %v1978, 7
    %v1980 = vsub.s32 %v1977, %v1979
    %v1981 = vrot.slane %v1971, %v1980
    %v1983 = vunpack.c.l.s4 1966171168
    %v1984 = vunpack.c.0.s8 %v1983
    %v1985 = vlaneseq
    %v1986 = vshrl.u32 %v1985, 7
    %v1987 = vsub.s32 %v1984, %v1986
    %v1988 = vrot.slane %v1972, %v1987
    %v1990 = vunpack.c.l.s4 1966171168
    %v1991 = vunpack.c.0.s8 %v1990
    %v1992 = vlaneseq
    %v1993 = vshrl.u32 %v1992, 7
    %v1994 = vsub.s32 %v1991, %v1993
    %v1995 = vrot.slane %v1973, %v1994
    %v1997 = vunpack.c.l.s4 1966171168
    %v1998 = vunpack.c.0.s8 %v1997
    %v1999 = vlaneseq
    %v2000 = vshrl.u32 %v1999, 7
    %v2001 = vsub.s32 %v1998, %v2000
    %v2002 = vrot.slane %v1974, %v2001
    %v2003 = vcombine.low %v1981, %v1988
    %v2004 = vcombine.low %v1995, %v2002
    %v2006 = vunpack.c.l.s4 1966171168
    %v2007 = vunpack.c.0.s8 %v2006
    %v2008 = vlaneseq
    %v2009 = vshrl.u32 %v2008, 7
    %v2010 = vsub.s32 %v2007, %v2009
    %v2011 = vrot.slane %v2003, %v2010
    %v2013 = vunpack.c.l.s4 1966171168
    %v2014 = vunpack.c.0.s8 %v2013
    %v2015 = vlaneseq
    %v2016 = vshrl.u32 %v2015, 7
    %v2017 = vsub.s32 %v2014, %v2016
    %v2018 = vrot.slane %v2004, %v2017
    %v2019 = vcombine.low %v2011, %v2018
    %v2020 = vcombine.low %v1859, %v1861
    %v2021 = vcombine.low %v1863, %v1865
    %v2022 = vcombine.low %v1867, %v1869
    %v2023 = vcombine.low %v1871, %v1873
    %v2025 = vunpack.c.l.s4 1966171168
    %v2026 = vunpack.c.0.s8 %v2025
    %v2027 = vlaneseq
    %v2028 = vshrl.u32 %v2027, 7
    %v2029 = vsub.s32 %v2026, %v2028
    %v2030 = vrot.slane %v2020, %v2029
    %v2032 = vunpack.c.l.s4 1966171168
    %v2033 = vunpack.c.0.s8 %v2032
    %v2034 = vlaneseq
    %v2035 = vshrl.u32 %v2034, 7
    %v2036 = vsub.s32 %v2033, %v2035
    %v2037 = vrot.slane %v2021, %v2036
    %v2039 = vunpack.c.l.s4 1966171168
    %v2040 = vunpack.c.0.s8 %v2039
    %v2041 = vlaneseq
    %v2042 = vshrl.u32 %v2041, 7
    %v2043 = vsub.s32 %v2040, %v2042
    %v2044 = vrot.slane %v2022, %v2043
    %v2046 = vunpack.c.l.s4 1966171168
    %v2047 = vunpack.c.0.s8 %v2046
    %v2048 = vlaneseq
    %v2049 = vshrl.u32 %v2048, 7
    %v2050 = vsub.s32 %v2047, %v2049
    %v2051 = vrot.slane %v2023, %v2050
    %v2052 = vcombine.low %v2030, %v2037
    %v2053 = vcombine.low %v2044, %v2051
    %v2055 = vunpack.c.l.s4 1966171168
    %v2056 = vunpack.c.0.s8 %v2055
    %v2057 = vlaneseq
    %v2058 = vshrl.u32 %v2057, 7
    %v2059 = vsub.s32 %v2056, %v2058
    %v2060 = vrot.slane %v2052, %v2059
    %v2062 = vunpack.c.l.s4 1966171168
    %v2063 = vunpack.c.0.s8 %v2062
    %v2064 = vlaneseq
    %v2065 = vshrl.u32 %v2064, 7
    %v2066 = vsub.s32 %v2063, %v2065
    %v2067 = vrot.slane %v2053, %v2066
    %v2068 = vcombine.low %v2060, %v2067
    %v2069 = vcombine.low %v1875, %v1877
    %v2070 = vcombine.low %v1879, %v1881
    %v2071 = vcombine.low %v1883, %v1885
    %v2072 = vcombine.low %v1887, %v1889
    %v2074 = vunpack.c.l.s4 1966171168
    %v2075 = vunpack.c.0.s8 %v2074
    %v2076 = vlaneseq
    %v2077 = vshrl.u32 %v2076, 7
    %v2078 = vsub.s32 %v2075, %v2077
    %v2079 = vrot.slane %v2069, %v2078
    %v2081 = vunpack.c.l.s4 1966171168
    %v2082 = vunpack.c.0.s8 %v2081
    %v2083 = vlaneseq
    %v2084 = vshrl.u32 %v2083, 7
    %v2085 = vsub.s32 %v2082, %v2084
    %v2086 = vrot.slane %v2070, %v2085
    %v2088 = vunpack.c.l.s4 1966171168
    %v2089 = vunpack.c.0.s8 %v2088
    %v2090 = vlaneseq
    %v2091 = vshrl.u32 %v2090, 7
    %v2092 = vsub.s32 %v2089, %v2091
    %v2093 = vrot.slane %v2071, %v2092
    %v2095 = vunpack.c.l.s4 1966171168
    %v2096 = vunpack.c.0.s8 %v2095
    %v2097 = vlaneseq
    %v2098 = vshrl.u32 %v2097, 7
    %v2099 = vsub.s32 %v2096, %v2098
    %v2100 = vrot.slane %v2072, %v2099
    %v2101 = vcombine.low %v2079, %v2086
    %v2102 = vcombine.low %v2093, %v2100
    %v2104 = vunpack.c.l.s4 1966171168
    %v2105 = vunpack.c.0.s8 %v2104
    %v2106 = vlaneseq
    %v2107 = vshrl.u32 %v2106, 7
    %v2108 = vsub.s32 %v2105, %v2107
    %v2109 = vrot.slane %v2101, %v2108
    %v2111 = vunpack.c.l.s4 1966171168
    %v2112 = vunpack.c.0.s8 %v2111
    %v2113 = vlaneseq
    %v2114 = vshrl.u32 %v2113, 7
    %v2115 = vsub.s32 %v2112, %v2114
    %v2116 = vrot.slane %v2102, %v2115
    %v2117 = vcombine.low %v2109, %v2116
    %v2122 = vsel %vm783, %v1970, 0.0
    %2123 = vadd.xlane.f32.xlu0 %v2122
    %v2124 = vpop.xlane.xlu0 %2123
    %v2125 = vsel %vm783, %v2019, 0.0
    %2126 = vadd.xlane.f32.xlu0 %v2125
    %v2127 = vpop.xlane.xlu0 %2126
    %v2128 = vsel %vm783, %v2068, 0.0
    %2129 = vadd.xlane.f32.xlu0 %v2128
    %v2130 = vpop.xlane.xlu0 %2129
    %v2131 = vsel %vm783, %v2117, 0.0
    %2132 = vadd.xlane.f32.xlu0 %v2131
    %v2133 = vpop.xlane.xlu0 %2132
    %v2134 = vrcp.pop %v2124
    %v2135 = vrcp.pop %v2127
    %v2136 = vrcp.pop %v2130
    %v2137 = vrcp.pop %v2133
    %v2142 = vlaneseq
    %v2143 = vshrl.u32 %v2142, 7
    %v2144 = vsub.s32 0, %v2143
    %v2145 = vrot.slane %v2134, %v2144
    %v2146 = vlaneseq
    %v2147 = vshrl.u32 %v2146, 7
    %v2148 = vsub.s32 1, %v2147
    %v2149 = vrot.slane %v2134, %v2148
    %v2150 = vlaneseq
    %v2151 = vshrl.u32 %v2150, 7
    %v2152 = vsub.s32 2, %v2151
    %v2153 = vrot.slane %v2134, %v2152
    %v2154 = vlaneseq
    %v2155 = vshrl.u32 %v2154, 7
    %v2156 = vsub.s32 3, %v2155
    %v2157 = vrot.slane %v2134, %v2156
    %v2158 = vlaneseq
    %v2159 = vshrl.u32 %v2158, 7
    %v2160 = vsub.s32 4, %v2159
    %v2161 = vrot.slane %v2134, %v2160
    %v2162 = vlaneseq
    %v2163 = vshrl.u32 %v2162, 7
    %v2164 = vsub.s32 5, %v2163
    %v2165 = vrot.slane %v2134, %v2164
    %v2166 = vlaneseq
    %v2167 = vshrl.u32 %v2166, 7
    %v2168 = vsub.s32 6, %v2167
    %v2169 = vrot.slane %v2134, %v2168
    %v2170 = vlaneseq
    %v2171 = vshrl.u32 %v2170, 7
    %v2172 = vsub.s32 7, %v2171
    %v2173 = vrot.slane %v2134, %v2172
    %v2174 = vlaneseq
    %v2175 = vshrl.u32 %v2174, 7
    %v2176 = vsub.s32 0, %v2175
    %v2177 = vrot.slane %v2135, %v2176
    %v2178 = vlaneseq
    %v2179 = vshrl.u32 %v2178, 7
    %v2180 = vsub.s32 1, %v2179
    %v2181 = vrot.slane %v2135, %v2180
    %v2182 = vlaneseq
    %v2183 = vshrl.u32 %v2182, 7
    %v2184 = vsub.s32 2, %v2183
    %v2185 = vrot.slane %v2135, %v2184
    %v2186 = vlaneseq
    %v2187 = vshrl.u32 %v2186, 7
    %v2188 = vsub.s32 3, %v2187
    %v2189 = vrot.slane %v2135, %v2188
    %v2190 = vlaneseq
    %v2191 = vshrl.u32 %v2190, 7
    %v2192 = vsub.s32 4, %v2191
    %v2193 = vrot.slane %v2135, %v2192
    %v2194 = vlaneseq
    %v2195 = vshrl.u32 %v2194, 7
    %v2196 = vsub.s32 5, %v2195
    %v2197 = vrot.slane %v2135, %v2196
    %v2198 = vlaneseq
    %v2199 = vshrl.u32 %v2198, 7
    %v2200 = vsub.s32 6, %v2199
    %v2201 = vrot.slane %v2135, %v2200
    %v2202 = vlaneseq
    %v2203 = vshrl.u32 %v2202, 7
    %v2204 = vsub.s32 7, %v2203
    %v2205 = vrot.slane %v2135, %v2204
    %v2206 = vlaneseq
    %v2207 = vshrl.u32 %v2206, 7
    %v2208 = vsub.s32 0, %v2207
    %v2209 = vrot.slane %v2136, %v2208
    %v2210 = vlaneseq
    %v2211 = vshrl.u32 %v2210, 7
    %v2212 = vsub.s32 1, %v2211
    %v2213 = vrot.slane %v2136, %v2212
    %v2214 = vlaneseq
    %v2215 = vshrl.u32 %v2214, 7
    %v2216 = vsub.s32 2, %v2215
    %v2217 = vrot.slane %v2136, %v2216
    %v2218 = vlaneseq
    %v2219 = vshrl.u32 %v2218, 7
    %v2220 = vsub.s32 3, %v2219
    %v2221 = vrot.slane %v2136, %v2220
    %v2222 = vlaneseq
    %v2223 = vshrl.u32 %v2222, 7
    %v2224 = vsub.s32 4, %v2223
    %v2225 = vrot.slane %v2136, %v2224
    %v2226 = vlaneseq
    %v2227 = vshrl.u32 %v2226, 7
    %v2228 = vsub.s32 5, %v2227
    %v2229 = vrot.slane %v2136, %v2228
    %v2230 = vlaneseq
    %v2231 = vshrl.u32 %v2230, 7
    %v2232 = vsub.s32 6, %v2231
    %v2233 = vrot.slane %v2136, %v2232
    %v2234 = vlaneseq
    %v2235 = vshrl.u32 %v2234, 7
    %v2236 = vsub.s32 7, %v2235
    %v2237 = vrot.slane %v2136, %v2236
    %v2238 = vlaneseq
    %v2239 = vshrl.u32 %v2238, 7
    %v2240 = vsub.s32 0, %v2239
    %v2241 = vrot.slane %v2137, %v2240
    %v2242 = vlaneseq
    %v2243 = vshrl.u32 %v2242, 7
    %v2244 = vsub.s32 1, %v2243
    %v2245 = vrot.slane %v2137, %v2244
    %v2246 = vlaneseq
    %v2247 = vshrl.u32 %v2246, 7
    %v2248 = vsub.s32 2, %v2247
    %v2249 = vrot.slane %v2137, %v2248
    %v2250 = vlaneseq
    %v2251 = vshrl.u32 %v2250, 7
    %v2252 = vsub.s32 3, %v2251
    %v2253 = vrot.slane %v2137, %v2252
    %v2254 = vlaneseq
    %v2255 = vshrl.u32 %v2254, 7
    %v2256 = vsub.s32 4, %v2255
    %v2257 = vrot.slane %v2137, %v2256
    %v2258 = vlaneseq
    %v2259 = vshrl.u32 %v2258, 7
    %v2260 = vsub.s32 5, %v2259
    %v2261 = vrot.slane %v2137, %v2260
    %v2262 = vlaneseq
    %v2263 = vshrl.u32 %v2262, 7
    %v2264 = vsub.s32 6, %v2263
    %v2265 = vrot.slane %v2137, %v2264
    %v2266 = vlaneseq
    %v2267 = vshrl.u32 %v2266, 7
    %v2268 = vsub.s32 7, %v2267
    %v2269 = vrot.slane %v2137, %v2268
    %v2302 = vmul.f32 %v1827, %v2145
    %v2303 = vmul.f32 %v1829, %v2149
    %v2304 = vmul.f32 %v1831, %v2153
    %v2305 = vmul.f32 %v1833, %v2157
    %v2306 = vmul.f32 %v1835, %v2161
    %v2307 = vmul.f32 %v1837, %v2165
    %v2308 = vmul.f32 %v1839, %v2169
    %v2309 = vmul.f32 %v1841, %v2173
    %v2310 = vmul.f32 %v1843, %v2177
    %v2311 = vmul.f32 %v1845, %v2181
    %v2312 = vmul.f32 %v1847, %v2185
    %v2313 = vmul.f32 %v1849, %v2189
    %v2314 = vmul.f32 %v1851, %v2193
    %v2315 = vmul.f32 %v1853, %v2197
    %v2316 = vmul.f32 %v1855, %v2201
    %v2317 = vmul.f32 %v1857, %v2205
    %v2318 = vmul.f32 %v1859, %v2209
    %v2319 = vmul.f32 %v1861, %v2213
    %v2320 = vmul.f32 %v1863, %v2217
    %v2321 = vmul.f32 %v1865, %v2221
    %v2322 = vmul.f32 %v1867, %v2225
    %v2323 = vmul.f32 %v1869, %v2229
    %v2324 = vmul.f32 %v1871, %v2233
    %v2325 = vmul.f32 %v1873, %v2237
    %v2326 = vmul.f32 %v1875, %v2241
    %v2327 = vmul.f32 %v1877, %v2245
    %v2328 = vmul.f32 %v1879, %v2249
    %v2329 = vmul.f32 %v1881, %v2253
    %v2330 = vmul.f32 %v1883, %v2257
    %v2331 = vmul.f32 %v1885, %v2261
    %v2332 = vmul.f32 %v1887, %v2265
    %v2333 = vmul.f32 %v1889, %v2269
    %v2342 = vcombine.low %v2302, %v2303
    %v2343 = vcombine.low %v2304, %v2305
    %v2344 = vcombine.low %v2306, %v2307
    %v2345 = vcombine.low %v2308, %v2309
    %v2347 = vunpack.c.l.s4 1966171168
    %v2348 = vunpack.c.0.s8 %v2347
    %v2349 = vlaneseq
    %v2350 = vshrl.u32 %v2349, 7
    %v2351 = vsub.s32 %v2348, %v2350
    %v2352 = vrot.slane %v2342, %v2351
    %v2354 = vunpack.c.l.s4 1966171168
    %v2355 = vunpack.c.0.s8 %v2354
    %v2356 = vlaneseq
    %v2357 = vshrl.u32 %v2356, 7
    %v2358 = vsub.s32 %v2355, %v2357
    %v2359 = vrot.slane %v2343, %v2358
    %v2361 = vunpack.c.l.s4 1966171168
    %v2362 = vunpack.c.0.s8 %v2361
    %v2363 = vlaneseq
    %v2364 = vshrl.u32 %v2363, 7
    %v2365 = vsub.s32 %v2362, %v2364
    %v2366 = vrot.slane %v2344, %v2365
    %v2368 = vunpack.c.l.s4 1966171168
    %v2369 = vunpack.c.0.s8 %v2368
    %v2370 = vlaneseq
    %v2371 = vshrl.u32 %v2370, 7
    %v2372 = vsub.s32 %v2369, %v2371
    %v2373 = vrot.slane %v2345, %v2372
    %v2374 = vcombine.low %v2352, %v2359
    %v2375 = vcombine.low %v2366, %v2373
    %v2377 = vunpack.c.l.s4 1966171168
    %v2378 = vunpack.c.0.s8 %v2377
    %v2379 = vlaneseq
    %v2380 = vshrl.u32 %v2379, 7
    %v2381 = vsub.s32 %v2378, %v2380
    %v2382 = vrot.slane %v2374, %v2381
    %v2384 = vunpack.c.l.s4 1966171168
    %v2385 = vunpack.c.0.s8 %v2384
    %v2386 = vlaneseq
    %v2387 = vshrl.u32 %v2386, 7
    %v2388 = vsub.s32 %v2385, %v2387
    %v2389 = vrot.slane %v2375, %v2388
    %v2390 = vcombine.low %v2382, %v2389
    %v2391 = vsel %vm783, %v2390, 0
    %2393 = vmatprep.subr.mxu0 0.0
    %2394 = vmatpush1.msra.mxu0 %v779
    %2395 = vmatprep.subr.mxu0 0.0
    %2396 = vmatpush1.msra.mxu0 0.0
    %2397 = vmatprep.subr.mxu0 0.0
    %2398 = vmatpush1.msra.mxu0 0.0
    %2399 = vmatprep.subr.mxu0 0.0
    %2400 = vmatpush1.msra.mxu0 0.0
    %2401 = vmatprep.subr.mxu0 0.0
    %2402 = vmatpush1.msra.mxu0 0.0
    %2403 = vmatprep.subr.mxu0 0.0
    %2404 = vmatpush1.msra.mxu0 0.0
    %2405 = vmatprep.subr.mxu0 0.0
    %2406 = vmatpush1.msra.mxu0 0.0
    %2407 = vmatprep.subr.mxu0 0.0
    %2408 = vmatpush1.msra.mxu0 0.0
    %2409 = vmatprep.subr.mxu0 0.0
    %2410 = vmatpush1.msra.mxu0 0.0
    %2411 = vmatprep.subr.mxu0 0.0
    %2412 = vmatpush1.msra.mxu0 0.0
    %2413 = vmatprep.subr.mxu0 0.0
    %2414 = vmatpush1.msra.mxu0 0.0
    %2415 = vmatprep.subr.mxu0 0.0
    %2416 = vmatpush1.msra.mxu0 0.0
    %2417 = vmatprep.subr.mxu0 0.0
    %2418 = vmatpush1.msra.mxu0 0.0
    %2419 = vmatprep.subr.mxu0 0.0
    %2420 = vmatpush1.msra.mxu0 0.0
    %2421 = vmatprep.subr.mxu0 0.0
    %2422 = vmatpush1.msra.mxu0 0.0
    %2423 = vmatprep.subr.mxu0 0.0
    %2424 = vmatpush1.msra.mxu0 0.0
    %2425 = vmatprep.subr.mxu0 0.0
    %2426 = vmatpush1.msra.mxu0 0.0
    %2427 = vmatprep.subr.mxu0 0.0
    %2428 = vmatpush1.msra.mxu0 0.0
    %2429 = vmatprep.subr.mxu0 0.0
    %2430 = vmatpush1.msra.mxu0 0.0
    %2431 = vmatprep.subr.mxu0 0.0
    %2432 = vmatpush1.msra.mxu0 0.0
    %2433 = vmatprep.subr.mxu0 0.0
    %2434 = vmatpush1.msra.mxu0 0.0
    %2435 = vmatprep.subr.mxu0 0.0
    %2436 = vmatpush1.msra.mxu0 0.0
    %2437 = vmatprep.subr.mxu0 0.0
    %2438 = vmatpush1.msra.mxu0 0.0
    %2439 = vmatprep.subr.mxu0 0.0
    %2440 = vmatpush1.msra.mxu0 0.0
    %2441 = vmatprep.subr.mxu0 0.0
    %2442 = vmatpush1.msra.mxu0 0.0
    %2443 = vmatprep.subr.mxu0 0.0
    %2444 = vmatpush1.msra.mxu0 0.0
    %2445 = vmatprep.subr.mxu0 0.0
    %2446 = vmatpush1.msra.mxu0 0.0
    %2447 = vmatprep.subr.mxu0 0.0
    %2448 = vmatpush1.msra.mxu0 0.0
    %2449 = vmatprep.subr.mxu0 0.0
    %2450 = vmatpush1.msra.mxu0 0.0
    %2451 = vmatprep.subr.mxu0 0.0
    %2452 = vmatpush1.msra.mxu0 0.0
    %2453 = vmatprep.subr.mxu0 0.0
    %2454 = vmatpush1.msra.mxu0 0.0
    %2455 = vmatprep.subr.mxu0 0.0
    %2456 = vmatpush1.msra.mxu0 0.0
    %2457 = vmatprep.mubr.f32.mxu0 0.0
    %2458 = vmatmul.mubr.f32.gmra.mrb[0].mxu0 %v2391
    %v2459 = vpop.f32.mrb[0].mxu0
    %v2460 = vadd.f32 0.0, %v2459
    %v2461 = vpop.f32.mrb[0].mxu0
    %2462 = vdwg.mxu0
    %v2471 = vcombine.low %v2310, %v2311
    %v2472 = vcombine.low %v2312, %v2313
    %v2473 = vcombine.low %v2314, %v2315
    %v2474 = vcombine.low %v2316, %v2317
    %v2476 = vunpack.c.l.s4 1966171168
    %v2477 = vunpack.c.0.s8 %v2476
    %v2478 = vlaneseq
    %v2479 = vshrl.u32 %v2478, 7
    %v2480 = vsub.s32 %v2477, %v2479
    %v2481 = vrot.slane %v2471, %v2480
    %v2483 = vunpack.c.l.s4 1966171168
    %v2484 = vunpack.c.0.s8 %v2483
    %v2485 = vlaneseq
    %v2486 = vshrl.u32 %v2485, 7
    %v2487 = vsub.s32 %v2484, %v2486
    %v2488 = vrot.slane %v2472, %v2487
    %v2490 = vunpack.c.l.s4 1966171168
    %v2491 = vunpack.c.0.s8 %v2490
    %v2492 = vlaneseq
    %v2493 = vshrl.u32 %v2492, 7
    %v2494 = vsub.s32 %v2491, %v2493
    %v2495 = vrot.slane %v2473, %v2494
    %v2497 = vunpack.c.l.s4 1966171168
    %v2498 = vunpack.c.0.s8 %v2497
    %v2499 = vlaneseq
    %v2500 = vshrl.u32 %v2499, 7
    %v2501 = vsub.s32 %v2498, %v2500
    %v2502 = vrot.slane %v2474, %v2501
    %v2503 = vcombine.low %v2481, %v2488
    %v2504 = vcombine.low %v2495, %v2502
    %v2506 = vunpack.c.l.s4 1966171168
    %v2507 = vunpack.c.0.s8 %v2506
    %v2508 = vlaneseq
    %v2509 = vshrl.u32 %v2508, 7
    %v2510 = vsub.s32 %v2507, %v2509
    %v2511 = vrot.slane %v2503, %v2510
    %v2513 = vunpack.c.l.s4 1966171168
    %v2514 = vunpack.c.0.s8 %v2513
    %v2515 = vlaneseq
    %v2516 = vshrl.u32 %v2515, 7
    %v2517 = vsub.s32 %v2514, %v2516
    %v2518 = vrot.slane %v2504, %v2517
    %v2519 = vcombine.low %v2511, %v2518
    %v2520 = vsel %vm783, %v2519, 0
    %2522 = vmatprep.subr.mxu0 0.0
    %2523 = vmatpush1.msra.mxu0 %v780
    %2524 = vmatprep.subr.mxu0 0.0
    %2525 = vmatpush1.msra.mxu0 0.0
    %2526 = vmatprep.subr.mxu0 0.0
    %2527 = vmatpush1.msra.mxu0 0.0
    %2528 = vmatprep.subr.mxu0 0.0
    %2529 = vmatpush1.msra.mxu0 0.0
    %2530 = vmatprep.subr.mxu0 0.0
    %2531 = vmatpush1.msra.mxu0 0.0
    %2532 = vmatprep.subr.mxu0 0.0
    %2533 = vmatpush1.msra.mxu0 0.0
    %2534 = vmatprep.subr.mxu0 0.0
    %2535 = vmatpush1.msra.mxu0 0.0
    %2536 = vmatprep.subr.mxu0 0.0
    %2537 = vmatpush1.msra.mxu0 0.0
    %2538 = vmatprep.subr.mxu0 0.0
    %2539 = vmatpush1.msra.mxu0 0.0
    %2540 = vmatprep.subr.mxu0 0.0
    %2541 = vmatpush1.msra.mxu0 0.0
    %2542 = vmatprep.subr.mxu0 0.0
    %2543 = vmatpush1.msra.mxu0 0.0
    %2544 = vmatprep.subr.mxu0 0.0
    %2545 = vmatpush1.msra.mxu0 0.0
    %2546 = vmatprep.subr.mxu0 0.0
    %2547 = vmatpush1.msra.mxu0 0.0
    %2548 = vmatprep.subr.mxu0 0.0
    %2549 = vmatpush1.msra.mxu0 0.0
    %2550 = vmatprep.subr.mxu0 0.0
    %2551 = vmatpush1.msra.mxu0 0.0
    %2552 = vmatprep.subr.mxu0 0.0
    %2553 = vmatpush1.msra.mxu0 0.0
    %2554 = vmatprep.subr.mxu0 0.0
    %2555 = vmatpush1.msra.mxu0 0.0
    %2556 = vmatprep.subr.mxu0 0.0
    %2557 = vmatpush1.msra.mxu0 0.0
    %2558 = vmatprep.subr.mxu0 0.0
    %2559 = vmatpush1.msra.mxu0 0.0
    %2560 = vmatprep.subr.mxu0 0.0
    %2561 = vmatpush1.msra.mxu0 0.0
    %2562 = vmatprep.subr.mxu0 0.0
    %2563 = vmatpush1.msra.mxu0 0.0
    %2564 = vmatprep.subr.mxu0 0.0
    %2565 = vmatpush1.msra.mxu0 0.0
    %2566 = vmatprep.subr.mxu0 0.0
    %2567 = vmatpush1.msra.mxu0 0.0
    %2568 = vmatprep.subr.mxu0 0.0
    %2569 = vmatpush1.msra.mxu0 0.0
    %2570 = vmatprep.subr.mxu0 0.0
    %2571 = vmatpush1.msra.mxu0 0.0
    %2572 = vmatprep.subr.mxu0 0.0
    %2573 = vmatpush1.msra.mxu0 0.0
    %2574 = vmatprep.subr.mxu0 0.0
    %2575 = vmatpush1.msra.mxu0 0.0
    %2576 = vmatprep.subr.mxu0 0.0
    %2577 = vmatpush1.msra.mxu0 0.0
    %2578 = vmatprep.subr.mxu0 0.0
    %2579 = vmatpush1.msra.mxu0 0.0
    %2580 = vmatprep.subr.mxu0 0.0
    %2581 = vmatpush1.msra.mxu0 0.0
    %2582 = vmatprep.subr.mxu0 0.0
    %2583 = vmatpush1.msra.mxu0 0.0
    %2584 = vmatprep.subr.mxu0 0.0
    %2585 = vmatpush1.msra.mxu0 0.0
    %2586 = vmatprep.mubr.f32.mxu0 0.0
    %2587 = vmatmul.mubr.f32.gmra.mrb[0].mxu0 %v2520
    %v2588 = vpop.f32.mrb[0].mxu0
    %v2589 = vadd.f32 0.0, %v2588
    %v2590 = vpop.f32.mrb[0].mxu0
    %2591 = vdwg.mxu0
    %v2600 = vcombine.low %v2318, %v2319
    %v2601 = vcombine.low %v2320, %v2321
    %v2602 = vcombine.low %v2322, %v2323
    %v2603 = vcombine.low %v2324, %v2325
    %v2605 = vunpack.c.l.s4 1966171168
    %v2606 = vunpack.c.0.s8 %v2605
    %v2607 = vlaneseq
    %v2608 = vshrl.u32 %v2607, 7
    %v2609 = vsub.s32 %v2606, %v2608
    %v2610 = vrot.slane %v2600, %v2609
    %v2612 = vunpack.c.l.s4 1966171168
    %v2613 = vunpack.c.0.s8 %v2612
    %v2614 = vlaneseq
    %v2615 = vshrl.u32 %v2614, 7
    %v2616 = vsub.s32 %v2613, %v2615
    %v2617 = vrot.slane %v2601, %v2616
    %v2619 = vunpack.c.l.s4 1966171168
    %v2620 = vunpack.c.0.s8 %v2619
    %v2621 = vlaneseq
    %v2622 = vshrl.u32 %v2621, 7
    %v2623 = vsub.s32 %v2620, %v2622
    %v2624 = vrot.slane %v2602, %v2623
    %v2626 = vunpack.c.l.s4 1966171168
    %v2627 = vunpack.c.0.s8 %v2626
    %v2628 = vlaneseq
    %v2629 = vshrl.u32 %v2628, 7
    %v2630 = vsub.s32 %v2627, %v2629
    %v2631 = vrot.slane %v2603, %v2630
    %v2632 = vcombine.low %v2610, %v2617
    %v2633 = vcombine.low %v2624, %v2631
    %v2635 = vunpack.c.l.s4 1966171168
    %v2636 = vunpack.c.0.s8 %v2635
    %v2637 = vlaneseq
    %v2638 = vshrl.u32 %v2637, 7
    %v2639 = vsub.s32 %v2636, %v2638
    %v2640 = vrot.slane %v2632, %v2639
    %v2642 = vunpack.c.l.s4 1966171168
    %v2643 = vunpack.c.0.s8 %v2642
    %v2644 = vlaneseq
    %v2645 = vshrl.u32 %v2644, 7
    %v2646 = vsub.s32 %v2643, %v2645
    %v2647 = vrot.slane %v2633, %v2646
    %v2648 = vcombine.low %v2640, %v2647
    %v2649 = vsel %vm783, %v2648, 0
    %2651 = vmatprep.subr.mxu0 0.0
    %2652 = vmatpush1.msra.mxu0 %v781
    %2653 = vmatprep.subr.mxu0 0.0
    %2654 = vmatpush1.msra.mxu0 0.0
    %2655 = vmatprep.subr.mxu0 0.0
    %2656 = vmatpush1.msra.mxu0 0.0
    %2657 = vmatprep.subr.mxu0 0.0
    %2658 = vmatpush1.msra.mxu0 0.0
    %2659 = vmatprep.subr.mxu0 0.0
    %2660 = vmatpush1.msra.mxu0 0.0
    %2661 = vmatprep.subr.mxu0 0.0
    %2662 = vmatpush1.msra.mxu0 0.0
    %2663 = vmatprep.subr.mxu0 0.0
    %2664 = vmatpush1.msra.mxu0 0.0
    %2665 = vmatprep.subr.mxu0 0.0
    %2666 = vmatpush1.msra.mxu0 0.0
    %2667 = vmatprep.subr.mxu0 0.0
    %2668 = vmatpush1.msra.mxu0 0.0
    %2669 = vmatprep.subr.mxu0 0.0
    %2670 = vmatpush1.msra.mxu0 0.0
    %2671 = vmatprep.subr.mxu0 0.0
    %2672 = vmatpush1.msra.mxu0 0.0
    %2673 = vmatprep.subr.mxu0 0.0
    %2674 = vmatpush1.msra.mxu0 0.0
    %2675 = vmatprep.subr.mxu0 0.0
    %2676 = vmatpush1.msra.mxu0 0.0
    %2677 = vmatprep.subr.mxu0 0.0
    %2678 = vmatpush1.msra.mxu0 0.0
    %2679 = vmatprep.subr.mxu0 0.0
    %2680 = vmatpush1.msra.mxu0 0.0
    %2681 = vmatprep.subr.mxu0 0.0
    %2682 = vmatpush1.msra.mxu0 0.0
    %2683 = vmatprep.subr.mxu0 0.0
    %2684 = vmatpush1.msra.mxu0 0.0
    %2685 = vmatprep.subr.mxu0 0.0
    %2686 = vmatpush1.msra.mxu0 0.0
    %2687 = vmatprep.subr.mxu0 0.0
    %2688 = vmatpush1.msra.mxu0 0.0
    %2689 = vmatprep.subr.mxu0 0.0
    %2690 = vmatpush1.msra.mxu0 0.0
    %2691 = vmatprep.subr.mxu0 0.0
    %2692 = vmatpush1.msra.mxu0 0.0
    %2693 = vmatprep.subr.mxu0 0.0
    %2694 = vmatpush1.msra.mxu0 0.0
    %2695 = vmatprep.subr.mxu0 0.0
    %2696 = vmatpush1.msra.mxu0 0.0
    %2697 = vmatprep.subr.mxu0 0.0
    %2698 = vmatpush1.msra.mxu0 0.0
    %2699 = vmatprep.subr.mxu0 0.0
    %2700 = vmatpush1.msra.mxu0 0.0
    %2701 = vmatprep.subr.mxu0 0.0
    %2702 = vmatpush1.msra.mxu0 0.0
    %2703 = vmatprep.subr.mxu0 0.0
    %2704 = vmatpush1.msra.mxu0 0.0
    %2705 = vmatprep.subr.mxu0 0.0
    %2706 = vmatpush1.msra.mxu0 0.0
    %2707 = vmatprep.subr.mxu0 0.0
    %2708 = vmatpush1.msra.mxu0 0.0
    %2709 = vmatprep.subr.mxu0 0.0
    %2710 = vmatpush1.msra.mxu0 0.0
    %2711 = vmatprep.subr.mxu0 0.0
    %2712 = vmatpush1.msra.mxu0 0.0
    %2713 = vmatprep.subr.mxu0 0.0
    %2714 = vmatpush1.msra.mxu0 0.0
    %2715 = vmatprep.mubr.f32.mxu0 0.0
    %2716 = vmatmul.mubr.f32.gmra.mrb[0].mxu0 %v2649
    %v2717 = vpop.f32.mrb[0].mxu0
    %v2718 = vadd.f32 0.0, %v2717
    %v2719 = vpop.f32.mrb[0].mxu0
    %2720 = vdwg.mxu0
    %v2729 = vcombine.low %v2326, %v2327
    %v2730 = vcombine.low %v2328, %v2329
    %v2731 = vcombine.low %v2330, %v2331
    %v2732 = vcombine.low %v2332, %v2333
    %v2734 = vunpack.c.l.s4 1966171168
    %v2735 = vunpack.c.0.s8 %v2734
    %v2736 = vlaneseq
    %v2737 = vshrl.u32 %v2736, 7
    %v2738 = vsub.s32 %v2735, %v2737
    %v2739 = vrot.slane %v2729, %v2738
    %v2741 = vunpack.c.l.s4 1966171168
    %v2742 = vunpack.c.0.s8 %v2741
    %v2743 = vlaneseq
    %v2744 = vshrl.u32 %v2743, 7
    %v2745 = vsub.s32 %v2742, %v2744
    %v2746 = vrot.slane %v2730, %v2745
    %v2748 = vunpack.c.l.s4 1966171168
    %v2749 = vunpack.c.0.s8 %v2748
    %v2750 = vlaneseq
    %v2751 = vshrl.u32 %v2750, 7
    %v2752 = vsub.s32 %v2749, %v2751
    %v2753 = vrot.slane %v2731, %v2752
    %v2755 = vunpack.c.l.s4 1966171168
    %v2756 = vunpack.c.0.s8 %v2755
    %v2757 = vlaneseq
    %v2758 = vshrl.u32 %v2757, 7
    %v2759 = vsub.s32 %v2756, %v2758
    %v2760 = vrot.slane %v2732, %v2759
    %v2761 = vcombine.low %v2739, %v2746
    %v2762 = vcombine.low %v2753, %v2760
    %v2764 = vunpack.c.l.s4 1966171168
    %v2765 = vunpack.c.0.s8 %v2764
    %v2766 = vlaneseq
    %v2767 = vshrl.u32 %v2766, 7
    %v2768 = vsub.s32 %v2765, %v2767
    %v2769 = vrot.slane %v2761, %v2768
    %v2771 = vunpack.c.l.s4 1966171168
    %v2772 = vunpack.c.0.s8 %v2771
    %v2773 = vlaneseq
    %v2774 = vshrl.u32 %v2773, 7
    %v2775 = vsub.s32 %v2772, %v2774
    %v2776 = vrot.slane %v2762, %v2775
    %v2777 = vcombine.low %v2769, %v2776
    %v2778 = vsel %vm783, %v2777, 0
    %2780 = vmatprep.subr.mxu0 0.0
    %2781 = vmatpush1.msra.mxu0 %v782
    %2782 = vmatprep.subr.mxu0 0.0
    %2783 = vmatpush1.msra.mxu0 0.0
    %2784 = vmatprep.subr.mxu0 0.0
    %2785 = vmatpush1.msra.mxu0 0.0
    %2786 = vmatprep.subr.mxu0 0.0
    %2787 = vmatpush1.msra.mxu0 0.0
    %2788 = vmatprep.subr.mxu0 0.0
    %2789 = vmatpush1.msra.mxu0 0.0
    %2790 = vmatprep.subr.mxu0 0.0
    %2791 = vmatpush1.msra.mxu0 0.0
    %2792 = vmatprep.subr.mxu0 0.0
    %2793 = vmatpush1.msra.mxu0 0.0
    %2794 = vmatprep.subr.mxu0 0.0
    %2795 = vmatpush1.msra.mxu0 0.0
    %2796 = vmatprep.subr.mxu0 0.0
    %2797 = vmatpush1.msra.mxu0 0.0
    %2798 = vmatprep.subr.mxu0 0.0
    %2799 = vmatpush1.msra.mxu0 0.0
    %2800 = vmatprep.subr.mxu0 0.0
    %2801 = vmatpush1.msra.mxu0 0.0
    %2802 = vmatprep.subr.mxu0 0.0
    %2803 = vmatpush1.msra.mxu0 0.0
    %2804 = vmatprep.subr.mxu0 0.0
    %2805 = vmatpush1.msra.mxu0 0.0
    %2806 = vmatprep.subr.mxu0 0.0
    %2807 = vmatpush1.msra.mxu0 0.0
    %2808 = vmatprep.subr.mxu0 0.0
    %2809 = vmatpush1.msra.mxu0 0.0
    %2810 = vmatprep.subr.mxu0 0.0
    %2811 = vmatpush1.msra.mxu0 0.0
    %2812 = vmatprep.subr.mxu0 0.0
    %2813 = vmatpush1.msra.mxu0 0.0
    %2814 = vmatprep.subr.mxu0 0.0
    %2815 = vmatpush1.msra.mxu0 0.0
    %2816 = vmatprep.subr.mxu0 0.0
    %2817 = vmatpush1.msra.mxu0 0.0
    %2818 = vmatprep.subr.mxu0 0.0
    %2819 = vmatpush1.msra.mxu0 0.0
    %2820 = vmatprep.subr.mxu0 0.0
    %2821 = vmatpush1.msra.mxu0 0.0
    %2822 = vmatprep.subr.mxu0 0.0
    %2823 = vmatpush1.msra.mxu0 0.0
    %2824 = vmatprep.subr.mxu0 0.0
    %2825 = vmatpush1.msra.mxu0 0.0
    %2826 = vmatprep.subr.mxu0 0.0
    %2827 = vmatpush1.msra.mxu0 0.0
    %2828 = vmatprep.subr.mxu0 0.0
    %2829 = vmatpush1.msra.mxu0 0.0
    %2830 = vmatprep.subr.mxu0 0.0
    %2831 = vmatpush1.msra.mxu0 0.0
    %2832 = vmatprep.subr.mxu0 0.0
    %2833 = vmatpush1.msra.mxu0 0.0
    %2834 = vmatprep.subr.mxu0 0.0
    %2835 = vmatpush1.msra.mxu0 0.0
    %2836 = vmatprep.subr.mxu0 0.0
    %2837 = vmatpush1.msra.mxu0 0.0
    %2838 = vmatprep.subr.mxu0 0.0
    %2839 = vmatpush1.msra.mxu0 0.0
    %2840 = vmatprep.subr.mxu0 0.0
    %2841 = vmatpush1.msra.mxu0 0.0
    %2842 = vmatprep.subr.mxu0 0.0
    %2843 = vmatpush1.msra.mxu0 0.0
    %2844 = vmatprep.mubr.f32.mxu0 0.0
    %2845 = vmatmul.mubr.f32.gmra.mrb[0].mxu0 %v2778
    %v2846 = vpop.f32.mrb[0].mxu0
    %v2847 = vadd.f32 0.0, %v2846
    %v2848 = vpop.f32.mrb[0].mxu0
    %2849 = vdwg.mxu0
    %v2850 = vcombine.low %v2460, %v2718
    %v2851 = vcombine.high %v2460, %v2718
    %v2853 = vunpack.c.l.s4 1983009808
    %v2854 = vunpack.c.0.s8 %v2853
    %v2855 = vlaneseq
    %v2856 = vshrl.u32 %v2855, 7
    %v2857 = vsub.s32 %v2854, %v2856
    %v2858 = vrot.slane %v2850, %v2857
    %v2860 = vunpack.c.l.s4 1983009808
    %v2861 = vunpack.c.0.s8 %v2860
    %v2862 = vlaneseq
    %v2863 = vshrl.u32 %v2862, 7
    %v2864 = vsub.s32 %v2861, %v2863
    %v2865 = vrot.slane %v2851, %v2864
    %v2866 = vcombine.low %v2589, %v2847
    %v2867 = vcombine.high %v2589, %v2847
    %v2869 = vunpack.c.l.s4 1983009808
    %v2870 = vunpack.c.0.s8 %v2869
    %v2871 = vlaneseq
    %v2872 = vshrl.u32 %v2871, 7
    %v2873 = vsub.s32 %v2870, %v2872
    %v2874 = vrot.slane %v2866, %v2873
    %v2876 = vunpack.c.l.s4 1983009808
    %v2877 = vunpack.c.0.s8 %v2876
    %v2878 = vlaneseq
    %v2879 = vshrl.u32 %v2878, 7
    %v2880 = vsub.s32 %v2877, %v2879
    %v2881 = vrot.slane %v2867, %v2880
    %v2882 = vcombine.low %v2858, %v2874
    %v2883 = vcombine.high %v2858, %v2874
    %v2885 = vunpack.c.l.s4 1934713408
    %v2886 = vunpack.c.0.s8 %v2885
    %v2887 = vlaneseq
    %v2888 = vshrl.u32 %v2887, 7
    %v2889 = vsub.s32 %v2886, %v2888
    %v2890 = vrot.slane %v2882, %v2889
    %v2892 = vunpack.c.l.s4 1934713408
    %v2893 = vunpack.c.0.s8 %v2892
    %v2894 = vlaneseq
    %v2895 = vshrl.u32 %v2894, 7
    %v2896 = vsub.s32 %v2893, %v2895
    %v2897 = vrot.slane %v2883, %v2896
    %v2898 = vcombine.low %v2865, %v2881
    %v2899 = vcombine.high %v2865, %v2881
    %v2901 = vunpack.c.l.s4 1934713408
    %v2902 = vunpack.c.0.s8 %v2901
    %v2903 = vlaneseq
    %v2904 = vshrl.u32 %v2903, 7
    %v2905 = vsub.s32 %v2902, %v2904
    %v2906 = vrot.slane %v2898, %v2905
    %v2908 = vunpack.c.l.s4 1934713408
    %v2909 = vunpack.c.0.s8 %v2908
    %v2910 = vlaneseq
    %v2911 = vshrl.u32 %v2910, 7
    %v2912 = vsub.s32 %v2909, %v2911
    %v2913 = vrot.slane %v2899, %v2912
    %v2914 = vcombine.high %v2890, 0.0
    %v2915 = vcombine.high %v2897, 0.0
    %v2916 = vcombine.high %v2906, 0.0
    %v2917 = vcombine.high %v2913, 0.0
    %v2918 = vcombine.low %v2890, %v2897
    %v2920 = vunpack.c.l.s4 1983009808
    %v2921 = vunpack.c.0.s8 %v2920
    %v2922 = vlaneseq
    %v2923 = vshrl.u32 %v2922, 7
    %v2924 = vsub.s32 %v2921, %v2923
    %v2925 = vrot.slane %v2918, %v2924
    %v2926 = vcombine.low %v2914, %v2915
    %v2928 = vunpack.c.l.s4 1983009808
    %v2929 = vunpack.c.0.s8 %v2928
    %v2930 = vlaneseq
    %v2931 = vshrl.u32 %v2930, 7
    %v2932 = vsub.s32 %v2929, %v2931
    %v2933 = vrot.slane %v2926, %v2932
    %v2934 = vcombine.low %v2906, %v2913
    %v2936 = vunpack.c.l.s4 1983009808
    %v2937 = vunpack.c.0.s8 %v2936
    %v2938 = vlaneseq
    %v2939 = vshrl.u32 %v2938, 7
    %v2940 = vsub.s32 %v2937, %v2939
    %v2941 = vrot.slane %v2934, %v2940
    %v2942 = vcombine.low %v2916, %v2917
    %v2944 = vunpack.c.l.s4 1983009808
    %v2945 = vunpack.c.0.s8 %v2944
    %v2946 = vlaneseq
    %v2947 = vshrl.u32 %v2946, 7
    %v2948 = vsub.s32 %v2945, %v2947
    %v2949 = vrot.slane %v2942, %v2948
    %v2950 = vcombine.low %v2925, %v2933
    %v2951 = vcombine.high %v2925, %v2933
    %v2953 = vunpack.c.l.s4 1934713408
    %v2954 = vunpack.c.0.s8 %v2953
    %v2955 = vlaneseq
    %v2956 = vshrl.u32 %v2955, 7
    %v2957 = vsub.s32 %v2954, %v2956
    %v2958 = vrot.slane %v2950, %v2957
    %v2960 = vunpack.c.l.s4 1934713408
    %v2961 = vunpack.c.0.s8 %v2960
    %v2962 = vlaneseq
    %v2963 = vshrl.u32 %v2962, 7
    %v2964 = vsub.s32 %v2961, %v2963
    %v2965 = vrot.slane %v2951, %v2964
    %v2966 = vcombine.low %v2941, %v2949
    %v2967 = vcombine.high %v2941, %v2949
    %v2969 = vunpack.c.l.s4 1934713408
    %v2970 = vunpack.c.0.s8 %v2969
    %v2971 = vlaneseq
    %v2972 = vshrl.u32 %v2971, 7
    %v2973 = vsub.s32 %v2970, %v2972
    %v2974 = vrot.slane %v2966, %v2973
    %v2976 = vunpack.c.l.s4 1934713408
    %v2977 = vunpack.c.0.s8 %v2976
    %v2978 = vlaneseq
    %v2979 = vshrl.u32 %v2978, 7
    %v2980 = vsub.s32 %v2977, %v2979
    %v2981 = vrot.slane %v2967, %v2980
    %v2982 = vcombine.low %v2958, %v2974
    %v2983 = vcombine.high %v2958, %v2974
    %v2984 = vcombine.low %v2965, %v2981
    %v2985 = vcombine.high %v2965, %v2981
    %2987 = vrot.lane.b32.xlu0 %v2983, 8
    %v2988 = vpop.permute.xlu0 %2987
    %2991 = vrot.lane.b32.xlu0 %v2984, 16
    %v2992 = vpop.permute.xlu0 %2991
    %2995 = vrot.lane.b32.xlu0 %v2985, 24
    %v2996 = vpop.permute.xlu0 %2995
    %v2998 = vsel %vm783, %v2982, %v2988
    %vm2999 = vcmask 130048
    %v3000 = vsel %vm2999, %v2998, %v2992
    %vm3001 = vcmask 195584
    %v3002 = vsel %vm3001, %v3000, %v2996
    %3004 = vrot.lane.b32.xlu0 %v168, 120
    %v3005 = vpop.permute.xlu0 %3004
    %3007 = vrot.lane.b32.xlu0 %v168, 112
    %v3008 = vpop.permute.xlu0 %3007
    %3010 = vrot.lane.b32.xlu0 %v168, 104
    %v3011 = vpop.permute.xlu0 %3010
    %v3013 = vcombine.low %v168, %v3008
    %v3014 = vcombine.high %v168, %v3008
    %v3016 = vunpack.c.l.s4 1983009808
    %v3017 = vunpack.c.0.s8 %v3016
    %v3018 = vlaneseq
    %v3019 = vshrl.u32 %v3018, 7
    %v3020 = vsub.s32 %v3017, %v3019
    %v3021 = vrot.slane %v3013, %v3020
    %v3023 = vunpack.c.l.s4 1983009808
    %v3024 = vunpack.c.0.s8 %v3023
    %v3025 = vlaneseq
    %v3026 = vshrl.u32 %v3025, 7
    %v3027 = vsub.s32 %v3024, %v3026
    %v3028 = vrot.slane %v3014, %v3027
    %v3029 = vcombine.low %v3005, %v3011
    %v3030 = vcombine.high %v3005, %v3011
    %v3032 = vunpack.c.l.s4 1983009808
    %v3033 = vunpack.c.0.s8 %v3032
    %v3034 = vlaneseq
    %v3035 = vshrl.u32 %v3034, 7
    %v3036 = vsub.s32 %v3033, %v3035
    %v3037 = vrot.slane %v3029, %v3036
    %v3039 = vunpack.c.l.s4 1983009808
    %v3040 = vunpack.c.0.s8 %v3039
    %v3041 = vlaneseq
    %v3042 = vshrl.u32 %v3041, 7
    %v3043 = vsub.s32 %v3040, %v3042
    %v3044 = vrot.slane %v3030, %v3043
    %v3045 = vcombine.low %v3021, %v3037
    %v3046 = vcombine.high %v3021, %v3037
    %v3048 = vunpack.c.l.s4 1934713408
    %v3049 = vunpack.c.0.s8 %v3048
    %v3050 = vlaneseq
    %v3051 = vshrl.u32 %v3050, 7
    %v3052 = vsub.s32 %v3049, %v3051
    %v3053 = vrot.slane %v3045, %v3052
    %v3055 = vunpack.c.l.s4 1934713408
    %v3056 = vunpack.c.0.s8 %v3055
    %v3057 = vlaneseq
    %v3058 = vshrl.u32 %v3057, 7
    %v3059 = vsub.s32 %v3056, %v3058
    %v3060 = vrot.slane %v3046, %v3059
    %v3061 = vcombine.low %v3028, %v3044
    %v3062 = vcombine.high %v3028, %v3044
    %v3064 = vunpack.c.l.s4 1934713408
    %v3065 = vunpack.c.0.s8 %v3064
    %v3066 = vlaneseq
    %v3067 = vshrl.u32 %v3066, 7
    %v3068 = vsub.s32 %v3065, %v3067
    %v3069 = vrot.slane %v3061, %v3068
    %v3071 = vunpack.c.l.s4 1934713408
    %v3072 = vunpack.c.0.s8 %v3071
    %v3073 = vlaneseq
    %v3074 = vshrl.u32 %v3073, 7
    %v3075 = vsub.s32 %v3072, %v3074
    %v3076 = vrot.slane %v3062, %v3075
    %v3077 = vcombine.high %v3053, 0.0
    %v3078 = vcombine.high %v3060, 0.0
    %v3079 = vcombine.high %v3069, 0.0
    %v3080 = vcombine.high %v3076, 0.0
    %v3081 = vcombine.low %v3053, %v3060
    %v3083 = vunpack.c.l.s4 1983009808
    %v3084 = vunpack.c.0.s8 %v3083
    %v3085 = vlaneseq
    %v3086 = vshrl.u32 %v3085, 7
    %v3087 = vsub.s32 %v3084, %v3086
    %v3088 = vrot.slane %v3081, %v3087
    %v3089 = vcombine.low %v3077, %v3078
    %v3091 = vunpack.c.l.s4 1983009808
    %v3092 = vunpack.c.0.s8 %v3091
    %v3093 = vlaneseq
    %v3094 = vshrl.u32 %v3093, 7
    %v3095 = vsub.s32 %v3092, %v3094
    %v3096 = vrot.slane %v3089, %v3095
    %v3097 = vcombine.low %v3069, %v3076
    %v3099 = vunpack.c.l.s4 1983009808
    %v3100 = vunpack.c.0.s8 %v3099
    %v3101 = vlaneseq
    %v3102 = vshrl.u32 %v3101, 7
    %v3103 = vsub.s32 %v3100, %v3102
    %v3104 = vrot.slane %v3097, %v3103
    %v3105 = vcombine.low %v3079, %v3080
    %v3107 = vunpack.c.l.s4 1983009808
    %v3108 = vunpack.c.0.s8 %v3107
    %v3109 = vlaneseq
    %v3110 = vshrl.u32 %v3109, 7
    %v3111 = vsub.s32 %v3108, %v3110
    %v3112 = vrot.slane %v3105, %v3111
    %v3113 = vcombine.low %v3088, %v3096
    %v3114 = vcombine.high %v3088, %v3096
    %v3116 = vunpack.c.l.s4 1934713408
    %v3117 = vunpack.c.0.s8 %v3116
    %v3118 = vlaneseq
    %v3119 = vshrl.u32 %v3118, 7
    %v3120 = vsub.s32 %v3117, %v3119
    %v3121 = vrot.slane %v3113, %v3120
    %v3123 = vunpack.c.l.s4 1934713408
    %v3124 = vunpack.c.0.s8 %v3123
    %v3125 = vlaneseq
    %v3126 = vshrl.u32 %v3125, 7
    %v3127 = vsub.s32 %v3124, %v3126
    %v3128 = vrot.slane %v3114, %v3127
    %v3129 = vcombine.low %v3104, %v3112
    %v3130 = vcombine.high %v3104, %v3112
    %v3132 = vunpack.c.l.s4 1934713408
    %v3133 = vunpack.c.0.s8 %v3132
    %v3134 = vlaneseq
    %v3135 = vshrl.u32 %v3134, 7
    %v3136 = vsub.s32 %v3133, %v3135
    %v3137 = vrot.slane %v3129, %v3136
    %v3139 = vunpack.c.l.s4 1934713408
    %v3140 = vunpack.c.0.s8 %v3139
    %v3141 = vlaneseq
    %v3142 = vshrl.u32 %v3141, 7
    %v3143 = vsub.s32 %v3140, %v3142
    %v3144 = vrot.slane %v3130, %v3143
    %v3145 = vcombine.low %v3121, %v3137
    %v3146 = vcombine.high %v3121, %v3137
    %v3147 = vcombine.low %v3128, %v3144
    %v3148 = vcombine.high %v3128, %v3144
    %3150 = vrot.lane.b32.xlu0 %v253, 120
    %v3151 = vpop.permute.xlu0 %3150
    %3153 = vrot.lane.b32.xlu0 %v253, 112
    %v3154 = vpop.permute.xlu0 %3153
    %3156 = vrot.lane.b32.xlu0 %v253, 104
    %v3157 = vpop.permute.xlu0 %3156
    %v3159 = vcombine.low %v253, %v3154
    %v3160 = vcombine.high %v253, %v3154
    %v3162 = vunpack.c.l.s4 1983009808
    %v3163 = vunpack.c.0.s8 %v3162
    %v3164 = vlaneseq
    %v3165 = vshrl.u32 %v3164, 7
    %v3166 = vsub.s32 %v3163, %v3165
    %v3167 = vrot.slane %v3159, %v3166
    %v3169 = vunpack.c.l.s4 1983009808
    %v3170 = vunpack.c.0.s8 %v3169
    %v3171 = vlaneseq
    %v3172 = vshrl.u32 %v3171, 7
    %v3173 = vsub.s32 %v3170, %v3172
    %v3174 = vrot.slane %v3160, %v3173
    %v3175 = vcombine.low %v3151, %v3157
    %v3176 = vcombine.high %v3151, %v3157
    %v3178 = vunpack.c.l.s4 1983009808
    %v3179 = vunpack.c.0.s8 %v3178
    %v3180 = vlaneseq
    %v3181 = vshrl.u32 %v3180, 7
    %v3182 = vsub.s32 %v3179, %v3181
    %v3183 = vrot.slane %v3175, %v3182
    %v3185 = vunpack.c.l.s4 1983009808
    %v3186 = vunpack.c.0.s8 %v3185
    %v3187 = vlaneseq
    %v3188 = vshrl.u32 %v3187, 7
    %v3189 = vsub.s32 %v3186, %v3188
    %v3190 = vrot.slane %v3176, %v3189
    %v3191 = vcombine.low %v3167, %v3183
    %v3192 = vcombine.high %v3167, %v3183
    %v3194 = vunpack.c.l.s4 1934713408
    %v3195 = vunpack.c.0.s8 %v3194
    %v3196 = vlaneseq
    %v3197 = vshrl.u32 %v3196, 7
    %v3198 = vsub.s32 %v3195, %v3197
    %v3199 = vrot.slane %v3191, %v3198
    %v3201 = vunpack.c.l.s4 1934713408
    %v3202 = vunpack.c.0.s8 %v3201
    %v3203 = vlaneseq
    %v3204 = vshrl.u32 %v3203, 7
    %v3205 = vsub.s32 %v3202, %v3204
    %v3206 = vrot.slane %v3192, %v3205
    %v3207 = vcombine.low %v3174, %v3190
    %v3208 = vcombine.high %v3174, %v3190
    %v3210 = vunpack.c.l.s4 1934713408
    %v3211 = vunpack.c.0.s8 %v3210
    %v3212 = vlaneseq
    %v3213 = vshrl.u32 %v3212, 7
    %v3214 = vsub.s32 %v3211, %v3213
    %v3215 = vrot.slane %v3207, %v3214
    %v3217 = vunpack.c.l.s4 1934713408
    %v3218 = vunpack.c.0.s8 %v3217
    %v3219 = vlaneseq
    %v3220 = vshrl.u32 %v3219, 7
    %v3221 = vsub.s32 %v3218, %v3220
    %v3222 = vrot.slane %v3208, %v3221
    %v3223 = vcombine.high %v3199, 0.0
    %v3224 = vcombine.high %v3206, 0.0
    %v3225 = vcombine.high %v3215, 0.0
    %v3226 = vcombine.high %v3222, 0.0
    %v3227 = vcombine.low %v3199, %v3206
    %v3229 = vunpack.c.l.s4 1983009808
    %v3230 = vunpack.c.0.s8 %v3229
    %v3231 = vlaneseq
    %v3232 = vshrl.u32 %v3231, 7
    %v3233 = vsub.s32 %v3230, %v3232
    %v3234 = vrot.slane %v3227, %v3233
    %v3235 = vcombine.low %v3223, %v3224
    %v3237 = vunpack.c.l.s4 1983009808
    %v3238 = vunpack.c.0.s8 %v3237
    %v3239 = vlaneseq
    %v3240 = vshrl.u32 %v3239, 7
    %v3241 = vsub.s32 %v3238, %v3240
    %v3242 = vrot.slane %v3235, %v3241
    %v3243 = vcombine.low %v3215, %v3222
    %v3245 = vunpack.c.l.s4 1983009808
    %v3246 = vunpack.c.0.s8 %v3245
    %v3247 = vlaneseq
    %v3248 = vshrl.u32 %v3247, 7
    %v3249 = vsub.s32 %v3246, %v3248
    %v3250 = vrot.slane %v3243, %v3249
    %v3251 = vcombine.low %v3225, %v3226
    %v3253 = vunpack.c.l.s4 1983009808
    %v3254 = vunpack.c.0.s8 %v3253
    %v3255 = vlaneseq
    %v3256 = vshrl.u32 %v3255, 7
    %v3257 = vsub.s32 %v3254, %v3256
    %v3258 = vrot.slane %v3251, %v3257
    %v3259 = vcombine.low %v3234, %v3242
    %v3260 = vcombine.high %v3234, %v3242
    %v3262 = vunpack.c.l.s4 1934713408
    %v3263 = vunpack.c.0.s8 %v3262
    %v3264 = vlaneseq
    %v3265 = vshrl.u32 %v3264, 7
    %v3266 = vsub.s32 %v3263, %v3265
    %v3267 = vrot.slane %v3259, %v3266
    %v3269 = vunpack.c.l.s4 1934713408
    %v3270 = vunpack.c.0.s8 %v3269
    %v3271 = vlaneseq
    %v3272 = vshrl.u32 %v3271, 7
    %v3273 = vsub.s32 %v3270, %v3272
    %v3274 = vrot.slane %v3260, %v3273
    %v3275 = vcombine.low %v3250, %v3258
    %v3276 = vcombine.high %v3250, %v3258
    %v3278 = vunpack.c.l.s4 1934713408
    %v3279 = vunpack.c.0.s8 %v3278
    %v3280 = vlaneseq
    %v3281 = vshrl.u32 %v3280, 7
    %v3282 = vsub.s32 %v3279, %v3281
    %v3283 = vrot.slane %v3275, %v3282
    %v3285 = vunpack.c.l.s4 1934713408
    %v3286 = vunpack.c.0.s8 %v3285
    %v3287 = vlaneseq
    %v3288 = vshrl.u32 %v3287, 7
    %v3289 = vsub.s32 %v3286, %v3288
    %v3290 = vrot.slane %v3276, %v3289
    %v3291 = vcombine.low %v3267, %v3283
    %v3292 = vcombine.high %v3267, %v3283
    %v3293 = vcombine.low %v3274, %v3290
    %v3294 = vcombine.high %v3274, %v3290
    %3296 = vrot.lane.b32.xlu0 %v338, 120
    %v3297 = vpop.permute.xlu0 %3296
    %3299 = vrot.lane.b32.xlu0 %v338, 112
    %v3300 = vpop.permute.xlu0 %3299
    %3302 = vrot.lane.b32.xlu0 %v338, 104
    %v3303 = vpop.permute.xlu0 %3302
    %v3305 = vcombine.low %v338, %v3300
    %v3306 = vcombine.high %v338, %v3300
    %v3308 = vunpack.c.l.s4 1983009808
    %v3309 = vunpack.c.0.s8 %v3308
    %v3310 = vlaneseq
    %v3311 = vshrl.u32 %v3310, 7
    %v3312 = vsub.s32 %v3309, %v3311
    %v3313 = vrot.slane %v3305, %v3312
    %v3315 = vunpack.c.l.s4 1983009808
    %v3316 = vunpack.c.0.s8 %v3315
    %v3317 = vlaneseq
    %v3318 = vshrl.u32 %v3317, 7
    %v3319 = vsub.s32 %v3316, %v3318
    %v3320 = vrot.slane %v3306, %v3319
    %v3321 = vcombine.low %v3297, %v3303
    %v3322 = vcombine.high %v3297, %v3303
    %v3324 = vunpack.c.l.s4 1983009808
    %v3325 = vunpack.c.0.s8 %v3324
    %v3326 = vlaneseq
    %v3327 = vshrl.u32 %v3326, 7
    %v3328 = vsub.s32 %v3325, %v3327
    %v3329 = vrot.slane %v3321, %v3328
    %v3331 = vunpack.c.l.s4 1983009808
    %v3332 = vunpack.c.0.s8 %v3331
    %v3333 = vlaneseq
    %v3334 = vshrl.u32 %v3333, 7
    %v3335 = vsub.s32 %v3332, %v3334
    %v3336 = vrot.slane %v3322, %v3335
    %v3337 = vcombine.low %v3313, %v3329
    %v3338 = vcombine.high %v3313, %v3329
    %v3340 = vunpack.c.l.s4 1934713408
    %v3341 = vunpack.c.0.s8 %v3340
    %v3342 = vlaneseq
    %v3343 = vshrl.u32 %v3342, 7
    %v3344 = vsub.s32 %v3341, %v3343
    %v3345 = vrot.slane %v3337, %v3344
    %v3347 = vunpack.c.l.s4 1934713408
    %v3348 = vunpack.c.0.s8 %v3347
    %v3349 = vlaneseq
    %v3350 = vshrl.u32 %v3349, 7
    %v3351 = vsub.s32 %v3348, %v3350
    %v3352 = vrot.slane %v3338, %v3351
    %v3353 = vcombine.low %v3320, %v3336
    %v3354 = vcombine.high %v3320, %v3336
    %v3356 = vunpack.c.l.s4 1934713408
    %v3357 = vunpack.c.0.s8 %v3356
    %v3358 = vlaneseq
    %v3359 = vshrl.u32 %v3358, 7
    %v3360 = vsub.s32 %v3357, %v3359
    %v3361 = vrot.slane %v3353, %v3360
    %v3363 = vunpack.c.l.s4 1934713408
    %v3364 = vunpack.c.0.s8 %v3363
    %v3365 = vlaneseq
    %v3366 = vshrl.u32 %v3365, 7
    %v3367 = vsub.s32 %v3364, %v3366
    %v3368 = vrot.slane %v3354, %v3367
    %v3369 = vcombine.high %v3345, 0.0
    %v3370 = vcombine.high %v3352, 0.0
    %v3371 = vcombine.high %v3361, 0.0
    %v3372 = vcombine.high %v3368, 0.0
    %v3373 = vcombine.low %v3345, %v3352
    %v3375 = vunpack.c.l.s4 1983009808
    %v3376 = vunpack.c.0.s8 %v3375
    %v3377 = vlaneseq
    %v3378 = vshrl.u32 %v3377, 7
    %v3379 = vsub.s32 %v3376, %v3378
    %v3380 = vrot.slane %v3373, %v3379
    %v3381 = vcombine.low %v3369, %v3370
    %v3383 = vunpack.c.l.s4 1983009808
    %v3384 = vunpack.c.0.s8 %v3383
    %v3385 = vlaneseq
    %v3386 = vshrl.u32 %v3385, 7
    %v3387 = vsub.s32 %v3384, %v3386
    %v3388 = vrot.slane %v3381, %v3387
    %v3389 = vcombine.low %v3361, %v3368
    %v3391 = vunpack.c.l.s4 1983009808
    %v3392 = vunpack.c.0.s8 %v3391
    %v3393 = vlaneseq
    %v3394 = vshrl.u32 %v3393, 7
    %v3395 = vsub.s32 %v3392, %v3394
    %v3396 = vrot.slane %v3389, %v3395
    %v3397 = vcombine.low %v3371, %v3372
    %v3399 = vunpack.c.l.s4 1983009808
    %v3400 = vunpack.c.0.s8 %v3399
    %v3401 = vlaneseq
    %v3402 = vshrl.u32 %v3401, 7
    %v3403 = vsub.s32 %v3400, %v3402
    %v3404 = vrot.slane %v3397, %v3403
    %v3405 = vcombine.low %v3380, %v3388
    %v3406 = vcombine.high %v3380, %v3388
    %v3408 = vunpack.c.l.s4 1934713408
    %v3409 = vunpack.c.0.s8 %v3408
    %v3410 = vlaneseq
    %v3411 = vshrl.u32 %v3410, 7
    %v3412 = vsub.s32 %v3409, %v3411
    %v3413 = vrot.slane %v3405, %v3412
    %v3415 = vunpack.c.l.s4 1934713408
    %v3416 = vunpack.c.0.s8 %v3415
    %v3417 = vlaneseq
    %v3418 = vshrl.u32 %v3417, 7
    %v3419 = vsub.s32 %v3416, %v3418
    %v3420 = vrot.slane %v3406, %v3419
    %v3421 = vcombine.low %v3396, %v3404
    %v3422 = vcombine.high %v3396, %v3404
    %v3424 = vunpack.c.l.s4 1934713408
    %v3425 = vunpack.c.0.s8 %v3424
    %v3426 = vlaneseq
    %v3427 = vshrl.u32 %v3426, 7
    %v3428 = vsub.s32 %v3425, %v3427
    %v3429 = vrot.slane %v3421, %v3428
    %v3431 = vunpack.c.l.s4 1934713408
    %v3432 = vunpack.c.0.s8 %v3431
    %v3433 = vlaneseq
    %v3434 = vshrl.u32 %v3433, 7
    %v3435 = vsub.s32 %v3432, %v3434
    %v3436 = vrot.slane %v3422, %v3435
    %v3437 = vcombine.low %v3413, %v3429
    %v3438 = vcombine.high %v3413, %v3429
    %v3439 = vcombine.low %v3420, %v3436
    %v3440 = vcombine.high %v3420, %v3436
    %v3442 = vsel %vm783, %v3145, 0
    %v3445 = vsel %vm783, %v3291, 0
    %3447 = vmatprep.subr.mxu0 0.0
    %3448 = vmatpush1.xpose.msra.mxu0 %v3445
    %3449 = vmatprep.subr.mxu0 0.0
    %3450 = vmatpush1.xpose.msra.mxu0 0.0
    %3451 = vmatprep.subr.mxu0 0.0
    %3452 = vmatpush1.xpose.msra.mxu0 0.0
    %3453 = vmatprep.subr.mxu0 0.0
    %3454 = vmatpush1.xpose.msra.mxu0 0.0
    %3455 = vmatprep.subr.mxu0 0.0
    %3456 = vmatpush1.xpose.msra.mxu0 0.0
    %3457 = vmatprep.subr.mxu0 0.0
    %3458 = vmatpush1.xpose.msra.mxu0 0.0
    %3459 = vmatprep.subr.mxu0 0.0
    %3460 = vmatpush1.xpose.msra.mxu0 0.0
    %3461 = vmatprep.subr.mxu0 0.0
    %3462 = vmatpush1.xpose.msra.mxu0 0.0
    %3463 = vmatprep.subr.mxu0 0.0
    %3464 = vmatpush1.xpose.msra.mxu0 0.0
    %3465 = vmatprep.subr.mxu0 0.0
    %3466 = vmatpush1.xpose.msra.mxu0 0.0
    %3467 = vmatprep.subr.mxu0 0.0
    %3468 = vmatpush1.xpose.msra.mxu0 0.0
    %3469 = vmatprep.subr.mxu0 0.0
    %3470 = vmatpush1.xpose.msra.mxu0 0.0
    %3471 = vmatprep.subr.mxu0 0.0
    %3472 = vmatpush1.xpose.msra.mxu0 0.0
    %3473 = vmatprep.subr.mxu0 0.0
    %3474 = vmatpush1.xpose.msra.mxu0 0.0
    %3475 = vmatprep.subr.mxu0 0.0
    %3476 = vmatpush1.xpose.msra.mxu0 0.0
    %3477 = vmatprep.subr.mxu0 0.0
    %3478 = vmatpush1.xpose.msra.mxu0 0.0
    %3479 = vmatprep.subr.mxu0 0.0
    %3480 = vmatpush1.xpose.msra.mxu0 0.0
    %3481 = vmatprep.subr.mxu0 0.0
    %3482 = vmatpush1.xpose.msra.mxu0 0.0
    %3483 = vmatprep.subr.mxu0 0.0
    %3484 = vmatpush1.xpose.msra.mxu0 0.0
    %3485 = vmatprep.subr.mxu0 0.0
    %3486 = vmatpush1.xpose.msra.mxu0 0.0
    %3487 = vmatprep.subr.mxu0 0.0
    %3488 = vmatpush1.xpose.msra.mxu0 0.0
    %3489 = vmatprep.subr.mxu0 0.0
    %3490 = vmatpush1.xpose.msra.mxu0 0.0
    %3491 = vmatprep.subr.mxu0 0.0
    %3492 = vmatpush1.xpose.msra.mxu0 0.0
    %3493 = vmatprep.subr.mxu0 0.0
    %3494 = vmatpush1.xpose.msra.mxu0 0.0
    %3495 = vmatprep.subr.mxu0 0.0
    %3496 = vmatpush1.xpose.msra.mxu0 0.0
    %3497 = vmatprep.subr.mxu0 0.0
    %3498 = vmatpush1.xpose.msra.mxu0 0.0
    %3499 = vmatprep.subr.mxu0 0.0
    %3500 = vmatpush1.xpose.msra.mxu0 0.0
    %3501 = vmatprep.subr.mxu0 0.0
    %3502 = vmatpush1.xpose.msra.mxu0 0.0
    %3503 = vmatprep.subr.mxu0 0.0
    %3504 = vmatpush1.xpose.msra.mxu0 0.0
    %3505 = vmatprep.subr.mxu0 0.0
    %3506 = vmatpush1.xpose.msra.mxu0 0.0
    %3507 = vmatprep.subr.mxu0 0.0
    %3508 = vmatpush1.xpose.msra.mxu0 0.0
    %3509 = vmatprep.subr.mxu0 0.0
    %3510 = vmatpush1.xpose.msra.mxu0 0.0
    %3511 = vmatprep.mubr.f32.mxu0 0.0
    %3512 = vmatmul.mubr.f32.gmra.mrb[0].mxu0 %v3442
    %v3513 = vpop.f32.mrb[0].mxu0
    %v3514 = vadd.f32 0.0, %v3513
    %v3515 = vpop.f32.mrb[0].mxu0
    %3516 = vdwg.mxu0
    %v3518 = vsel %vm783, %v3146, 0
    %v3521 = vsel %vm783, %v3292, 0
    %3523 = vmatprep.subr.mxu0 0.0
    %3524 = vmatpush1.xpose.msra.mxu0 %v3521
    %3525 = vmatprep.subr.mxu0 0.0
    %3526 = vmatpush1.xpose.msra.mxu0 0.0
    %3527 = vmatprep.subr.mxu0 0.0
    %3528 = vmatpush1.xpose.msra.mxu0 0.0
    %3529 = vmatprep.subr.mxu0 0.0
    %3530 = vmatpush1.xpose.msra.mxu0 0.0
    %3531 = vmatprep.subr.mxu0 0.0
    %3532 = vmatpush1.xpose.msra.mxu0 0.0
    %3533 = vmatprep.subr.mxu0 0.0
    %3534 = vmatpush1.xpose.msra.mxu0 0.0
    %3535 = vmatprep.subr.mxu0 0.0
    %3536 = vmatpush1.xpose.msra.mxu0 0.0
    %3537 = vmatprep.subr.mxu0 0.0
    %3538 = vmatpush1.xpose.msra.mxu0 0.0
    %3539 = vmatprep.subr.mxu0 0.0
    %3540 = vmatpush1.xpose.msra.mxu0 0.0
    %3541 = vmatprep.subr.mxu0 0.0
    %3542 = vmatpush1.xpose.msra.mxu0 0.0
    %3543 = vmatprep.subr.mxu0 0.0
    %3544 = vmatpush1.xpose.msra.mxu0 0.0
    %3545 = vmatprep.subr.mxu0 0.0
    %3546 = vmatpush1.xpose.msra.mxu0 0.0
    %3547 = vmatprep.subr.mxu0 0.0
    %3548 = vmatpush1.xpose.msra.mxu0 0.0
    %3549 = vmatprep.subr.mxu0 0.0
    %3550 = vmatpush1.xpose.msra.mxu0 0.0
    %3551 = vmatprep.subr.mxu0 0.0
    %3552 = vmatpush1.xpose.msra.mxu0 0.0
    %3553 = vmatprep.subr.mxu0 0.0
    %3554 = vmatpush1.xpose.msra.mxu0 0.0
    %3555 = vmatprep.subr.mxu0 0.0
    %3556 = vmatpush1.xpose.msra.mxu0 0.0
    %3557 = vmatprep.subr.mxu0 0.0
    %3558 = vmatpush1.xpose.msra.mxu0 0.0
    %3559 = vmatprep.subr.mxu0 0.0
    %3560 = vmatpush1.xpose.msra.mxu0 0.0
    %3561 = vmatprep.subr.mxu0 0.0
    %3562 = vmatpush1.xpose.msra.mxu0 0.0
    %3563 = vmatprep.subr.mxu0 0.0
    %3564 = vmatpush1.xpose.msra.mxu0 0.0
    %3565 = vmatprep.subr.mxu0 0.0
    %3566 = vmatpush1.xpose.msra.mxu0 0.0
    %3567 = vmatprep.subr.mxu0 0.0
    %3568 = vmatpush1.xpose.msra.mxu0 0.0
    %3569 = vmatprep.subr.mxu0 0.0
    %3570 = vmatpush1.xpose.msra.mxu0 0.0
    %3571 = vmatprep.subr.mxu0 0.0
    %3572 = vmatpush1.xpose.msra.mxu0 0.0
    %3573 = vmatprep.subr.mxu0 0.0
    %3574 = vmatpush1.xpose.msra.mxu0 0.0
    %3575 = vmatprep.subr.mxu0 0.0
    %3576 = vmatpush1.xpose.msra.mxu0 0.0
    %3577 = vmatprep.subr.mxu0 0.0
    %3578 = vmatpush1.xpose.msra.mxu0 0.0
    %3579 = vmatprep.subr.mxu0 0.0
    %3580 = vmatpush1.xpose.msra.mxu0 0.0
    %3581 = vmatprep.subr.mxu0 0.0
    %3582 = vmatpush1.xpose.msra.mxu0 0.0
    %3583 = vmatprep.subr.mxu0 0.0
    %3584 = vmatpush1.xpose.msra.mxu0 0.0
    %3585 = vmatprep.subr.mxu0 0.0
    %3586 = vmatpush1.xpose.msra.mxu0 0.0
    %3587 = vmatprep.mubr.f32.mxu0 0.0
    %3588 = vmatmul.mubr.f32.gmra.mrb[0].mxu0 %v3518
    %v3589 = vpop.f32.mrb[0].mxu0
    %v3590 = vadd.f32 0.0, %v3589
    %v3591 = vpop.f32.mrb[0].mxu0
    %3592 = vdwg.mxu0
    %v3594 = vsel %vm783, %v3147, 0
    %v3597 = vsel %vm783, %v3293, 0
    %3599 = vmatprep.subr.mxu0 0.0
    %3600 = vmatpush1.xpose.msra.mxu0 %v3597
    %3601 = vmatprep.subr.mxu0 0.0
    %3602 = vmatpush1.xpose.msra.mxu0 0.0
    %3603 = vmatprep.subr.mxu0 0.0
    %3604 = vmatpush1.xpose.msra.mxu0 0.0
    %3605 = vmatprep.subr.mxu0 0.0
    %3606 = vmatpush1.xpose.msra.mxu0 0.0
    %3607 = vmatprep.subr.mxu0 0.0
    %3608 = vmatpush1.xpose.msra.mxu0 0.0
    %3609 = vmatprep.subr.mxu0 0.0
    %3610 = vmatpush1.xpose.msra.mxu0 0.0
    %3611 = vmatprep.subr.mxu0 0.0
    %3612 = vmatpush1.xpose.msra.mxu0 0.0
    %3613 = vmatprep.subr.mxu0 0.0
    %3614 = vmatpush1.xpose.msra.mxu0 0.0
    %3615 = vmatprep.subr.mxu0 0.0
    %3616 = vmatpush1.xpose.msra.mxu0 0.0
    %3617 = vmatprep.subr.mxu0 0.0
    %3618 = vmatpush1.xpose.msra.mxu0 0.0
    %3619 = vmatprep.subr.mxu0 0.0
    %3620 = vmatpush1.xpose.msra.mxu0 0.0
    %3621 = vmatprep.subr.mxu0 0.0
    %3622 = vmatpush1.xpose.msra.mxu0 0.0
    %3623 = vmatprep.subr.mxu0 0.0
    %3624 = vmatpush1.xpose.msra.mxu0 0.0
    %3625 = vmatprep.subr.mxu0 0.0
    %3626 = vmatpush1.xpose.msra.mxu0 0.0
    %3627 = vmatprep.subr.mxu0 0.0
    %3628 = vmatpush1.xpose.msra.mxu0 0.0
    %3629 = vmatprep.subr.mxu0 0.0
    %3630 = vmatpush1.xpose.msra.mxu0 0.0
    %3631 = vmatprep.subr.mxu0 0.0
    %3632 = vmatpush1.xpose.msra.mxu0 0.0
    %3633 = vmatprep.subr.mxu0 0.0
    %3634 = vmatpush1.xpose.msra.mxu0 0.0
    %3635 = vmatprep.subr.mxu0 0.0
    %3636 = vmatpush1.xpose.msra.mxu0 0.0
    %3637 = vmatprep.subr.mxu0 0.0
    %3638 = vmatpush1.xpose.msra.mxu0 0.0
    %3639 = vmatprep.subr.mxu0 0.0
    %3640 = vmatpush1.xpose.msra.mxu0 0.0
    %3641 = vmatprep.subr.mxu0 0.0
    %3642 = vmatpush1.xpose.msra.mxu0 0.0
    %3643 = vmatprep.subr.mxu0 0.0
    %3644 = vmatpush1.xpose.msra.mxu0 0.0
    %3645 = vmatprep.subr.mxu0 0.0
    %3646 = vmatpush1.xpose.msra.mxu0 0.0
    %3647 = vmatprep.subr.mxu0 0.0
    %3648 = vmatpush1.xpose.msra.mxu0 0.0
    %3649 = vmatprep.subr.mxu0 0.0
    %3650 = vmatpush1.xpose.msra.mxu0 0.0
    %3651 = vmatprep.subr.mxu0 0.0
    %3652 = vmatpush1.xpose.msra.mxu0 0.0
    %3653 = vmatprep.subr.mxu0 0.0
    %3654 = vmatpush1.xpose.msra.mxu0 0.0
    %3655 = vmatprep.subr.mxu0 0.0
    %3656 = vmatpush1.xpose.msra.mxu0 0.0
    %3657 = vmatprep.subr.mxu0 0.0
    %3658 = vmatpush1.xpose.msra.mxu0 0.0
    %3659 = vmatprep.subr.mxu0 0.0
    %3660 = vmatpush1.xpose.msra.mxu0 0.0
    %3661 = vmatprep.subr.mxu0 0.0
    %3662 = vmatpush1.xpose.msra.mxu0 0.0
    %3663 = vmatprep.mubr.f32.mxu0 0.0
    %3664 = vmatmul.mubr.f32.gmra.mrb[0].mxu0 %v3594
    %v3665 = vpop.f32.mrb[0].mxu0
    %v3666 = vadd.f32 0.0, %v3665
    %v3667 = vpop.f32.mrb[0].mxu0
    %3668 = vdwg.mxu0
    %v3670 = vsel %vm783, %v3148, 0
    %v3673 = vsel %vm783, %v3294, 0
    %3675 = vmatprep.subr.mxu0 0.0
    %3676 = vmatpush1.xpose.msra.mxu0 %v3673
    %3677 = vmatprep.subr.mxu0 0.0
    %3678 = vmatpush1.xpose.msra.mxu0 0.0
    %3679 = vmatprep.subr.mxu0 0.0
    %3680 = vmatpush1.xpose.msra.mxu0 0.0
    %3681 = vmatprep.subr.mxu0 0.0
    %3682 = vmatpush1.xpose.msra.mxu0 0.0
    %3683 = vmatprep.subr.mxu0 0.0
    %3684 = vmatpush1.xpose.msra.mxu0 0.0
    %3685 = vmatprep.subr.mxu0 0.0
    %3686 = vmatpush1.xpose.msra.mxu0 0.0
    %3687 = vmatprep.subr.mxu0 0.0
    %3688 = vmatpush1.xpose.msra.mxu0 0.0
    %3689 = vmatprep.subr.mxu0 0.0
    %3690 = vmatpush1.xpose.msra.mxu0 0.0
    %3691 = vmatprep.subr.mxu0 0.0
    %3692 = vmatpush1.xpose.msra.mxu0 0.0
    %3693 = vmatprep.subr.mxu0 0.0
    %3694 = vmatpush1.xpose.msra.mxu0 0.0
    %3695 = vmatprep.subr.mxu0 0.0
    %3696 = vmatpush1.xpose.msra.mxu0 0.0
    %3697 = vmatprep.subr.mxu0 0.0
    %3698 = vmatpush1.xpose.msra.mxu0 0.0
    %3699 = vmatprep.subr.mxu0 0.0
    %3700 = vmatpush1.xpose.msra.mxu0 0.0
    %3701 = vmatprep.subr.mxu0 0.0
    %3702 = vmatpush1.xpose.msra.mxu0 0.0
    %3703 = vmatprep.subr.mxu0 0.0
    %3704 = vmatpush1.xpose.msra.mxu0 0.0
    %3705 = vmatprep.subr.mxu0 0.0
    %3706 = vmatpush1.xpose.msra.mxu0 0.0
    %3707 = vmatprep.subr.mxu0 0.0
    %3708 = vmatpush1.xpose.msra.mxu0 0.0
    %3709 = vmatprep.subr.mxu0 0.0
    %3710 = vmatpush1.xpose.msra.mxu0 0.0
    %3711 = vmatprep.subr.mxu0 0.0
    %3712 = vmatpush1.xpose.msra.mxu0 0.0
    %3713 = vmatprep.subr.mxu0 0.0
    %3714 = vmatpush1.xpose.msra.mxu0 0.0
    %3715 = vmatprep.subr.mxu0 0.0
    %3716 = vmatpush1.xpose.msra.mxu0 0.0
    %3717 = vmatprep.subr.mxu0 0.0
    %3718 = vmatpush1.xpose.msra.mxu0 0.0
    %3719 = vmatprep.subr.mxu0 0.0
    %3720 = vmatpush1.xpose.msra.mxu0 0.0
    %3721 = vmatprep.subr.mxu0 0.0
    %3722 = vmatpush1.xpose.msra.mxu0 0.0
    %3723 = vmatprep.subr.mxu0 0.0
    %3724 = vmatpush1.xpose.msra.mxu0 0.0
    %3725 = vmatprep.subr.mxu0 0.0
    %3726 = vmatpush1.xpose.msra.mxu0 0.0
    %3727 = vmatprep.subr.mxu0 0.0
    %3728 = vmatpush1.xpose.msra.mxu0 0.0
    %3729 = vmatprep.subr.mxu0 0.0
    %3730 = vmatpush1.xpose.msra.mxu0 0.0
    %3731 = vmatprep.subr.mxu0 0.0
    %3732 = vmatpush1.xpose.msra.mxu0 0.0
    %3733 = vmatprep.subr.mxu0 0.0
    %3734 = vmatpush1.xpose.msra.mxu0 0.0
    %3735 = vmatprep.subr.mxu0 0.0
    %3736 = vmatpush1.xpose.msra.mxu0 0.0
    %3737 = vmatprep.subr.mxu0 0.0
    %3738 = vmatpush1.xpose.msra.mxu0 0.0
    %3739 = vmatprep.mubr.f32.mxu0 0.0
    %3740 = vmatmul.mubr.f32.gmra.mrb[0].mxu0 %v3670
    %v3741 = vpop.f32.mrb[0].mxu0
    %v3742 = vadd.f32 0.0, %v3741
    %v3743 = vpop.f32.mrb[0].mxu0
    %3744 = vdwg.mxu0
    %v3745 = vsel %vm344, 1, 0
    %vm3746 = vcmp.eq.s32.totalorder %v3745, 1
    %v3751 = vcombine.high %v3514, %v3514
    %v3753 = vunpack.c.l.s4 1966171168
    %v3754 = vunpack.c.0.s8 %v3753
    %v3755 = vlaneseq
    %v3756 = vshrl.u32 %v3755, 7
    %v3757 = vsub.s32 %v3754, %v3756
    %v3758 = vrot.slane %v3514, %v3757
    %v3760 = vunpack.c.l.s4 1966171168
    %v3761 = vunpack.c.0.s8 %v3760
    %v3762 = vlaneseq
    %v3763 = vshrl.u32 %v3762, 7
    %v3764 = vsub.s32 %v3761, %v3763
    %v3765 = vrot.slane %v3751, %v3764
    %v3766 = vcombine.high %v3758, %v3758
    %v3767 = vcombine.high %v3765, %v3765
    %v3769 = vunpack.c.l.s4 1966171168
    %v3770 = vunpack.c.0.s8 %v3769
    %v3771 = vlaneseq
    %v3772 = vshrl.u32 %v3771, 7
    %v3773 = vsub.s32 %v3770, %v3772
    %v3774 = vrot.slane %v3758, %v3773
    %v3776 = vunpack.c.l.s4 1966171168
    %v3777 = vunpack.c.0.s8 %v3776
    %v3778 = vlaneseq
    %v3779 = vshrl.u32 %v3778, 7
    %v3780 = vsub.s32 %v3777, %v3779
    %v3781 = vrot.slane %v3765, %v3780
    %v3783 = vunpack.c.l.s4 1966171168
    %v3784 = vunpack.c.0.s8 %v3783
    %v3785 = vlaneseq
    %v3786 = vshrl.u32 %v3785, 7
    %v3787 = vsub.s32 %v3784, %v3786
    %v3788 = vrot.slane %v3766, %v3787
    %v3790 = vunpack.c.l.s4 1966171168
    %v3791 = vunpack.c.0.s8 %v3790
    %v3792 = vlaneseq
    %v3793 = vshrl.u32 %v3792, 7
    %v3794 = vsub.s32 %v3791, %v3793
    %v3795 = vrot.slane %v3767, %v3794
    %v3796 = vcombine.high %v3774, %v3774
    %v3797 = vcombine.high %v3781, %v3781
    %v3798 = vcombine.high %v3788, %v3788
    %v3799 = vcombine.high %v3795, %v3795
    %v3800 = vcombine.high %v3590, %v3590
    %v3802 = vunpack.c.l.s4 1966171168
    %v3803 = vunpack.c.0.s8 %v3802
    %v3804 = vlaneseq
    %v3805 = vshrl.u32 %v3804, 7
    %v3806 = vsub.s32 %v3803, %v3805
    %v3807 = vrot.slane %v3590, %v3806
    %v3809 = vunpack.c.l.s4 1966171168
    %v3810 = vunpack.c.0.s8 %v3809
    %v3811 = vlaneseq
    %v3812 = vshrl.u32 %v3811, 7
    %v3813 = vsub.s32 %v3810, %v3812
    %v3814 = vrot.slane %v3800, %v3813
    %v3815 = vcombine.high %v3807, %v3807
    %v3816 = vcombine.high %v3814, %v3814
    %v3818 = vunpack.c.l.s4 1966171168
    %v3819 = vunpack.c.0.s8 %v3818
    %v3820 = vlaneseq
    %v3821 = vshrl.u32 %v3820, 7
    %v3822 = vsub.s32 %v3819, %v3821
    %v3823 = vrot.slane %v3807, %v3822
    %v3825 = vunpack.c.l.s4 1966171168
    %v3826 = vunpack.c.0.s8 %v3825
    %v3827 = vlaneseq
    %v3828 = vshrl.u32 %v3827, 7
    %v3829 = vsub.s32 %v3826, %v3828
    %v3830 = vrot.slane %v3814, %v3829
    %v3832 = vunpack.c.l.s4 1966171168
    %v3833 = vunpack.c.0.s8 %v3832
    %v3834 = vlaneseq
    %v3835 = vshrl.u32 %v3834, 7
    %v3836 = vsub.s32 %v3833, %v3835
    %v3837 = vrot.slane %v3815, %v3836
    %v3839 = vunpack.c.l.s4 1966171168
    %v3840 = vunpack.c.0.s8 %v3839
    %v3841 = vlaneseq
    %v3842 = vshrl.u32 %v3841, 7
    %v3843 = vsub.s32 %v3840, %v3842
    %v3844 = vrot.slane %v3816, %v3843
    %v3845 = vcombine.high %v3823, %v3823
    %v3846 = vcombine.high %v3830, %v3830
    %v3847 = vcombine.high %v3837, %v3837
    %v3848 = vcombine.high %v3844, %v3844
    %v3849 = vcombine.high %v3666, %v3666
    %v3851 = vunpack.c.l.s4 1966171168
    %v3852 = vunpack.c.0.s8 %v3851
    %v3853 = vlaneseq
    %v3854 = vshrl.u32 %v3853, 7
    %v3855 = vsub.s32 %v3852, %v3854
    %v3856 = vrot.slane %v3666, %v3855
    %v3858 = vunpack.c.l.s4 1966171168
    %v3859 = vunpack.c.0.s8 %v3858
    %v3860 = vlaneseq
    %v3861 = vshrl.u32 %v3860, 7
    %v3862 = vsub.s32 %v3859, %v3861
    %v3863 = vrot.slane %v3849, %v3862
    %v3864 = vcombine.high %v3856, %v3856
    %v3865 = vcombine.high %v3863, %v3863
    %v3867 = vunpack.c.l.s4 1966171168
    %v3868 = vunpack.c.0.s8 %v3867
    %v3869 = vlaneseq
    %v3870 = vshrl.u32 %v3869, 7
    %v3871 = vsub.s32 %v3868, %v3870
    %v3872 = vrot.slane %v3856, %v3871
    %v3874 = vunpack.c.l.s4 1966171168
    %v3875 = vunpack.c.0.s8 %v3874
    %v3876 = vlaneseq
    %v3877 = vshrl.u32 %v3876, 7
    %v3878 = vsub.s32 %v3875, %v3877
    %v3879 = vrot.slane %v3863, %v3878
    %v3881 = vunpack.c.l.s4 1966171168
    %v3882 = vunpack.c.0.s8 %v3881
    %v3883 = vlaneseq
    %v3884 = vshrl.u32 %v3883, 7
    %v3885 = vsub.s32 %v3882, %v3884
    %v3886 = vrot.slane %v3864, %v3885
    %v3888 = vunpack.c.l.s4 1966171168
    %v3889 = vunpack.c.0.s8 %v3888
    %v3890 = vlaneseq
    %v3891 = vshrl.u32 %v3890, 7
    %v3892 = vsub.s32 %v3889, %v3891
    %v3893 = vrot.slane %v3865, %v3892
    %v3894 = vcombine.high %v3872, %v3872
    %v3895 = vcombine.high %v3879, %v3879
    %v3896 = vcombine.high %v3886, %v3886
    %v3897 = vcombine.high %v3893, %v3893
    %v3898 = vcombine.high %v3742, %v3742
    %v3900 = vunpack.c.l.s4 1966171168
    %v3901 = vunpack.c.0.s8 %v3900
    %v3902 = vlaneseq
    %v3903 = vshrl.u32 %v3902, 7
    %v3904 = vsub.s32 %v3901, %v3903
    %v3905 = vrot.slane %v3742, %v3904
    %v3907 = vunpack.c.l.s4 1966171168
    %v3908 = vunpack.c.0.s8 %v3907
    %v3909 = vlaneseq
    %v3910 = vshrl.u32 %v3909, 7
    %v3911 = vsub.s32 %v3908, %v3910
    %v3912 = vrot.slane %v3898, %v3911
    %v3913 = vcombine.high %v3905, %v3905
    %v3914 = vcombine.high %v3912, %v3912
    %v3916 = vunpack.c.l.s4 1966171168
    %v3917 = vunpack.c.0.s8 %v3916
    %v3918 = vlaneseq
    %v3919 = vshrl.u32 %v3918, 7
    %v3920 = vsub.s32 %v3917, %v3919
    %v3921 = vrot.slane %v3905, %v3920
    %v3923 = vunpack.c.l.s4 1966171168
    %v3924 = vunpack.c.0.s8 %v3923
    %v3925 = vlaneseq
    %v3926 = vshrl.u32 %v3925, 7
    %v3927 = vsub.s32 %v3924, %v3926
    %v3928 = vrot.slane %v3912, %v3927
    %v3930 = vunpack.c.l.s4 1966171168
    %v3931 = vunpack.c.0.s8 %v3930
    %v3932 = vlaneseq
    %v3933 = vshrl.u32 %v3932, 7
    %v3934 = vsub.s32 %v3931, %v3933
    %v3935 = vrot.slane %v3913, %v3934
    %v3937 = vunpack.c.l.s4 1966171168
    %v3938 = vunpack.c.0.s8 %v3937
    %v3939 = vlaneseq
    %v3940 = vshrl.u32 %v3939, 7
    %v3941 = vsub.s32 %v3938, %v3940
    %v3942 = vrot.slane %v3914, %v3941
    %v3943 = vcombine.high %v3921, %v3921
    %v3944 = vcombine.high %v3928, %v3928
    %v3945 = vcombine.high %v3935, %v3935
    %v3946 = vcombine.high %v3942, %v3942
    %v3979 = vsel %vm3746, %v3774, -1e+09
    %v3980 = vsel %vm3746, %v3788, -1e+09
    %v3981 = vsel %vm3746, %v3796, -1e+09
    %v3982 = vsel %vm3746, %v3798, -1e+09
    %v3983 = vsel %vm3746, %v3781, -1e+09
    %v3984 = vsel %vm3746, %v3795, -1e+09
    %v3985 = vsel %vm3746, %v3797, -1e+09
    %v3986 = vsel %vm3746, %v3799, -1e+09
    %v3987 = vsel %vm3746, %v3823, -1e+09
    %v3988 = vsel %vm3746, %v3837, -1e+09
    %v3989 = vsel %vm3746, %v3845, -1e+09
    %v3990 = vsel %vm3746, %v3847, -1e+09
    %v3991 = vsel %vm3746, %v3830, -1e+09
    %v3992 = vsel %vm3746, %v3844, -1e+09
    %v3993 = vsel %vm3746, %v3846, -1e+09
    %v3994 = vsel %vm3746, %v3848, -1e+09
    %v3995 = vsel %vm3746, %v3872, -1e+09
    %v3996 = vsel %vm3746, %v3886, -1e+09
    %v3997 = vsel %vm3746, %v3894, -1e+09
    %v3998 = vsel %vm3746, %v3896, -1e+09
    %v3999 = vsel %vm3746, %v3879, -1e+09
    %v4000 = vsel %vm3746, %v3893, -1e+09
    %v4001 = vsel %vm3746, %v3895, -1e+09
    %v4002 = vsel %vm3746, %v3897, -1e+09
    %v4003 = vsel %vm3746, %v3921, -1e+09
    %v4004 = vsel %vm3746, %v3935, -1e+09
    %v4005 = vsel %vm3746, %v3943, -1e+09
    %v4006 = vsel %vm3746, %v3945, -1e+09
    %v4007 = vsel %vm3746, %v3928, -1e+09
    %v4008 = vsel %vm3746, %v3942, -1e+09
    %v4009 = vsel %vm3746, %v3944, -1e+09
    %v4010 = vsel %vm3746, %v3946, -1e+09
    %v4011 = vmul.f32 %v3979, 0.35355338
    %v4012 = vmul.f32 %v3980, 0.35355338
    %v4013 = vmul.f32 %v3981, 0.35355338
    %v4014 = vmul.f32 %v3982, 0.35355338
    %v4015 = vmul.f32 %v3983, 0.35355338
    %v4016 = vmul.f32 %v3984, 0.35355338
    %v4017 = vmul.f32 %v3985, 0.35355338
    %v4018 = vmul.f32 %v3986, 0.35355338
    %v4019 = vmul.f32 %v3987, 0.35355338
    %v4020 = vmul.f32 %v3988, 0.35355338
    %v4021 = vmul.f32 %v3989, 0.35355338
    %v4022 = vmul.f32 %v3990, 0.35355338
    %v4023 = vmul.f32 %v3991, 0.35355338
    %v4024 = vmul.f32 %v3992, 0.35355338
    %v4025 = vmul.f32 %v3993, 0.35355338
    %v4026 = vmul.f32 %v3994, 0.35355338
    %v4027 = vmul.f32 %v3995, 0.35355338
    %v4028 = vmul.f32 %v3996, 0.35355338
    %v4029 = vmul.f32 %v3997, 0.35355338
    %v4030 = vmul.f32 %v3998, 0.35355338
    %v4031 = vmul.f32 %v3999, 0.35355338
    %v4032 = vmul.f32 %v4000, 0.35355338
    %v4033 = vmul.f32 %v4001, 0.35355338
    %v4034 = vmul.f32 %v4002, 0.35355338
    %v4035 = vmul.f32 %v4003, 0.35355338
    %v4036 = vmul.f32 %v4004, 0.35355338
    %v4037 = vmul.f32 %v4005, 0.35355338
    %v4038 = vmul.f32 %v4006, 0.35355338
    %v4039 = vmul.f32 %v4007, 0.35355338
    %v4040 = vmul.f32 %v4008, 0.35355338
    %v4041 = vmul.f32 %v4009, 0.35355338
    %v4042 = vmul.f32 %v4010, 0.35355338
    %v4075 = vcombine.low %v4011, %v4012
    %v4076 = vcombine.low %v4013, %v4014
    %v4077 = vcombine.low %v4015, %v4016
    %v4078 = vcombine.low %v4017, %v4018
    %v4080 = vunpack.c.l.s4 1966171168
    %v4081 = vunpack.c.0.s8 %v4080
    %v4082 = vlaneseq
    %v4083 = vshrl.u32 %v4082, 7
    %v4084 = vsub.s32 %v4081, %v4083
    %v4085 = vrot.slane %v4075, %v4084
    %v4087 = vunpack.c.l.s4 1966171168
    %v4088 = vunpack.c.0.s8 %v4087
    %v4089 = vlaneseq
    %v4090 = vshrl.u32 %v4089, 7
    %v4091 = vsub.s32 %v4088, %v4090
    %v4092 = vrot.slane %v4076, %v4091
    %v4094 = vunpack.c.l.s4 1966171168
    %v4095 = vunpack.c.0.s8 %v4094
    %v4096 = vlaneseq
    %v4097 = vshrl.u32 %v4096, 7
    %v4098 = vsub.s32 %v4095, %v4097
    %v4099 = vrot.slane %v4077, %v4098
    %v4101 = vunpack.c.l.s4 1966171168
    %v4102 = vunpack.c.0.s8 %v4101
    %v4103 = vlaneseq
    %v4104 = vshrl.u32 %v4103, 7
    %v4105 = vsub.s32 %v4102, %v4104
    %v4106 = vrot.slane %v4078, %v4105
    %v4107 = vcombine.low %v4085, %v4092
    %v4108 = vcombine.low %v4099, %v4106
    %v4110 = vunpack.c.l.s4 1966171168
    %v4111 = vunpack.c.0.s8 %v4110
    %v4112 = vlaneseq
    %v4113 = vshrl.u32 %v4112, 7
    %v4114 = vsub.s32 %v4111, %v4113
    %v4115 = vrot.slane %v4107, %v4114
    %v4117 = vunpack.c.l.s4 1966171168
    %v4118 = vunpack.c.0.s8 %v4117
    %v4119 = vlaneseq
    %v4120 = vshrl.u32 %v4119, 7
    %v4121 = vsub.s32 %v4118, %v4120
    %v4122 = vrot.slane %v4108, %v4121
    %v4123 = vcombine.low %v4115, %v4122
    %v4124 = vcombine.low %v4019, %v4020
    %v4125 = vcombine.low %v4021, %v4022
    %v4126 = vcombine.low %v4023, %v4024
    %v4127 = vcombine.low %v4025, %v4026
    %v4129 = vunpack.c.l.s4 1966171168
    %v4130 = vunpack.c.0.s8 %v4129
    %v4131 = vlaneseq
    %v4132 = vshrl.u32 %v4131, 7
    %v4133 = vsub.s32 %v4130, %v4132
    %v4134 = vrot.slane %v4124, %v4133
    %v4136 = vunpack.c.l.s4 1966171168
    %v4137 = vunpack.c.0.s8 %v4136
    %v4138 = vlaneseq
    %v4139 = vshrl.u32 %v4138, 7
    %v4140 = vsub.s32 %v4137, %v4139
    %v4141 = vrot.slane %v4125, %v4140
    %v4143 = vunpack.c.l.s4 1966171168
    %v4144 = vunpack.c.0.s8 %v4143
    %v4145 = vlaneseq
    %v4146 = vshrl.u32 %v4145, 7
    %v4147 = vsub.s32 %v4144, %v4146
    %v4148 = vrot.slane %v4126, %v4147
    %v4150 = vunpack.c.l.s4 1966171168
    %v4151 = vunpack.c.0.s8 %v4150
    %v4152 = vlaneseq
    %v4153 = vshrl.u32 %v4152, 7
    %v4154 = vsub.s32 %v4151, %v4153
    %v4155 = vrot.slane %v4127, %v4154
    %v4156 = vcombine.low %v4134, %v4141
    %v4157 = vcombine.low %v4148, %v4155
    %v4159 = vunpack.c.l.s4 1966171168
    %v4160 = vunpack.c.0.s8 %v4159
    %v4161 = vlaneseq
    %v4162 = vshrl.u32 %v4161, 7
    %v4163 = vsub.s32 %v4160, %v4162
    %v4164 = vrot.slane %v4156, %v4163
    %v4166 = vunpack.c.l.s4 1966171168
    %v4167 = vunpack.c.0.s8 %v4166
    %v4168 = vlaneseq
    %v4169 = vshrl.u32 %v4168, 7
    %v4170 = vsub.s32 %v4167, %v4169
    %v4171 = vrot.slane %v4157, %v4170
    %v4172 = vcombine.low %v4164, %v4171
    %v4173 = vcombine.low %v4027, %v4028
    %v4174 = vcombine.low %v4029, %v4030
    %v4175 = vcombine.low %v4031, %v4032
    %v4176 = vcombine.low %v4033, %v4034
    %v4178 = vunpack.c.l.s4 1966171168
    %v4179 = vunpack.c.0.s8 %v4178
    %v4180 = vlaneseq
    %v4181 = vshrl.u32 %v4180, 7
    %v4182 = vsub.s32 %v4179, %v4181
    %v4183 = vrot.slane %v4173, %v4182
    %v4185 = vunpack.c.l.s4 1966171168
    %v4186 = vunpack.c.0.s8 %v4185
    %v4187 = vlaneseq
    %v4188 = vshrl.u32 %v4187, 7
    %v4189 = vsub.s32 %v4186, %v4188
    %v4190 = vrot.slane %v4174, %v4189
    %v4192 = vunpack.c.l.s4 1966171168
    %v4193 = vunpack.c.0.s8 %v4192
    %v4194 = vlaneseq
    %v4195 = vshrl.u32 %v4194, 7
    %v4196 = vsub.s32 %v4193, %v4195
    %v4197 = vrot.slane %v4175, %v4196
    %v4199 = vunpack.c.l.s4 1966171168
    %v4200 = vunpack.c.0.s8 %v4199
    %v4201 = vlaneseq
    %v4202 = vshrl.u32 %v4201, 7
    %v4203 = vsub.s32 %v4200, %v4202
    %v4204 = vrot.slane %v4176, %v4203
    %v4205 = vcombine.low %v4183, %v4190
    %v4206 = vcombine.low %v4197, %v4204
    %v4208 = vunpack.c.l.s4 1966171168
    %v4209 = vunpack.c.0.s8 %v4208
    %v4210 = vlaneseq
    %v4211 = vshrl.u32 %v4210, 7
    %v4212 = vsub.s32 %v4209, %v4211
    %v4213 = vrot.slane %v4205, %v4212
    %v4215 = vunpack.c.l.s4 1966171168
    %v4216 = vunpack.c.0.s8 %v4215
    %v4217 = vlaneseq
    %v4218 = vshrl.u32 %v4217, 7
    %v4219 = vsub.s32 %v4216, %v4218
    %v4220 = vrot.slane %v4206, %v4219
    %v4221 = vcombine.low %v4213, %v4220
    %v4222 = vcombine.low %v4035, %v4036
    %v4223 = vcombine.low %v4037, %v4038
    %v4224 = vcombine.low %v4039, %v4040
    %v4225 = vcombine.low %v4041, %v4042
    %v4227 = vunpack.c.l.s4 1966171168
    %v4228 = vunpack.c.0.s8 %v4227
    %v4229 = vlaneseq
    %v4230 = vshrl.u32 %v4229, 7
    %v4231 = vsub.s32 %v4228, %v4230
    %v4232 = vrot.slane %v4222, %v4231
    %v4234 = vunpack.c.l.s4 1966171168
    %v4235 = vunpack.c.0.s8 %v4234
    %v4236 = vlaneseq
    %v4237 = vshrl.u32 %v4236, 7
    %v4238 = vsub.s32 %v4235, %v4237
    %v4239 = vrot.slane %v4223, %v4238
    %v4241 = vunpack.c.l.s4 1966171168
    %v4242 = vunpack.c.0.s8 %v4241
    %v4243 = vlaneseq
    %v4244 = vshrl.u32 %v4243, 7
    %v4245 = vsub.s32 %v4242, %v4244
    %v4246 = vrot.slane %v4224, %v4245
    %v4248 = vunpack.c.l.s4 1966171168
    %v4249 = vunpack.c.0.s8 %v4248
    %v4250 = vlaneseq
    %v4251 = vshrl.u32 %v4250, 7
    %v4252 = vsub.s32 %v4249, %v4251
    %v4253 = vrot.slane %v4225, %v4252
    %v4254 = vcombine.low %v4232, %v4239
    %v4255 = vcombine.low %v4246, %v4253
    %v4257 = vunpack.c.l.s4 1966171168
    %v4258 = vunpack.c.0.s8 %v4257
    %v4259 = vlaneseq
    %v4260 = vshrl.u32 %v4259, 7
    %v4261 = vsub.s32 %v4258, %v4260
    %v4262 = vrot.slane %v4254, %v4261
    %v4264 = vunpack.c.l.s4 1966171168
    %v4265 = vunpack.c.0.s8 %v4264
    %v4266 = vlaneseq
    %v4267 = vshrl.u32 %v4266, 7
    %v4268 = vsub.s32 %v4265, %v4267
    %v4269 = vrot.slane %v4255, %v4268
    %v4270 = vcombine.low %v4262, %v4269
    %v4275 = vsel %vm783, %v4123, -inf
    %4276 = vmax.xlane.f32.xlu0 %v4275
    %v4277 = vpop.xlane.xlu0 %4276
    %v4278 = vsel %vm783, %v4172, -inf
    %4279 = vmax.xlane.f32.xlu0 %v4278
    %v4280 = vpop.xlane.xlu0 %4279
    %v4281 = vsel %vm783, %v4221, -inf
    %4282 = vmax.xlane.f32.xlu0 %v4281
    %v4283 = vpop.xlane.xlu0 %4282
    %v4284 = vsel %vm783, %v4270, -inf
    %4285 = vmax.xlane.f32.xlu0 %v4284
    %v4286 = vpop.xlane.xlu0 %4285
    %v4291 = vlaneseq
    %v4292 = vshrl.u32 %v4291, 7
    %v4293 = vsub.s32 0, %v4292
    %v4294 = vrot.slane %v4277, %v4293
    %v4295 = vlaneseq
    %v4296 = vshrl.u32 %v4295, 7
    %v4297 = vsub.s32 1, %v4296
    %v4298 = vrot.slane %v4277, %v4297
    %v4299 = vlaneseq
    %v4300 = vshrl.u32 %v4299, 7
    %v4301 = vsub.s32 2, %v4300
    %v4302 = vrot.slane %v4277, %v4301
    %v4303 = vlaneseq
    %v4304 = vshrl.u32 %v4303, 7
    %v4305 = vsub.s32 3, %v4304
    %v4306 = vrot.slane %v4277, %v4305
    %v4307 = vlaneseq
    %v4308 = vshrl.u32 %v4307, 7
    %v4309 = vsub.s32 4, %v4308
    %v4310 = vrot.slane %v4277, %v4309
    %v4311 = vlaneseq
    %v4312 = vshrl.u32 %v4311, 7
    %v4313 = vsub.s32 5, %v4312
    %v4314 = vrot.slane %v4277, %v4313
    %v4315 = vlaneseq
    %v4316 = vshrl.u32 %v4315, 7
    %v4317 = vsub.s32 6, %v4316
    %v4318 = vrot.slane %v4277, %v4317
    %v4319 = vlaneseq
    %v4320 = vshrl.u32 %v4319, 7
    %v4321 = vsub.s32 7, %v4320
    %v4322 = vrot.slane %v4277, %v4321
    %v4323 = vlaneseq
    %v4324 = vshrl.u32 %v4323, 7
    %v4325 = vsub.s32 0, %v4324
    %v4326 = vrot.slane %v4280, %v4325
    %v4327 = vlaneseq
    %v4328 = vshrl.u32 %v4327, 7
    %v4329 = vsub.s32 1, %v4328
    %v4330 = vrot.slane %v4280, %v4329
    %v4331 = vlaneseq
    %v4332 = vshrl.u32 %v4331, 7
    %v4333 = vsub.s32 2, %v4332
    %v4334 = vrot.slane %v4280, %v4333
    %v4335 = vlaneseq
    %v4336 = vshrl.u32 %v4335, 7
    %v4337 = vsub.s32 3, %v4336
    %v4338 = vrot.slane %v4280, %v4337
    %v4339 = vlaneseq
    %v4340 = vshrl.u32 %v4339, 7
    %v4341 = vsub.s32 4, %v4340
    %v4342 = vrot.slane %v4280, %v4341
    %v4343 = vlaneseq
    %v4344 = vshrl.u32 %v4343, 7
    %v4345 = vsub.s32 5, %v4344
    %v4346 = vrot.slane %v4280, %v4345
    %v4347 = vlaneseq
    %v4348 = vshrl.u32 %v4347, 7
    %v4349 = vsub.s32 6, %v4348
    %v4350 = vrot.slane %v4280, %v4349
    %v4351 = vlaneseq
    %v4352 = vshrl.u32 %v4351, 7
    %v4353 = vsub.s32 7, %v4352
    %v4354 = vrot.slane %v4280, %v4353
    %v4355 = vlaneseq
    %v4356 = vshrl.u32 %v4355, 7
    %v4357 = vsub.s32 0, %v4356
    %v4358 = vrot.slane %v4283, %v4357
    %v4359 = vlaneseq
    %v4360 = vshrl.u32 %v4359, 7
    %v4361 = vsub.s32 1, %v4360
    %v4362 = vrot.slane %v4283, %v4361
    %v4363 = vlaneseq
    %v4364 = vshrl.u32 %v4363, 7
    %v4365 = vsub.s32 2, %v4364
    %v4366 = vrot.slane %v4283, %v4365
    %v4367 = vlaneseq
    %v4368 = vshrl.u32 %v4367, 7
    %v4369 = vsub.s32 3, %v4368
    %v4370 = vrot.slane %v4283, %v4369
    %v4371 = vlaneseq
    %v4372 = vshrl.u32 %v4371, 7
    %v4373 = vsub.s32 4, %v4372
    %v4374 = vrot.slane %v4283, %v4373
    %v4375 = vlaneseq
    %v4376 = vshrl.u32 %v4375, 7
    %v4377 = vsub.s32 5, %v4376
    %v4378 = vrot.slane %v4283, %v4377
    %v4379 = vlaneseq
    %v4380 = vshrl.u32 %v4379, 7
    %v4381 = vsub.s32 6, %v4380
    %v4382 = vrot.slane %v4283, %v4381
    %v4383 = vlaneseq
    %v4384 = vshrl.u32 %v4383, 7
    %v4385 = vsub.s32 7, %v4384
    %v4386 = vrot.slane %v4283, %v4385
    %v4387 = vlaneseq
    %v4388 = vshrl.u32 %v4387, 7
    %v4389 = vsub.s32 0, %v4388
    %v4390 = vrot.slane %v4286, %v4389
    %v4391 = vlaneseq
    %v4392 = vshrl.u32 %v4391, 7
    %v4393 = vsub.s32 1, %v4392
    %v4394 = vrot.slane %v4286, %v4393
    %v4395 = vlaneseq
    %v4396 = vshrl.u32 %v4395, 7
    %v4397 = vsub.s32 2, %v4396
    %v4398 = vrot.slane %v4286, %v4397
    %v4399 = vlaneseq
    %v4400 = vshrl.u32 %v4399, 7
    %v4401 = vsub.s32 3, %v4400
    %v4402 = vrot.slane %v4286, %v4401
    %v4403 = vlaneseq
    %v4404 = vshrl.u32 %v4403, 7
    %v4405 = vsub.s32 4, %v4404
    %v4406 = vrot.slane %v4286, %v4405
    %v4407 = vlaneseq
    %v4408 = vshrl.u32 %v4407, 7
    %v4409 = vsub.s32 5, %v4408
    %v4410 = vrot.slane %v4286, %v4409
    %v4411 = vlaneseq
    %v4412 = vshrl.u32 %v4411, 7
    %v4413 = vsub.s32 6, %v4412
    %v4414 = vrot.slane %v4286, %v4413
    %v4415 = vlaneseq
    %v4416 = vshrl.u32 %v4415, 7
    %v4417 = vsub.s32 7, %v4416
    %v4418 = vrot.slane %v4286, %v4417
    %v4451 = vsub.f32 %v4011, %v4294
    %v4452 = vsub.f32 %v4012, %v4298
    %v4453 = vsub.f32 %v4013, %v4302
    %v4454 = vsub.f32 %v4014, %v4306
    %v4455 = vsub.f32 %v4015, %v4310
    %v4456 = vsub.f32 %v4016, %v4314
    %v4457 = vsub.f32 %v4017, %v4318
    %v4458 = vsub.f32 %v4018, %v4322
    %v4459 = vsub.f32 %v4019, %v4326
    %v4460 = vsub.f32 %v4020, %v4330
    %v4461 = vsub.f32 %v4021, %v4334
    %v4462 = vsub.f32 %v4022, %v4338
    %v4463 = vsub.f32 %v4023, %v4342
    %v4464 = vsub.f32 %v4024, %v4346
    %v4465 = vsub.f32 %v4025, %v4350
    %v4466 = vsub.f32 %v4026, %v4354
    %v4467 = vsub.f32 %v4027, %v4358
    %v4468 = vsub.f32 %v4028, %v4362
    %v4469 = vsub.f32 %v4029, %v4366
    %v4470 = vsub.f32 %v4030, %v4370
    %v4471 = vsub.f32 %v4031, %v4374
    %v4472 = vsub.f32 %v4032, %v4378
    %v4473 = vsub.f32 %v4033, %v4382
    %v4474 = vsub.f32 %v4034, %v4386
    %v4475 = vsub.f32 %v4035, %v4390
    %v4476 = vsub.f32 %v4036, %v4394
    %v4477 = vsub.f32 %v4037, %v4398
    %v4478 = vsub.f32 %v4038, %v4402
    %v4479 = vsub.f32 %v4039, %v4406
    %v4480 = vsub.f32 %v4040, %v4410
    %v4481 = vsub.f32 %v4041, %v4414
    %v4482 = vsub.f32 %v4042, %v4418
    %v4483 = vmul.f32 %v4451, 1.442695
    %v4484 = vpow.pop %v4483
    %v4485 = vmul.f32 %v4452, 1.442695
    %v4486 = vpow.pop %v4485
    %v4487 = vmul.f32 %v4453, 1.442695
    %v4488 = vpow.pop %v4487
    %v4489 = vmul.f32 %v4454, 1.442695
    %v4490 = vpow.pop %v4489
    %v4491 = vmul.f32 %v4455, 1.442695
    %v4492 = vpow.pop %v4491
    %v4493 = vmul.f32 %v4456, 1.442695
    %v4494 = vpow.pop %v4493
    %v4495 = vmul.f32 %v4457, 1.442695
    %v4496 = vpow.pop %v4495
    %v4497 = vmul.f32 %v4458, 1.442695
    %v4498 = vpow.pop %v4497
    %v4499 = vmul.f32 %v4459, 1.442695
    %v4500 = vpow.pop %v4499
    %v4501 = vmul.f32 %v4460, 1.442695
    %v4502 = vpow.pop %v4501
    %v4503 = vmul.f32 %v4461, 1.442695
    %v4504 = vpow.pop %v4503
    %v4505 = vmul.f32 %v4462, 1.442695
    %v4506 = vpow.pop %v4505
    %v4507 = vmul.f32 %v4463, 1.442695
    %v4508 = vpow.pop %v4507
    %v4509 = vmul.f32 %v4464, 1.442695
    %v4510 = vpow.pop %v4509
    %v4511 = vmul.f32 %v4465, 1.442695
    %v4512 = vpow.pop %v4511
    %v4513 = vmul.f32 %v4466, 1.442695
    %v4514 = vpow.pop %v4513
    %v4515 = vmul.f32 %v4467, 1.442695
    %v4516 = vpow.pop %v4515
    %v4517 = vmul.f32 %v4468, 1.442695
    %v4518 = vpow.pop %v4517
    %v4519 = vmul.f32 %v4469, 1.442695
    %v4520 = vpow.pop %v4519
    %v4521 = vmul.f32 %v4470, 1.442695
    %v4522 = vpow.pop %v4521
    %v4523 = vmul.f32 %v4471, 1.442695
    %v4524 = vpow.pop %v4523
    %v4525 = vmul.f32 %v4472, 1.442695
    %v4526 = vpow.pop %v4525
    %v4527 = vmul.f32 %v4473, 1.442695
    %v4528 = vpow.pop %v4527
    %v4529 = vmul.f32 %v4474, 1.442695
    %v4530 = vpow.pop %v4529
    %v4531 = vmul.f32 %v4475, 1.442695
    %v4532 = vpow.pop %v4531
    %v4533 = vmul.f32 %v4476, 1.442695
    %v4534 = vpow.pop %v4533
    %v4535 = vmul.f32 %v4477, 1.442695
    %v4536 = vpow.pop %v4535
    %v4537 = vmul.f32 %v4478, 1.442695
    %v4538 = vpow.pop %v4537
    %v4539 = vmul.f32 %v4479, 1.442695
    %v4540 = vpow.pop %v4539
    %v4541 = vmul.f32 %v4480, 1.442695
    %v4542 = vpow.pop %v4541
    %v4543 = vmul.f32 %v4481, 1.442695
    %v4544 = vpow.pop %v4543
    %v4545 = vmul.f32 %v4482, 1.442695
    %v4546 = vpow.pop %v4545
    %v4579 = vcombine.low %v4484, %v4486
    %v4580 = vcombine.low %v4488, %v4490
    %v4581 = vcombine.low %v4492, %v4494
    %v4582 = vcombine.low %v4496, %v4498
    %v4584 = vunpack.c.l.s4 1966171168
    %v4585 = vunpack.c.0.s8 %v4584
    %v4586 = vlaneseq
    %v4587 = vshrl.u32 %v4586, 7
    %v4588 = vsub.s32 %v4585, %v4587
    %v4589 = vrot.slane %v4579, %v4588
    %v4591 = vunpack.c.l.s4 1966171168
    %v4592 = vunpack.c.0.s8 %v4591
    %v4593 = vlaneseq
    %v4594 = vshrl.u32 %v4593, 7
    %v4595 = vsub.s32 %v4592, %v4594
    %v4596 = vrot.slane %v4580, %v4595
    %v4598 = vunpack.c.l.s4 1966171168
    %v4599 = vunpack.c.0.s8 %v4598
    %v4600 = vlaneseq
    %v4601 = vshrl.u32 %v4600, 7
    %v4602 = vsub.s32 %v4599, %v4601
    %v4603 = vrot.slane %v4581, %v4602
    %v4605 = vunpack.c.l.s4 1966171168
    %v4606 = vunpack.c.0.s8 %v4605
    %v4607 = vlaneseq
    %v4608 = vshrl.u32 %v4607, 7
    %v4609 = vsub.s32 %v4606, %v4608
    %v4610 = vrot.slane %v4582, %v4609
    %v4611 = vcombine.low %v4589, %v4596
    %v4612 = vcombine.low %v4603, %v4610
    %v4614 = vunpack.c.l.s4 1966171168
    %v4615 = vunpack.c.0.s8 %v4614
    %v4616 = vlaneseq
    %v4617 = vshrl.u32 %v4616, 7
    %v4618 = vsub.s32 %v4615, %v4617
    %v4619 = vrot.slane %v4611, %v4618
    %v4621 = vunpack.c.l.s4 1966171168
    %v4622 = vunpack.c.0.s8 %v4621
    %v4623 = vlaneseq
    %v4624 = vshrl.u32 %v4623, 7
    %v4625 = vsub.s32 %v4622, %v4624
    %v4626 = vrot.slane %v4612, %v4625
    %v4627 = vcombine.low %v4619, %v4626
    %v4628 = vcombine.low %v4500, %v4502
    %v4629 = vcombine.low %v4504, %v4506
    %v4630 = vcombine.low %v4508, %v4510
    %v4631 = vcombine.low %v4512, %v4514
    %v4633 = vunpack.c.l.s4 1966171168
    %v4634 = vunpack.c.0.s8 %v4633
    %v4635 = vlaneseq
    %v4636 = vshrl.u32 %v4635, 7
    %v4637 = vsub.s32 %v4634, %v4636
    %v4638 = vrot.slane %v4628, %v4637
    %v4640 = vunpack.c.l.s4 1966171168
    %v4641 = vunpack.c.0.s8 %v4640
    %v4642 = vlaneseq
    %v4643 = vshrl.u32 %v4642, 7
    %v4644 = vsub.s32 %v4641, %v4643
    %v4645 = vrot.slane %v4629, %v4644
    %v4647 = vunpack.c.l.s4 1966171168
    %v4648 = vunpack.c.0.s8 %v4647
    %v4649 = vlaneseq
    %v4650 = vshrl.u32 %v4649, 7
    %v4651 = vsub.s32 %v4648, %v4650
    %v4652 = vrot.slane %v4630, %v4651
    %v4654 = vunpack.c.l.s4 1966171168
    %v4655 = vunpack.c.0.s8 %v4654
    %v4656 = vlaneseq
    %v4657 = vshrl.u32 %v4656, 7
    %v4658 = vsub.s32 %v4655, %v4657
    %v4659 = vrot.slane %v4631, %v4658
    %v4660 = vcombine.low %v4638, %v4645
    %v4661 = vcombine.low %v4652, %v4659
    %v4663 = vunpack.c.l.s4 1966171168
    %v4664 = vunpack.c.0.s8 %v4663
    %v4665 = vlaneseq
    %v4666 = vshrl.u32 %v4665, 7
    %v4667 = vsub.s32 %v4664, %v4666
    %v4668 = vrot.slane %v4660, %v4667
    %v4670 = vunpack.c.l.s4 1966171168
    %v4671 = vunpack.c.0.s8 %v4670
    %v4672 = vlaneseq
    %v4673 = vshrl.u32 %v4672, 7
    %v4674 = vsub.s32 %v4671, %v4673
    %v4675 = vrot.slane %v4661, %v4674
    %v4676 = vcombine.low %v4668, %v4675
    %v4677 = vcombine.low %v4516, %v4518
    %v4678 = vcombine.low %v4520, %v4522
    %v4679 = vcombine.low %v4524, %v4526
    %v4680 = vcombine.low %v4528, %v4530
    %v4682 = vunpack.c.l.s4 1966171168
    %v4683 = vunpack.c.0.s8 %v4682
    %v4684 = vlaneseq
    %v4685 = vshrl.u32 %v4684, 7
    %v4686 = vsub.s32 %v4683, %v4685
    %v4687 = vrot.slane %v4677, %v4686
    %v4689 = vunpack.c.l.s4 1966171168
    %v4690 = vunpack.c.0.s8 %v4689
    %v4691 = vlaneseq
    %v4692 = vshrl.u32 %v4691, 7
    %v4693 = vsub.s32 %v4690, %v4692
    %v4694 = vrot.slane %v4678, %v4693
    %v4696 = vunpack.c.l.s4 1966171168
    %v4697 = vunpack.c.0.s8 %v4696
    %v4698 = vlaneseq
    %v4699 = vshrl.u32 %v4698, 7
    %v4700 = vsub.s32 %v4697, %v4699
    %v4701 = vrot.slane %v4679, %v4700
    %v4703 = vunpack.c.l.s4 1966171168
    %v4704 = vunpack.c.0.s8 %v4703
    %v4705 = vlaneseq
    %v4706 = vshrl.u32 %v4705, 7
    %v4707 = vsub.s32 %v4704, %v4706
    %v4708 = vrot.slane %v4680, %v4707
    %v4709 = vcombine.low %v4687, %v4694
    %v4710 = vcombine.low %v4701, %v4708
    %v4712 = vunpack.c.l.s4 1966171168
    %v4713 = vunpack.c.0.s8 %v4712
    %v4714 = vlaneseq
    %v4715 = vshrl.u32 %v4714, 7
    %v4716 = vsub.s32 %v4713, %v4715
    %v4717 = vrot.slane %v4709, %v4716
    %v4719 = vunpack.c.l.s4 1966171168
    %v4720 = vunpack.c.0.s8 %v4719
    %v4721 = vlaneseq
    %v4722 = vshrl.u32 %v4721, 7
    %v4723 = vsub.s32 %v4720, %v4722
    %v4724 = vrot.slane %v4710, %v4723
    %v4725 = vcombine.low %v4717, %v4724
    %v4726 = vcombine.low %v4532, %v4534
    %v4727 = vcombine.low %v4536, %v4538
    %v4728 = vcombine.low %v4540, %v4542
    %v4729 = vcombine.low %v4544, %v4546
    %v4731 = vunpack.c.l.s4 1966171168
    %v4732 = vunpack.c.0.s8 %v4731
    %v4733 = vlaneseq
    %v4734 = vshrl.u32 %v4733, 7
    %v4735 = vsub.s32 %v4732, %v4734
    %v4736 = vrot.slane %v4726, %v4735
    %v4738 = vunpack.c.l.s4 1966171168
    %v4739 = vunpack.c.0.s8 %v4738
    %v4740 = vlaneseq
    %v4741 = vshrl.u32 %v4740, 7
    %v4742 = vsub.s32 %v4739, %v4741
    %v4743 = vrot.slane %v4727, %v4742
    %v4745 = vunpack.c.l.s4 1966171168
    %v4746 = vunpack.c.0.s8 %v4745
    %v4747 = vlaneseq
    %v4748 = vshrl.u32 %v4747, 7
    %v4749 = vsub.s32 %v4746, %v4748
    %v4750 = vrot.slane %v4728, %v4749
    %v4752 = vunpack.c.l.s4 1966171168
    %v4753 = vunpack.c.0.s8 %v4752
    %v4754 = vlaneseq
    %v4755 = vshrl.u32 %v4754, 7
    %v4756 = vsub.s32 %v4753, %v4755
    %v4757 = vrot.slane %v4729, %v4756
    %v4758 = vcombine.low %v4736, %v4743
    %v4759 = vcombine.low %v4750, %v4757
    %v4761 = vunpack.c.l.s4 1966171168
    %v4762 = vunpack.c.0.s8 %v4761
    %v4763 = vlaneseq
    %v4764 = vshrl.u32 %v4763, 7
    %v4765 = vsub.s32 %v4762, %v4764
    %v4766 = vrot.slane %v4758, %v4765
    %v4768 = vunpack.c.l.s4 1966171168
    %v4769 = vunpack.c.0.s8 %v4768
    %v4770 = vlaneseq
    %v4771 = vshrl.u32 %v4770, 7
    %v4772 = vsub.s32 %v4769, %v4771
    %v4773 = vrot.slane %v4759, %v4772
    %v4774 = vcombine.low %v4766, %v4773
    %v4779 = vsel %vm783, %v4627, 0.0
    %4780 = vadd.xlane.f32.xlu0 %v4779
    %v4781 = vpop.xlane.xlu0 %4780
    %v4782 = vsel %vm783, %v4676, 0.0
    %4783 = vadd.xlane.f32.xlu0 %v4782
    %v4784 = vpop.xlane.xlu0 %4783
    %v4785 = vsel %vm783, %v4725, 0.0
    %4786 = vadd.xlane.f32.xlu0 %v4785
    %v4787 = vpop.xlane.xlu0 %4786
    %v4788 = vsel %vm783, %v4774, 0.0
    %4789 = vadd.xlane.f32.xlu0 %v4788
    %v4790 = vpop.xlane.xlu0 %4789
    %v4791 = vrcp.pop %v4781
    %v4792 = vrcp.pop %v4784
    %v4793 = vrcp.pop %v4787
    %v4794 = vrcp.pop %v4790
    %v4799 = vlaneseq
    %v4800 = vshrl.u32 %v4799, 7
    %v4801 = vsub.s32 0, %v4800
    %v4802 = vrot.slane %v4791, %v4801
    %v4803 = vlaneseq
    %v4804 = vshrl.u32 %v4803, 7
    %v4805 = vsub.s32 1, %v4804
    %v4806 = vrot.slane %v4791, %v4805
    %v4807 = vlaneseq
    %v4808 = vshrl.u32 %v4807, 7
    %v4809 = vsub.s32 2, %v4808
    %v4810 = vrot.slane %v4791, %v4809
    %v4811 = vlaneseq
    %v4812 = vshrl.u32 %v4811, 7
    %v4813 = vsub.s32 3, %v4812
    %v4814 = vrot.slane %v4791, %v4813
    %v4815 = vlaneseq
    %v4816 = vshrl.u32 %v4815, 7
    %v4817 = vsub.s32 4, %v4816
    %v4818 = vrot.slane %v4791, %v4817
    %v4819 = vlaneseq
    %v4820 = vshrl.u32 %v4819, 7
    %v4821 = vsub.s32 5, %v4820
    %v4822 = vrot.slane %v4791, %v4821
    %v4823 = vlaneseq
    %v4824 = vshrl.u32 %v4823, 7
    %v4825 = vsub.s32 6, %v4824
    %v4826 = vrot.slane %v4791, %v4825
    %v4827 = vlaneseq
    %v4828 = vshrl.u32 %v4827, 7
    %v4829 = vsub.s32 7, %v4828
    %v4830 = vrot.slane %v4791, %v4829
    %v4831 = vlaneseq
    %v4832 = vshrl.u32 %v4831, 7
    %v4833 = vsub.s32 0, %v4832
    %v4834 = vrot.slane %v4792, %v4833
    %v4835 = vlaneseq
    %v4836 = vshrl.u32 %v4835, 7
    %v4837 = vsub.s32 1, %v4836
    %v4838 = vrot.slane %v4792, %v4837
    %v4839 = vlaneseq
    %v4840 = vshrl.u32 %v4839, 7
    %v4841 = vsub.s32 2, %v4840
    %v4842 = vrot.slane %v4792, %v4841
    %v4843 = vlaneseq
    %v4844 = vshrl.u32 %v4843, 7
    %v4845 = vsub.s32 3, %v4844
    %v4846 = vrot.slane %v4792, %v4845
    %v4847 = vlaneseq
    %v4848 = vshrl.u32 %v4847, 7
    %v4849 = vsub.s32 4, %v4848
    %v4850 = vrot.slane %v4792, %v4849
    %v4851 = vlaneseq
    %v4852 = vshrl.u32 %v4851, 7
    %v4853 = vsub.s32 5, %v4852
    %v4854 = vrot.slane %v4792, %v4853
    %v4855 = vlaneseq
    %v4856 = vshrl.u32 %v4855, 7
    %v4857 = vsub.s32 6, %v4856
    %v4858 = vrot.slane %v4792, %v4857
    %v4859 = vlaneseq
    %v4860 = vshrl.u32 %v4859, 7
    %v4861 = vsub.s32 7, %v4860
    %v4862 = vrot.slane %v4792, %v4861
    %v4863 = vlaneseq
    %v4864 = vshrl.u32 %v4863, 7
    %v4865 = vsub.s32 0, %v4864
    %v4866 = vrot.slane %v4793, %v4865
    %v4867 = vlaneseq
    %v4868 = vshrl.u32 %v4867, 7
    %v4869 = vsub.s32 1, %v4868
    %v4870 = vrot.slane %v4793, %v4869
    %v4871 = vlaneseq
    %v4872 = vshrl.u32 %v4871, 7
    %v4873 = vsub.s32 2, %v4872
    %v4874 = vrot.slane %v4793, %v4873
    %v4875 = vlaneseq
    %v4876 = vshrl.u32 %v4875, 7
    %v4877 = vsub.s32 3, %v4876
    %v4878 = vrot.slane %v4793, %v4877
    %v4879 = vlaneseq
    %v4880 = vshrl.u32 %v4879, 7
    %v4881 = vsub.s32 4, %v4880
    %v4882 = vrot.slane %v4793, %v4881
    %v4883 = vlaneseq
    %v4884 = vshrl.u32 %v4883, 7
    %v4885 = vsub.s32 5, %v4884
    %v4886 = vrot.slane %v4793, %v4885
    %v4887 = vlaneseq
    %v4888 = vshrl.u32 %v4887, 7
    %v4889 = vsub.s32 6, %v4888
    %v4890 = vrot.slane %v4793, %v4889
    %v4891 = vlaneseq
    %v4892 = vshrl.u32 %v4891, 7
    %v4893 = vsub.s32 7, %v4892
    %v4894 = vrot.slane %v4793, %v4893
    %v4895 = vlaneseq
    %v4896 = vshrl.u32 %v4895, 7
    %v4897 = vsub.s32 0, %v4896
    %v4898 = vrot.slane %v4794, %v4897
    %v4899 = vlaneseq
    %v4900 = vshrl.u32 %v4899, 7
    %v4901 = vsub.s32 1, %v4900
    %v4902 = vrot.slane %v4794, %v4901
    %v4903 = vlaneseq
    %v4904 = vshrl.u32 %v4903, 7
    %v4905 = vsub.s32 2, %v4904
    %v4906 = vrot.slane %v4794, %v4905
    %v4907 = vlaneseq
    %v4908 = vshrl.u32 %v4907, 7
    %v4909 = vsub.s32 3, %v4908
    %v4910 = vrot.slane %v4794, %v4909
    %v4911 = vlaneseq
    %v4912 = vshrl.u32 %v4911, 7
    %v4913 = vsub.s32 4, %v4912
    %v4914 = vrot.slane %v4794, %v4913
    %v4915 = vlaneseq
    %v4916 = vshrl.u32 %v4915, 7
    %v4917 = vsub.s32 5, %v4916
    %v4918 = vrot.slane %v4794, %v4917
    %v4919 = vlaneseq
    %v4920 = vshrl.u32 %v4919, 7
    %v4921 = vsub.s32 6, %v4920
    %v4922 = vrot.slane %v4794, %v4921
    %v4923 = vlaneseq
    %v4924 = vshrl.u32 %v4923, 7
    %v4925 = vsub.s32 7, %v4924
    %v4926 = vrot.slane %v4794, %v4925
    %v4959 = vmul.f32 %v4484, %v4802
    %v4960 = vmul.f32 %v4486, %v4806
    %v4961 = vmul.f32 %v4488, %v4810
    %v4962 = vmul.f32 %v4490, %v4814
    %v4963 = vmul.f32 %v4492, %v4818
    %v4964 = vmul.f32 %v4494, %v4822
    %v4965 = vmul.f32 %v4496, %v4826
    %v4966 = vmul.f32 %v4498, %v4830
    %v4967 = vmul.f32 %v4500, %v4834
    %v4968 = vmul.f32 %v4502, %v4838
    %v4969 = vmul.f32 %v4504, %v4842
    %v4970 = vmul.f32 %v4506, %v4846
    %v4971 = vmul.f32 %v4508, %v4850
    %v4972 = vmul.f32 %v4510, %v4854
    %v4973 = vmul.f32 %v4512, %v4858
    %v4974 = vmul.f32 %v4514, %v4862
    %v4975 = vmul.f32 %v4516, %v4866
    %v4976 = vmul.f32 %v4518, %v4870
    %v4977 = vmul.f32 %v4520, %v4874
    %v4978 = vmul.f32 %v4522, %v4878
    %v4979 = vmul.f32 %v4524, %v4882
    %v4980 = vmul.f32 %v4526, %v4886
    %v4981 = vmul.f32 %v4528, %v4890
    %v4982 = vmul.f32 %v4530, %v4894
    %v4983 = vmul.f32 %v4532, %v4898
    %v4984 = vmul.f32 %v4534, %v4902
    %v4985 = vmul.f32 %v4536, %v4906
    %v4986 = vmul.f32 %v4538, %v4910
    %v4987 = vmul.f32 %v4540, %v4914
    %v4988 = vmul.f32 %v4542, %v4918
    %v4989 = vmul.f32 %v4544, %v4922
    %v4990 = vmul.f32 %v4546, %v4926
    %v4999 = vcombine.low %v4959, %v4960
    %v5000 = vcombine.low %v4961, %v4962
    %v5001 = vcombine.low %v4963, %v4964
    %v5002 = vcombine.low %v4965, %v4966
    %v5004 = vunpack.c.l.s4 1966171168
    %v5005 = vunpack.c.0.s8 %v5004
    %v5006 = vlaneseq
    %v5007 = vshrl.u32 %v5006, 7
    %v5008 = vsub.s32 %v5005, %v5007
    %v5009 = vrot.slane %v4999, %v5008
    %v5011 = vunpack.c.l.s4 1966171168
    %v5012 = vunpack.c.0.s8 %v5011
    %v5013 = vlaneseq
    %v5014 = vshrl.u32 %v5013, 7
    %v5015 = vsub.s32 %v5012, %v5014
    %v5016 = vrot.slane %v5000, %v5015
    %v5018 = vunpack.c.l.s4 1966171168
    %v5019 = vunpack.c.0.s8 %v5018
    %v5020 = vlaneseq
    %v5021 = vshrl.u32 %v5020, 7
    %v5022 = vsub.s32 %v5019, %v5021
    %v5023 = vrot.slane %v5001, %v5022
    %v5025 = vunpack.c.l.s4 1966171168
    %v5026 = vunpack.c.0.s8 %v5025
    %v5027 = vlaneseq
    %v5028 = vshrl.u32 %v5027, 7
    %v5029 = vsub.s32 %v5026, %v5028
    %v5030 = vrot.slane %v5002, %v5029
    %v5031 = vcombine.low %v5009, %v5016
    %v5032 = vcombine.low %v5023, %v5030
    %v5034 = vunpack.c.l.s4 1966171168
    %v5035 = vunpack.c.0.s8 %v5034
    %v5036 = vlaneseq
    %v5037 = vshrl.u32 %v5036, 7
    %v5038 = vsub.s32 %v5035, %v5037
    %v5039 = vrot.slane %v5031, %v5038
    %v5041 = vunpack.c.l.s4 1966171168
    %v5042 = vunpack.c.0.s8 %v5041
    %v5043 = vlaneseq
    %v5044 = vshrl.u32 %v5043, 7
    %v5045 = vsub.s32 %v5042, %v5044
    %v5046 = vrot.slane %v5032, %v5045
    %v5047 = vcombine.low %v5039, %v5046
    %v5048 = vsel %vm783, %v5047, 0
    %5050 = vmatprep.subr.mxu0 0.0
    %5051 = vmatpush1.msra.mxu0 %v3437
    %5052 = vmatprep.subr.mxu0 0.0
    %5053 = vmatpush1.msra.mxu0 0.0
    %5054 = vmatprep.subr.mxu0 0.0
    %5055 = vmatpush1.msra.mxu0 0.0
    %5056 = vmatprep.subr.mxu0 0.0
    %5057 = vmatpush1.msra.mxu0 0.0
    %5058 = vmatprep.subr.mxu0 0.0
    %5059 = vmatpush1.msra.mxu0 0.0
    %5060 = vmatprep.subr.mxu0 0.0
    %5061 = vmatpush1.msra.mxu0 0.0
    %5062 = vmatprep.subr.mxu0 0.0
    %5063 = vmatpush1.msra.mxu0 0.0
    %5064 = vmatprep.subr.mxu0 0.0
    %5065 = vmatpush1.msra.mxu0 0.0
    %5066 = vmatprep.subr.mxu0 0.0
    %5067 = vmatpush1.msra.mxu0 0.0
    %5068 = vmatprep.subr.mxu0 0.0
    %5069 = vmatpush1.msra.mxu0 0.0
    %5070 = vmatprep.subr.mxu0 0.0
    %5071 = vmatpush1.msra.mxu0 0.0
    %5072 = vmatprep.subr.mxu0 0.0
    %5073 = vmatpush1.msra.mxu0 0.0
    %5074 = vmatprep.subr.mxu0 0.0
    %5075 = vmatpush1.msra.mxu0 0.0
    %5076 = vmatprep.subr.mxu0 0.0
    %5077 = vmatpush1.msra.mxu0 0.0
    %5078 = vmatprep.subr.mxu0 0.0
    %5079 = vmatpush1.msra.mxu0 0.0
    %5080 = vmatprep.subr.mxu0 0.0
    %5081 = vmatpush1.msra.mxu0 0.0
    %5082 = vmatprep.subr.mxu0 0.0
    %5083 = vmatpush1.msra.mxu0 0.0
    %5084 = vmatprep.subr.mxu0 0.0
    %5085 = vmatpush1.msra.mxu0 0.0
    %5086 = vmatprep.subr.mxu0 0.0
    %5087 = vmatpush1.msra.mxu0 0.0
    %5088 = vmatprep.subr.mxu0 0.0
    %5089 = vmatpush1.msra.mxu0 0.0
    %5090 = vmatprep.subr.mxu0 0.0
    %5091 = vmatpush1.msra.mxu0 0.0
    %5092 = vmatprep.subr.mxu0 0.0
    %5093 = vmatpush1.msra.mxu0 0.0
    %5094 = vmatprep.subr.mxu0 0.0
    %5095 = vmatpush1.msra.mxu0 0.0
    %5096 = vmatprep.subr.mxu0 0.0
    %5097 = vmatpush1.msra.mxu0 0.0
    %5098 = vmatprep.subr.mxu0 0.0
    %5099 = vmatpush1.msra.mxu0 0.0
    %5100 = vmatprep.subr.mxu0 0.0
    %5101 = vmatpush1.msra.mxu0 0.0
    %5102 = vmatprep.subr.mxu0 0.0
    %5103 = vmatpush1.msra.mxu0 0.0
    %5104 = vmatprep.subr.mxu0 0.0
    %5105 = vmatpush1.msra.mxu0 0.0
    %5106 = vmatprep.subr.mxu0 0.0
    %5107 = vmatpush1.msra.mxu0 0.0
    %5108 = vmatprep.subr.mxu0 0.0
    %5109 = vmatpush1.msra.mxu0 0.0
    %5110 = vmatprep.subr.mxu0 0.0
    %5111 = vmatpush1.msra.mxu0 0.0
    %5112 = vmatprep.subr.mxu0 0.0
    %5113 = vmatpush1.msra.mxu0 0.0
    %5114 = vmatprep.mubr.f32.mxu0 0.0
    %5115 = vmatmul.mubr.f32.gmra.mrb[0].mxu0 %v5048
    %v5116 = vpop.f32.mrb[0].mxu0
    %v5117 = vadd.f32 0.0, %v5116
    %v5118 = vpop.f32.mrb[0].mxu0
    %5119 = vdwg.mxu0
    %v5128 = vcombine.low %v4967, %v4968
    %v5129 = vcombine.low %v4969, %v4970
    %v5130 = vcombine.low %v4971, %v4972
    %v5131 = vcombine.low %v4973, %v4974
    %v5133 = vunpack.c.l.s4 1966171168
    %v5134 = vunpack.c.0.s8 %v5133
    %v5135 = vlaneseq
    %v5136 = vshrl.u32 %v5135, 7
    %v5137 = vsub.s32 %v5134, %v5136
    %v5138 = vrot.slane %v5128, %v5137
    %v5140 = vunpack.c.l.s4 1966171168
    %v5141 = vunpack.c.0.s8 %v5140
    %v5142 = vlaneseq
    %v5143 = vshrl.u32 %v5142, 7
    %v5144 = vsub.s32 %v5141, %v5143
    %v5145 = vrot.slane %v5129, %v5144
    %v5147 = vunpack.c.l.s4 1966171168
    %v5148 = vunpack.c.0.s8 %v5147
    %v5149 = vlaneseq
    %v5150 = vshrl.u32 %v5149, 7
    %v5151 = vsub.s32 %v5148, %v5150
    %v5152 = vrot.slane %v5130, %v5151
    %v5154 = vunpack.c.l.s4 1966171168
    %v5155 = vunpack.c.0.s8 %v5154
    %v5156 = vlaneseq
    %v5157 = vshrl.u32 %v5156, 7
    %v5158 = vsub.s32 %v5155, %v5157
    %v5159 = vrot.slane %v5131, %v5158
    %v5160 = vcombine.low %v5138, %v5145
    %v5161 = vcombine.low %v5152, %v5159
    %v5163 = vunpack.c.l.s4 1966171168
    %v5164 = vunpack.c.0.s8 %v5163
    %v5165 = vlaneseq
    %v5166 = vshrl.u32 %v5165, 7
    %v5167 = vsub.s32 %v5164, %v5166
    %v5168 = vrot.slane %v5160, %v5167
    %v5170 = vunpack.c.l.s4 1966171168
    %v5171 = vunpack.c.0.s8 %v5170
    %v5172 = vlaneseq
    %v5173 = vshrl.u32 %v5172, 7
    %v5174 = vsub.s32 %v5171, %v5173
    %v5175 = vrot.slane %v5161, %v5174
    %v5176 = vcombine.low %v5168, %v5175
    %v5177 = vsel %vm783, %v5176, 0
    %5179 = vmatprep.subr.mxu0 0.0
    %5180 = vmatpush1.msra.mxu0 %v3438
    %5181 = vmatprep.subr.mxu0 0.0
    %5182 = vmatpush1.msra.mxu0 0.0
    %5183 = vmatprep.subr.mxu0 0.0
    %5184 = vmatpush1.msra.mxu0 0.0
    %5185 = vmatprep.subr.mxu0 0.0
    %5186 = vmatpush1.msra.mxu0 0.0
    %5187 = vmatprep.subr.mxu0 0.0
    %5188 = vmatpush1.msra.mxu0 0.0
    %5189 = vmatprep.subr.mxu0 0.0
    %5190 = vmatpush1.msra.mxu0 0.0
    %5191 = vmatprep.subr.mxu0 0.0
    %5192 = vmatpush1.msra.mxu0 0.0
    %5193 = vmatprep.subr.mxu0 0.0
    %5194 = vmatpush1.msra.mxu0 0.0
    %5195 = vmatprep.subr.mxu0 0.0
    %5196 = vmatpush1.msra.mxu0 0.0
    %5197 = vmatprep.subr.mxu0 0.0
    %5198 = vmatpush1.msra.mxu0 0.0
    %5199 = vmatprep.subr.mxu0 0.0
    %5200 = vmatpush1.msra.mxu0 0.0
    %5201 = vmatprep.subr.mxu0 0.0
    %5202 = vmatpush1.msra.mxu0 0.0
    %5203 = vmatprep.subr.mxu0 0.0
    %5204 = vmatpush1.msra.mxu0 0.0
    %5205 = vmatprep.subr.mxu0 0.0
    %5206 = vmatpush1.msra.mxu0 0.0
    %5207 = vmatprep.subr.mxu0 0.0
    %5208 = vmatpush1.msra.mxu0 0.0
    %5209 = vmatprep.subr.mxu0 0.0
    %5210 = vmatpush1.msra.mxu0 0.0
    %5211 = vmatprep.subr.mxu0 0.0
    %5212 = vmatpush1.msra.mxu0 0.0
    %5213 = vmatprep.subr.mxu0 0.0
    %5214 = vmatpush1.msra.mxu0 0.0
    %5215 = vmatprep.subr.mxu0 0.0
    %5216 = vmatpush1.msra.mxu0 0.0
    %5217 = vmatprep.subr.mxu0 0.0
    %5218 = vmatpush1.msra.mxu0 0.0
    %5219 = vmatprep.subr.mxu0 0.0
    %5220 = vmatpush1.msra.mxu0 0.0
    %5221 = vmatprep.subr.mxu0 0.0
    %5222 = vmatpush1.msra.mxu0 0.0
    %5223 = vmatprep.subr.mxu0 0.0
    %5224 = vmatpush1.msra.mxu0 0.0
    %5225 = vmatprep.subr.mxu0 0.0
    %5226 = vmatpush1.msra.mxu0 0.0
    %5227 = vmatprep.subr.mxu0 0.0
    %5228 = vmatpush1.msra.mxu0 0.0
    %5229 = vmatprep.subr.mxu0 0.0
    %5230 = vmatpush1.msra.mxu0 0.0
    %5231 = vmatprep.subr.mxu0 0.0
    %5232 = vmatpush1.msra.mxu0 0.0
    %5233 = vmatprep.subr.mxu0 0.0
    %5234 = vmatpush1.msra.mxu0 0.0
    %5235 = vmatprep.subr.mxu0 0.0
    %5236 = vmatpush1.msra.mxu0 0.0
    %5237 = vmatprep.subr.mxu0 0.0
    %5238 = vmatpush1.msra.mxu0 0.0
    %5239 = vmatprep.subr.mxu0 0.0
    %5240 = vmatpush1.msra.mxu0 0.0
    %5241 = vmatprep.subr.mxu0 0.0
    %5242 = vmatpush1.msra.mxu0 0.0
    %5243 = vmatprep.mubr.f32.mxu0 0.0
    %5244 = vmatmul.mubr.f32.gmra.mrb[0].mxu0 %v5177
    %v5245 = vpop.f32.mrb[0].mxu0
    %v5246 = vadd.f32 0.0, %v5245
    %v5247 = vpop.f32.mrb[0].mxu0
    %5248 = vdwg.mxu0
    %v5257 = vcombine.low %v4975, %v4976
    %v5258 = vcombine.low %v4977, %v4978
    %v5259 = vcombine.low %v4979, %v4980
    %v5260 = vcombine.low %v4981, %v4982
    %v5262 = vunpack.c.l.s4 1966171168
    %v5263 = vunpack.c.0.s8 %v5262
    %v5264 = vlaneseq
    %v5265 = vshrl.u32 %v5264, 7
    %v5266 = vsub.s32 %v5263, %v5265
    %v5267 = vrot.slane %v5257, %v5266
    %v5269 = vunpack.c.l.s4 1966171168
    %v5270 = vunpack.c.0.s8 %v5269
    %v5271 = vlaneseq
    %v5272 = vshrl.u32 %v5271, 7
    %v5273 = vsub.s32 %v5270, %v5272
    %v5274 = vrot.slane %v5258, %v5273
    %v5276 = vunpack.c.l.s4 1966171168
    %v5277 = vunpack.c.0.s8 %v5276
    %v5278 = vlaneseq
    %v5279 = vshrl.u32 %v5278, 7
    %v5280 = vsub.s32 %v5277, %v5279
    %v5281 = vrot.slane %v5259, %v5280
    %v5283 = vunpack.c.l.s4 1966171168
    %v5284 = vunpack.c.0.s8 %v5283
    %v5285 = vlaneseq
    %v5286 = vshrl.u32 %v5285, 7
    %v5287 = vsub.s32 %v5284, %v5286
    %v5288 = vrot.slane %v5260, %v5287
    %v5289 = vcombine.low %v5267, %v5274
    %v5290 = vcombine.low %v5281, %v5288
    %v5292 = vunpack.c.l.s4 1966171168
    %v5293 = vunpack.c.0.s8 %v5292
    %v5294 = vlaneseq
    %v5295 = vshrl.u32 %v5294, 7
    %v5296 = vsub.s32 %v5293, %v5295
    %v5297 = vrot.slane %v5289, %v5296
    %v5299 = vunpack.c.l.s4 1966171168
    %v5300 = vunpack.c.0.s8 %v5299
    %v5301 = vlaneseq
    %v5302 = vshrl.u32 %v5301, 7
    %v5303 = vsub.s32 %v5300, %v5302
    %v5304 = vrot.slane %v5290, %v5303
    %v5305 = vcombine.low %v5297, %v5304
    %v5306 = vsel %vm783, %v5305, 0
    %5308 = vmatprep.subr.mxu0 0.0
    %5309 = vmatpush1.msra.mxu0 %v3439
    %5310 = vmatprep.subr.mxu0 0.0
    %5311 = vmatpush1.msra.mxu0 0.0
    %5312 = vmatprep.subr.mxu0 0.0
    %5313 = vmatpush1.msra.mxu0 0.0
    %5314 = vmatprep.subr.mxu0 0.0
    %5315 = vmatpush1.msra.mxu0 0.0
    %5316 = vmatprep.subr.mxu0 0.0
    %5317 = vmatpush1.msra.mxu0 0.0
    %5318 = vmatprep.subr.mxu0 0.0
    %5319 = vmatpush1.msra.mxu0 0.0
    %5320 = vmatprep.subr.mxu0 0.0
    %5321 = vmatpush1.msra.mxu0 0.0
    %5322 = vmatprep.subr.mxu0 0.0
    %5323 = vmatpush1.msra.mxu0 0.0
    %5324 = vmatprep.subr.mxu0 0.0
    %5325 = vmatpush1.msra.mxu0 0.0
    %5326 = vmatprep.subr.mxu0 0.0
    %5327 = vmatpush1.msra.mxu0 0.0
    %5328 = vmatprep.subr.mxu0 0.0
    %5329 = vmatpush1.msra.mxu0 0.0
    %5330 = vmatprep.subr.mxu0 0.0
    %5331 = vmatpush1.msra.mxu0 0.0
    %5332 = vmatprep.subr.mxu0 0.0
    %5333 = vmatpush1.msra.mxu0 0.0
    %5334 = vmatprep.subr.mxu0 0.0
    %5335 = vmatpush1.msra.mxu0 0.0
    %5336 = vmatprep.subr.mxu0 0.0
    %5337 = vmatpush1.msra.mxu0 0.0
    %5338 = vmatprep.subr.mxu0 0.0
    %5339 = vmatpush1.msra.mxu0 0.0
    %5340 = vmatprep.subr.mxu0 0.0
    %5341 = vmatpush1.msra.mxu0 0.0
    %5342 = vmatprep.subr.mxu0 0.0
    %5343 = vmatpush1.msra.mxu0 0.0
    %5344 = vmatprep.subr.mxu0 0.0
    %5345 = vmatpush1.msra.mxu0 0.0
    %5346 = vmatprep.subr.mxu0 0.0
    %5347 = vmatpush1.msra.mxu0 0.0
    %5348 = vmatprep.subr.mxu0 0.0
    %5349 = vmatpush1.msra.mxu0 0.0
    %5350 = vmatprep.subr.mxu0 0.0
    %5351 = vmatpush1.msra.mxu0 0.0
    %5352 = vmatprep.subr.mxu0 0.0
    %5353 = vmatpush1.msra.mxu0 0.0
    %5354 = vmatprep.subr.mxu0 0.0
    %5355 = vmatpush1.msra.mxu0 0.0
    %5356 = vmatprep.subr.mxu0 0.0
    %5357 = vmatpush1.msra.mxu0 0.0
    %5358 = vmatprep.subr.mxu0 0.0
    %5359 = vmatpush1.msra.mxu0 0.0
    %5360 = vmatprep.subr.mxu0 0.0
    %5361 = vmatpush1.msra.mxu0 0.0
    %5362 = vmatprep.subr.mxu0 0.0
    %5363 = vmatpush1.msra.mxu0 0.0
    %5364 = vmatprep.subr.mxu0 0.0
    %5365 = vmatpush1.msra.mxu0 0.0
    %5366 = vmatprep.subr.mxu0 0.0
    %5367 = vmatpush1.msra.mxu0 0.0
    %5368 = vmatprep.subr.mxu0 0.0
    %5369 = vmatpush1.msra.mxu0 0.0
    %5370 = vmatprep.subr.mxu0 0.0
    %5371 = vmatpush1.msra.mxu0 0.0
    %5372 = vmatprep.mubr.f32.mxu0 0.0
    %5373 = vmatmul.mubr.f32.gmra.mrb[0].mxu0 %v5306
    %v5374 = vpop.f32.mrb[0].mxu0
    %v5375 = vadd.f32 0.0, %v5374
    %v5376 = vpop.f32.mrb[0].mxu0
    %5377 = vdwg.mxu0
    %v5386 = vcombine.low %v4983, %v4984
    %v5387 = vcombine.low %v4985, %v4986
    %v5388 = vcombine.low %v4987, %v4988
    %v5389 = vcombine.low %v4989, %v4990
    %v5391 = vunpack.c.l.s4 1966171168
    %v5392 = vunpack.c.0.s8 %v5391
    %v5393 = vlaneseq
    %v5394 = vshrl.u32 %v5393, 7
    %v5395 = vsub.s32 %v5392, %v5394
    %v5396 = vrot.slane %v5386, %v5395
    %v5398 = vunpack.c.l.s4 1966171168
    %v5399 = vunpack.c.0.s8 %v5398
    %v5400 = vlaneseq
    %v5401 = vshrl.u32 %v5400, 7
    %v5402 = vsub.s32 %v5399, %v5401
    %v5403 = vrot.slane %v5387, %v5402
    %v5405 = vunpack.c.l.s4 1966171168
    %v5406 = vunpack.c.0.s8 %v5405
    %v5407 = vlaneseq
    %v5408 = vshrl.u32 %v5407, 7
    %v5409 = vsub.s32 %v5406, %v5408
    %v5410 = vrot.slane %v5388, %v5409
    %v5412 = vunpack.c.l.s4 1966171168
    %v5413 = vunpack.c.0.s8 %v5412
    %v5414 = vlaneseq
    %v5415 = vshrl.u32 %v5414, 7
    %v5416 = vsub.s32 %v5413, %v5415
    %v5417 = vrot.slane %v5389, %v5416
    %v5418 = vcombine.low %v5396, %v5403
    %v5419 = vcombine.low %v5410, %v5417
    %v5421 = vunpack.c.l.s4 1966171168
    %v5422 = vunpack.c.0.s8 %v5421
    %v5423 = vlaneseq
    %v5424 = vshrl.u32 %v5423, 7
    %v5425 = vsub.s32 %v5422, %v5424
    %v5426 = vrot.slane %v5418, %v5425
    %v5428 = vunpack.c.l.s4 1966171168
    %v5429 = vunpack.c.0.s8 %v5428
    %v5430 = vlaneseq
    %v5431 = vshrl.u32 %v5430, 7
    %v5432 = vsub.s32 %v5429, %v5431
    %v5433 = vrot.slane %v5419, %v5432
    %v5434 = vcombine.low %v5426, %v5433
    %v5435 = vsel %vm783, %v5434, 0
    %5437 = vmatprep.subr.mxu0 0.0
    %5438 = vmatpush1.msra.mxu0 %v3440
    %5439 = vmatprep.subr.mxu0 0.0
    %5440 = vmatpush1.msra.mxu0 0.0
    %5441 = vmatprep.subr.mxu0 0.0
    %5442 = vmatpush1.msra.mxu0 0.0
    %5443 = vmatprep.subr.mxu0 0.0
    %5444 = vmatpush1.msra.mxu0 0.0
    %5445 = vmatprep.subr.mxu0 0.0
    %5446 = vmatpush1.msra.mxu0 0.0
    %5447 = vmatprep.subr.mxu0 0.0
    %5448 = vmatpush1.msra.mxu0 0.0
    %5449 = vmatprep.subr.mxu0 0.0
    %5450 = vmatpush1.msra.mxu0 0.0
    %5451 = vmatprep.subr.mxu0 0.0
    %5452 = vmatpush1.msra.mxu0 0.0
    %5453 = vmatprep.subr.mxu0 0.0
    %5454 = vmatpush1.msra.mxu0 0.0
    %5455 = vmatprep.subr.mxu0 0.0
    %5456 = vmatpush1.msra.mxu0 0.0
    %5457 = vmatprep.subr.mxu0 0.0
    %5458 = vmatpush1.msra.mxu0 0.0
    %5459 = vmatprep.subr.mxu0 0.0
    %5460 = vmatpush1.msra.mxu0 0.0
    %5461 = vmatprep.subr.mxu0 0.0
    %5462 = vmatpush1.msra.mxu0 0.0
    %5463 = vmatprep.subr.mxu0 0.0
    %5464 = vmatpush1.msra.mxu0 0.0
    %5465 = vmatprep.subr.mxu0 0.0
    %5466 = vmatpush1.msra.mxu0 0.0
    %5467 = vmatprep.subr.mxu0 0.0
    %5468 = vmatpush1.msra.mxu0 0.0
    %5469 = vmatprep.subr.mxu0 0.0
    %5470 = vmatpush1.msra.mxu0 0.0
    %5471 = vmatprep.subr.mxu0 0.0
    %5472 = vmatpush1.msra.mxu0 0.0
    %5473 = vmatprep.subr.mxu0 0.0
    %5474 = vmatpush1.msra.mxu0 0.0
    %5475 = vmatprep.subr.mxu0 0.0
    %5476 = vmatpush1.msra.mxu0 0.0
    %5477 = vmatprep.subr.mxu0 0.0
    %5478 = vmatpush1.msra.mxu0 0.0
    %5479 = vmatprep.subr.mxu0 0.0
    %5480 = vmatpush1.msra.mxu0 0.0
    %5481 = vmatprep.subr.mxu0 0.0
    %5482 = vmatpush1.msra.mxu0 0.0
    %5483 = vmatprep.subr.mxu0 0.0
    %5484 = vmatpush1.msra.mxu0 0.0
    %5485 = vmatprep.subr.mxu0 0.0
    %5486 = vmatpush1.msra.mxu0 0.0
    %5487 = vmatprep.subr.mxu0 0.0
    %5488 = vmatpush1.msra.mxu0 0.0
    %5489 = vmatprep.subr.mxu0 0.0
    %5490 = vmatpush1.msra.mxu0 0.0
    %5491 = vmatprep.subr.mxu0 0.0
    %5492 = vmatpush1.msra.mxu0 0.0
    %5493 = vmatprep.subr.mxu0 0.0
    %5494 = vmatpush1.msra.mxu0 0.0
    %5495 = vmatprep.subr.mxu0 0.0
    %5496 = vmatpush1.msra.mxu0 0.0
    %5497 = vmatprep.subr.mxu0 0.0
    %5498 = vmatpush1.msra.mxu0 0.0
    %5499 = vmatprep.subr.mxu0 0.0
    %5500 = vmatpush1.msra.mxu0 0.0
    %5501 = vmatprep.mubr.f32.mxu0 0.0
    %5502 = vmatmul.mubr.f32.gmra.mrb[0].mxu0 %v5435
    %v5503 = vpop.f32.mrb[0].mxu0
    %v5504 = vadd.f32 0.0, %v5503
    %v5505 = vpop.f32.mrb[0].mxu0
    %5506 = vdwg.mxu0
    %v5507 = vcombine.low %v5117, %v5375
    %v5508 = vcombine.high %v5117, %v5375
    %v5510 = vunpack.c.l.s4 1983009808
    %v5511 = vunpack.c.0.s8 %v5510
    %v5512 = vlaneseq
    %v5513 = vshrl.u32 %v5512, 7
    %v5514 = vsub.s32 %v5511, %v5513
    %v5515 = vrot.slane %v5507, %v5514
    %v5517 = vunpack.c.l.s4 1983009808
    %v5518 = vunpack.c.0.s8 %v5517
    %v5519 = vlaneseq
    %v5520 = vshrl.u32 %v5519, 7
    %v5521 = vsub.s32 %v5518, %v5520
    %v5522 = vrot.slane %v5508, %v5521
    %v5523 = vcombine.low %v5246, %v5504
    %v5524 = vcombine.high %v5246, %v5504
    %v5526 = vunpack.c.l.s4 1983009808
    %v5527 = vunpack.c.0.s8 %v5526
    %v5528 = vlaneseq
    %v5529 = vshrl.u32 %v5528, 7
    %v5530 = vsub.s32 %v5527, %v5529
    %v5531 = vrot.slane %v5523, %v5530
    %v5533 = vunpack.c.l.s4 1983009808
    %v5534 = vunpack.c.0.s8 %v5533
    %v5535 = vlaneseq
    %v5536 = vshrl.u32 %v5535, 7
    %v5537 = vsub.s32 %v5534, %v5536
    %v5538 = vrot.slane %v5524, %v5537
    %v5539 = vcombine.low %v5515, %v5531
    %v5540 = vcombine.high %v5515, %v5531
    %v5542 = vunpack.c.l.s4 1934713408
    %v5543 = vunpack.c.0.s8 %v5542
    %v5544 = vlaneseq
    %v5545 = vshrl.u32 %v5544, 7
    %v5546 = vsub.s32 %v5543, %v5545
    %v5547 = vrot.slane %v5539, %v5546
    %v5549 = vunpack.c.l.s4 1934713408
    %v5550 = vunpack.c.0.s8 %v5549
    %v5551 = vlaneseq
    %v5552 = vshrl.u32 %v5551, 7
    %v5553 = vsub.s32 %v5550, %v5552
    %v5554 = vrot.slane %v5540, %v5553
    %v5555 = vcombine.low %v5522, %v5538
    %v5556 = vcombine.high %v5522, %v5538
    %v5558 = vunpack.c.l.s4 1934713408
    %v5559 = vunpack.c.0.s8 %v5558
    %v5560 = vlaneseq
    %v5561 = vshrl.u32 %v5560, 7
    %v5562 = vsub.s32 %v5559, %v5561
    %v5563 = vrot.slane %v5555, %v5562
    %v5565 = vunpack.c.l.s4 1934713408
    %v5566 = vunpack.c.0.s8 %v5565
    %v5567 = vlaneseq
    %v5568 = vshrl.u32 %v5567, 7
    %v5569 = vsub.s32 %v5566, %v5568
    %v5570 = vrot.slane %v5556, %v5569
    %v5571 = vcombine.high %v5547, 0.0
    %v5572 = vcombine.high %v5554, 0.0
    %v5573 = vcombine.high %v5563, 0.0
    %v5574 = vcombine.high %v5570, 0.0
    %v5575 = vcombine.low %v5547, %v5554
    %v5577 = vunpack.c.l.s4 1983009808
    %v5578 = vunpack.c.0.s8 %v5577
    %v5579 = vlaneseq
    %v5580 = vshrl.u32 %v5579, 7
    %v5581 = vsub.s32 %v5578, %v5580
    %v5582 = vrot.slane %v5575, %v5581
    %v5583 = vcombine.low %v5571, %v5572
    %v5585 = vunpack.c.l.s4 1983009808
    %v5586 = vunpack.c.0.s8 %v5585
    %v5587 = vlaneseq
    %v5588 = vshrl.u32 %v5587, 7
    %v5589 = vsub.s32 %v5586, %v5588
    %v5590 = vrot.slane %v5583, %v5589
    %v5591 = vcombine.low %v5563, %v5570
    %v5593 = vunpack.c.l.s4 1983009808
    %v5594 = vunpack.c.0.s8 %v5593
    %v5595 = vlaneseq
    %v5596 = vshrl.u32 %v5595, 7
    %v5597 = vsub.s32 %v5594, %v5596
    %v5598 = vrot.slane %v5591, %v5597
    %v5599 = vcombine.low %v5573, %v5574
    %v5601 = vunpack.c.l.s4 1983009808
    %v5602 = vunpack.c.0.s8 %v5601
    %v5603 = vlaneseq
    %v5604 = vshrl.u32 %v5603, 7
    %v5605 = vsub.s32 %v5602, %v5604
    %v5606 = vrot.slane %v5599, %v5605
    %v5607 = vcombine.low %v5582, %v5590
    %v5608 = vcombine.high %v5582, %v5590
    %v5610 = vunpack.c.l.s4 1934713408
    %v5611 = vunpack.c.0.s8 %v5610
    %v5612 = vlaneseq
    %v5613 = vshrl.u32 %v5612, 7
    %v5614 = vsub.s32 %v5611, %v5613
    %v5615 = vrot.slane %v5607, %v5614
    %v5617 = vunpack.c.l.s4 1934713408
    %v5618 = vunpack.c.0.s8 %v5617
    %v5619 = vlaneseq
    %v5620 = vshrl.u32 %v5619, 7
    %v5621 = vsub.s32 %v5618, %v5620
    %v5622 = vrot.slane %v5608, %v5621
    %v5623 = vcombine.low %v5598, %v5606
    %v5624 = vcombine.high %v5598, %v5606
    %v5626 = vunpack.c.l.s4 1934713408
    %v5627 = vunpack.c.0.s8 %v5626
    %v5628 = vlaneseq
    %v5629 = vshrl.u32 %v5628, 7
    %v5630 = vsub.s32 %v5627, %v5629
    %v5631 = vrot.slane %v5623, %v5630
    %v5633 = vunpack.c.l.s4 1934713408
    %v5634 = vunpack.c.0.s8 %v5633
    %v5635 = vlaneseq
    %v5636 = vshrl.u32 %v5635, 7
    %v5637 = vsub.s32 %v5634, %v5636
    %v5638 = vrot.slane %v5624, %v5637
    %v5639 = vcombine.low %v5615, %v5631
    %v5640 = vcombine.high %v5615, %v5631
    %v5641 = vcombine.low %v5622, %v5638
    %v5642 = vcombine.high %v5622, %v5638
    %5644 = vrot.lane.b32.xlu0 %v5640, 8
    %v5645 = vpop.permute.xlu0 %5644
    %5648 = vrot.lane.b32.xlu0 %v5641, 16
    %v5649 = vpop.permute.xlu0 %5648
    %5652 = vrot.lane.b32.xlu0 %v5642, 24
    %v5653 = vpop.permute.xlu0 %5652
    %v5655 = vsel %vm783, %v5639, %v5645
    %v5656 = vsel %vm2999, %v5655, %v5649
    %v5657 = vsel %vm3001, %v5656, %v5653
    %v5658 = vlaneseq
    %v5659 = vshrl.u32 %v5658, 7
    %v5660 = vsub.s32 3, %v5659
    %v5661 = vrot.slane %v83, %v5660
    %v5663 = vsel %vm89, %v3002, 0
    %v5666 = vsel %vm89, %v5657, 0
    %5668 = vmatprep.subr.mxu0 0.0
    %5669 = vmatpush1.msra.mxu0 %v79
    %5670 = vmatprep.subr.mxu0 0.0
    %5671 = vmatpush1.msra.mxu0 %v80
    %5672 = vmatprep.subr.mxu0 0.0
    %5673 = vmatpush1.msra.mxu0 %v81
    %5674 = vmatprep.subr.mxu0 0.0
    %5675 = vmatpush1.msra.mxu0 %v82
    %5676 = vmatprep.subr.mxu0 0.0
    %5677 = vmatpush1.msra.mxu0 0.0
    %5678 = vmatprep.subr.mxu0 0.0
    %5679 = vmatpush1.msra.mxu0 0.0
    %5680 = vmatprep.subr.mxu0 0.0
    %5681 = vmatpush1.msra.mxu0 0.0
    %5682 = vmatprep.subr.mxu0 0.0
    %5683 = vmatpush1.msra.mxu0 0.0
    %5684 = vmatprep.subr.mxu0 0.0
    %5685 = vmatpush1.msra.mxu0 0.0
    %5686 = vmatprep.subr.mxu0 0.0
    %5687 = vmatpush1.msra.mxu0 0.0
    %5688 = vmatprep.subr.mxu0 0.0
    %5689 = vmatpush1.msra.mxu0 0.0
    %5690 = vmatprep.subr.mxu0 0.0
    %5691 = vmatpush1.msra.mxu0 0.0
    %5692 = vmatprep.subr.mxu0 0.0
    %5693 = vmatpush1.msra.mxu0 0.0
    %5694 = vmatprep.subr.mxu0 0.0
    %5695 = vmatpush1.msra.mxu0 0.0
    %5696 = vmatprep.subr.mxu0 0.0
    %5697 = vmatpush1.msra.mxu0 0.0
    %5698 = vmatprep.subr.mxu0 0.0
    %5699 = vmatpush1.msra.mxu0 0.0
    %5700 = vmatprep.subr.mxu0 0.0
    %5701 = vmatpush1.msra.mxu0 0.0
    %5702 = vmatprep.subr.mxu0 0.0
    %5703 = vmatpush1.msra.mxu0 0.0
    %5704 = vmatprep.subr.mxu0 0.0
    %5705 = vmatpush1.msra.mxu0 0.0
    %5706 = vmatprep.subr.mxu0 0.0
    %5707 = vmatpush1.msra.mxu0 0.0
    %5708 = vmatprep.subr.mxu0 0.0
    %5709 = vmatpush1.msra.mxu0 0.0
    %5710 = vmatprep.subr.mxu0 0.0
    %5711 = vmatpush1.msra.mxu0 0.0
    %5712 = vmatprep.subr.mxu0 0.0
    %5713 = vmatpush1.msra.mxu0 0.0
    %5714 = vmatprep.subr.mxu0 0.0
    %5715 = vmatpush1.msra.mxu0 0.0
    %5716 = vmatprep.subr.mxu0 0.0
    %5717 = vmatpush1.msra.mxu0 0.0
    %5718 = vmatprep.subr.mxu0 0.0
    %5719 = vmatpush1.msra.mxu0 0.0
    %5720 = vmatprep.subr.mxu0 0.0
    %5721 = vmatpush1.msra.mxu0 0.0
    %5722 = vmatprep.subr.mxu0 0.0
    %5723 = vmatpush1.msra.mxu0 0.0
    %5724 = vmatprep.subr.mxu0 0.0
    %5725 = vmatpush1.msra.mxu0 0.0
    %5726 = vmatprep.subr.mxu0 0.0
    %5727 = vmatpush1.msra.mxu0 0.0
    %5728 = vmatprep.subr.mxu0 0.0
    %5729 = vmatpush1.msra.mxu0 0.0
    %5730 = vmatprep.subr.mxu0 0.0
    %5731 = vmatpush1.msra.mxu0 0.0
    %5732 = vmatprep.mubr.f32.mxu0 0.0
    %5733 = vmatmul.mubr.f32.gmra.mrb[0].mxu0 %v5663
    %v5734 = vpop.f32.mrb[0].mxu0
    %v5735 = vadd.f32 %v5661, %v5734
    %v5736 = vpop.f32.mrb[0].mxu0
    %5737 = vmatprep.mubr.f32.mxu0 0.0
    %5738 = vmatmul.mubr.f32.gmra.mrb[0].mxu0 %v5666
    %v5739 = vpop.f32.mrb[0].mxu0
    %v5740 = vadd.f32 %v5661, %v5739
    %v5741 = vpop.f32.mrb[0].mxu0
    %5742 = vdwg.mxu0
    %v5743 = vadd.f32 %v61, %v5735
    %v5744 = vadd.f32 %v62, %v5740
    %v5745 = vsel %vm89, %v5743, 0.0
    %5746 = vadd.xlane.f32.xlu0 %v5745
    %v5747 = vpop.xlane.xlu0 %5746
    %v5748 = vsel %vm89, %v5744, 0.0
    %5749 = vadd.xlane.f32.xlu0 %v5748
    %v5750 = vpop.xlane.xlu0 %5749
    %v5751 = vrcp.pop 32.0
    %v5752 = vmul.f32 %v5747, %v5751
    %v5753 = vmul.f32 %v5750, %v5751
    %v5754 = vsub.f32 %v5743, %v5752
    %v5755 = vsub.f32 %v5744, %v5753
    %v5756 = vmul.f32 %v5754, %v5754
    %v5757 = vmul.f32 %v5755, %v5755
    %v5758 = vsel %vm89, %v5756, 0.0
    %5759 = vadd.xlane.f32.xlu0 %v5758
    %v5760 = vpop.xlane.xlu0 %5759
    %v5761 = vsel %vm89, %v5757, 0.0
    %5762 = vadd.xlane.f32.xlu0 %v5761
    %v5763 = vpop.xlane.xlu0 %5762
    %v5764 = vmul.f32 %v5760, %v5751
    %v5765 = vmul.f32 %v5763, %v5751
    %v5766 = vadd.f32 %v5764, 1e-05
    %v5767 = vadd.f32 %v5765, 1e-05
    %v5768 = vrsqrt.pop %v5766
    %v5769 = vrsqrt.pop %v5767
    %v5770 = vmul.f32 %v5754, %v5768
    %v5771 = vmul.f32 %v5755, %v5769
    %v5772 = vlaneseq
    %v5773 = vshrl.u32 %v5772, 7
    %v5774 = vsub.s32 4, %v5773
    %v5775 = vrot.slane %v83, %v5774
    %v5776 = vmul.f32 %v5770, %v5775
    %v5777 = vmul.f32 %v5771, %v5775
    %v5778 = vlaneseq
    %v5779 = vshrl.u32 %v5778, 7
    %v5780 = vsub.s32 5, %v5779
    %v5781 = vrot.slane %v83, %v5780
    %v5782 = vadd.f32 %v5776, %v5781
    %v5783 = vadd.f32 %v5777, %v5781
    %v5784 = vld [vmem:[%s5] sm:$0xff]
    %v5785 = vld [vmem:[%s5 + $0x8] sm:$0xff]
    %v5786 = vld [vmem:[%s5 + $0x10] sm:$0xff]
    %v5787 = vld [vmem:[%s5 + $0x18] sm:$0xff]
    %v5788 = vld [vmem:[%s7] sm:$0x1]
    %v5790 = vlaneseq
    %v5791 = vshrl.u32 %v5790, 7
    %v5792 = vsub.s32 0, %v5791
    %v5793 = vrot.slane %v5788, %v5792
    %v5796 = vsel %vm89, %v5782, 0
    %v5799 = vsel %vm89, %v5783, 0
    %5801 = vmatprep.subr.mxu0 0.0
    %5802 = vmatpush1.msra.mxu0 %v5784
    %5803 = vmatprep.subr.mxu0 0.0
    %5804 = vmatpush1.msra.mxu0 %v5785
    %5805 = vmatprep.subr.mxu0 0.0
    %5806 = vmatpush1.msra.mxu0 %v5786
    %5807 = vmatprep.subr.mxu0 0.0
    %5808 = vmatpush1.msra.mxu0 %v5787
    %5809 = vmatprep.subr.mxu0 0.0
    %5810 = vmatpush1.msra.mxu0 0.0
    %5811 = vmatprep.subr.mxu0 0.0
    %5812 = vmatpush1.msra.mxu0 0.0
    %5813 = vmatprep.subr.mxu0 0.0
    %5814 = vmatpush1.msra.mxu0 0.0
    %5815 = vmatprep.subr.mxu0 0.0
    %5816 = vmatpush1.msra.mxu0 0.0
    %5817 = vmatprep.subr.mxu0 0.0
    %5818 = vmatpush1.msra.mxu0 0.0
    %5819 = vmatprep.subr.mxu0 0.0
    %5820 = vmatpush1.msra.mxu0 0.0
    %5821 = vmatprep.subr.mxu0 0.0
    %5822 = vmatpush1.msra.mxu0 0.0
    %5823 = vmatprep.subr.mxu0 0.0
    %5824 = vmatpush1.msra.mxu0 0.0
    %5825 = vmatprep.subr.mxu0 0.0
    %5826 = vmatpush1.msra.mxu0 0.0
    %5827 = vmatprep.subr.mxu0 0.0
    %5828 = vmatpush1.msra.mxu0 0.0
    %5829 = vmatprep.subr.mxu0 0.0
    %5830 = vmatpush1.msra.mxu0 0.0
    %5831 = vmatprep.subr.mxu0 0.0
    %5832 = vmatpush1.msra.mxu0 0.0
    %5833 = vmatprep.subr.mxu0 0.0
    %5834 = vmatpush1.msra.mxu0 0.0
    %5835 = vmatprep.subr.mxu0 0.0
    %5836 = vmatpush1.msra.mxu0 0.0
    %5837 = vmatprep.subr.mxu0 0.0
    %5838 = vmatpush1.msra.mxu0 0.0
    %5839 = vmatprep.subr.mxu0 0.0
    %5840 = vmatpush1.msra.mxu0 0.0
    %5841 = vmatprep.subr.mxu0 0.0
    %5842 = vmatpush1.msra.mxu0 0.0
    %5843 = vmatprep.subr.mxu0 0.0
    %5844 = vmatpush1.msra.mxu0 0.0
    %5845 = vmatprep.subr.mxu0 0.0
    %5846 = vmatpush1.msra.mxu0 0.0
    %5847 = vmatprep.subr.mxu0 0.0
    %5848 = vmatpush1.msra.mxu0 0.0
    %5849 = vmatprep.subr.mxu0 0.0
    %5850 = vmatpush1.msra.mxu0 0.0
    %5851 = vmatprep.subr.mxu0 0.0
    %5852 = vmatpush1.msra.mxu0 0.0
    %5853 = vmatprep.subr.mxu0 0.0
    %5854 = vmatpush1.msra.mxu0 0.0
    %5855 = vmatprep.subr.mxu0 0.0
    %5856 = vmatpush1.msra.mxu0 0.0
    %5857 = vmatprep.subr.mxu0 0.0
    %5858 = vmatpush1.msra.mxu0 0.0
    %5859 = vmatprep.subr.mxu0 0.0
    %5860 = vmatpush1.msra.mxu0 0.0
    %5861 = vmatprep.subr.mxu0 0.0
    %5862 = vmatpush1.msra.mxu0 0.0
    %5863 = vmatprep.subr.mxu0 0.0
    %5864 = vmatpush1.msra.mxu0 0.0
    %5865 = vmatprep.mubr.f32.mxu0 0.0
    %5866 = vmatmul.mubr.f32.gmra.mrb[0].mxu0 %v5796
    %v5867 = vpop.f32.mrb[0].mxu0
    %v5868 = vadd.f32 %v5793, %v5867
    %v5869 = vpop.f32.mrb[0].mxu0
    %5870 = vmatprep.mubr.f32.mxu0 0.0
    %5871 = vmatmul.mubr.f32.gmra.mrb[0].mxu0 %v5799
    %v5872 = vpop.f32.mrb[0].mxu0
    %v5873 = vadd.f32 %v5793, %v5872
    %v5874 = vpop.f32.mrb[0].mxu0
    %5875 = vdwg.mxu0
    %v5876 = vmax.f32 %v5868, 0.0
    %v5877 = vmax.f32 %v5873, 0.0
    %v5878 = vld [vmem:[%s6] sm:$0xff]
    %v5879 = vld [vmem:[%s6 + $0x8] sm:$0xff]
    %v5880 = vld [vmem:[%s6 + $0x10] sm:$0xff]
    %v5881 = vld [vmem:[%s6 + $0x18] sm:$0xff]
    %v5882 = vld [vmem:[%s6 + $0x20] sm:$0xff]
    %v5883 = vld [vmem:[%s6 + $0x28] sm:$0xff]
    %v5884 = vld [vmem:[%s6 + $0x30] sm:$0xff]
    %v5885 = vld [vmem:[%s6 + $0x38] sm:$0xff]
    %v5886 = vlaneseq
    %v5887 = vshrl.u32 %v5886, 7
    %v5888 = vsub.s32 6, %v5887
    %v5889 = vrot.slane %v83, %v5888
    %vm5890 = vcmask 523264
    %v5892 = vsel %vm5890, %v5876, 0
    %v5895 = vsel %vm5890, %v5877, 0
    %5897 = vmatprep.subr.mxu0 0.0
    %5898 = vmatpush1.msra.mxu0 %v5878
    %5899 = vmatprep.subr.mxu0 0.0
    %5900 = vmatpush1.msra.mxu0 %v5879
    %5901 = vmatprep.subr.mxu0 0.0
    %5902 = vmatpush1.msra.mxu0 %v5880
    %5903 = vmatprep.subr.mxu0 0.0
    %5904 = vmatpush1.msra.mxu0 %v5881
    %5905 = vmatprep.subr.mxu0 0.0
    %5906 = vmatpush1.msra.mxu0 %v5882
    %5907 = vmatprep.subr.mxu0 0.0
    %5908 = vmatpush1.msra.mxu0 %v5883
    %5909 = vmatprep.subr.mxu0 0.0
    %5910 = vmatpush1.msra.mxu0 %v5884
    %5911 = vmatprep.subr.mxu0 0.0
    %5912 = vmatpush1.msra.mxu0 %v5885
    %5913 = vmatprep.subr.mxu0 0.0
    %5914 = vmatpush1.msra.mxu0 0.0
    %5915 = vmatprep.subr.mxu0 0.0
    %5916 = vmatpush1.msra.mxu0 0.0
    %5917 = vmatprep.subr.mxu0 0.0
    %5918 = vmatpush1.msra.mxu0 0.0
    %5919 = vmatprep.subr.mxu0 0.0
    %5920 = vmatpush1.msra.mxu0 0.0
    %5921 = vmatprep.subr.mxu0 0.0
    %5922 = vmatpush1.msra.mxu0 0.0
    %5923 = vmatprep.subr.mxu0 0.0
    %5924 = vmatpush1.msra.mxu0 0.0
    %5925 = vmatprep.subr.mxu0 0.0
    %5926 = vmatpush1.msra.mxu0 0.0
    %5927 = vmatprep.subr.mxu0 0.0
    %5928 = vmatpush1.msra.mxu0 0.0
    %5929 = vmatprep.subr.mxu0 0.0
    %5930 = vmatpush1.msra.mxu0 0.0
    %5931 = vmatprep.subr.mxu0 0.0
    %5932 = vmatpush1.msra.mxu0 0.0
    %5933 = vmatprep.subr.mxu0 0.0
    %5934 = vmatpush1.msra.mxu0 0.0
    %5935 = vmatprep.subr.mxu0 0.0
    %5936 = vmatpush1.msra.mxu0 0.0
    %5937 = vmatprep.subr.mxu0 0.0
    %5938 = vmatpush1.msra.mxu0 0.0
    %5939 = vmatprep.subr.mxu0 0.0
    %5940 = vmatpush1.msra.mxu0 0.0
    %5941 = vmatprep.subr.mxu0 0.0
    %5942 = vmatpush1.msra.mxu0 0.0
    %5943 = vmatprep.subr.mxu0 0.0
    %5944 = vmatpush1.msra.mxu0 0.0
    %5945 = vmatprep.subr.mxu0 0.0
    %5946 = vmatpush1.msra.mxu0 0.0
    %5947 = vmatprep.subr.mxu0 0.0
    %5948 = vmatpush1.msra.mxu0 0.0
    %5949 = vmatprep.subr.mxu0 0.0
    %5950 = vmatpush1.msra.mxu0 0.0
    %5951 = vmatprep.subr.mxu0 0.0
    %5952 = vmatpush1.msra.mxu0 0.0
    %5953 = vmatprep.subr.mxu0 0.0
    %5954 = vmatpush1.msra.mxu0 0.0
    %5955 = vmatprep.subr.mxu0 0.0
    %5956 = vmatpush1.msra.mxu0 0.0
    %5957 = vmatprep.subr.mxu0 0.0
    %5958 = vmatpush1.msra.mxu0 0.0
    %5959 = vmatprep.subr.mxu0 0.0
    %5960 = vmatpush1.msra.mxu0 0.0
    %5961 = vmatprep.mubr.f32.mxu0 0.0
    %5962 = vmatmul.mubr.f32.gmra.mrb[0].mxu0 %v5892
    %v5963 = vpop.f32.mrb[0].mxu0
    %v5964 = vadd.f32 %v5889, %v5963
    %v5965 = vpop.f32.mrb[0].mxu0
    %5966 = vmatprep.mubr.f32.mxu0 0.0
    %5967 = vmatmul.mubr.f32.gmra.mrb[0].mxu0 %v5895
    %v5968 = vpop.f32.mrb[0].mxu0
    %v5969 = vadd.f32 %v5889, %v5968
    %v5970 = vpop.f32.mrb[0].mxu0
    %5971 = vdwg.mxu0
    %v5972 = vadd.f32 %v5782, %v5964
    %v5973 = vadd.f32 %v5783, %v5969
    %v5974 = vsel %vm89, %v5972, 0.0
    %5975 = vadd.xlane.f32.xlu0 %v5974
    %v5976 = vpop.xlane.xlu0 %5975
    %v5977 = vsel %vm89, %v5973, 0.0
    %5978 = vadd.xlane.f32.xlu0 %v5977
    %v5979 = vpop.xlane.xlu0 %5978
    %v5980 = vmul.f32 %v5976, %v5751
    %v5981 = vmul.f32 %v5979, %v5751
    %v5982 = vsub.f32 %v5972, %v5980
    %v5983 = vsub.f32 %v5973, %v5981
    %v5984 = vmul.f32 %v5982, %v5982
    %v5985 = vmul.f32 %v5983, %v5983
    %v5986 = vsel %vm89, %v5984, 0.0
    %5987 = vadd.xlane.f32.xlu0 %v5986
    %v5988 = vpop.xlane.xlu0 %5987
    %v5989 = vsel %vm89, %v5985, 0.0
    %5990 = vadd.xlane.f32.xlu0 %v5989
    %v5991 = vpop.xlane.xlu0 %5990
    %v5992 = vmul.f32 %v5988, %v5751
    %v5993 = vmul.f32 %v5991, %v5751
    %v5994 = vadd.f32 %v5992, 1e-05
    %v5995 = vadd.f32 %v5993, 1e-05
    %v5996 = vrsqrt.pop %v5994
    %v5997 = vrsqrt.pop %v5995
    %v5998 = vmul.f32 %v5982, %v5996
    %v5999 = vmul.f32 %v5983, %v5997
    %v6000 = vlaneseq
    %v6001 = vshrl.u32 %v6000, 7
    %v6002 = vsub.s32 7, %v6001
    %v6003 = vrot.slane %v83, %v6002
    %v6004 = vmul.f32 %v5998, %v6003
    %v6005 = vmul.f32 %v5999, %v6003
    %v6006 = vlaneseq
    %v6007 = vshrl.u32 %v6006, 7
    %v6008 = vsub.s32 0, %v6007
    %v6009 = vrot.slane %v84, %v6008
    %v6010 = vadd.f32 %v6004, %v6009
    %v6011 = vadd.f32 %v6005, %v6009
    %6012 = vst.msk [vmem:[#allocation7] sm:$0xff] %vm89, %v6010
    %6013 = vst.msk [vmem:[#allocation7 + $0x8] sm:$0xff] %vm89, %v6011
    // Predicated region
    $region46: #{tpu_custom_call.1} parent=1 // pred_check
      _
    $region47: #{tpu_custom_call.1} parent=1 // pred_check_branch
      %6015 = sbr.rel (0) target = $region49
    $region48: #{tpu_custom_call.1} parent=1 // pred_region
      %s6017 = ssub.s32 256, 256
      %6018 = vsyncadd [#allocation4], %s6017
      %s6019 = sshll.u32 [#allocation7], 4
      %s6020 = int_to_ptr.vmem [resolvable:$true] %s6019
      %6025 = dma.vmem_to_hbm [thread:$0]  %s6020, 256, %s9, [#allocation4], 128, 128, 8
    $region49: #{tpu_custom_call.1} parent=1 // pred_fallthru
      _
    // Predicated region
    $region50: #{tpu_custom_call.1} parent=1 // pred_check
      _
    $region51: #{tpu_custom_call.1} parent=1 // pred_check_branch
      %6027 = sbr.rel (0) target = $region53
    $region52: #{tpu_custom_call.1} parent=1 // pred_region
      %6028 = dma.done [#allocation4], 256
    $region53: #{tpu_custom_call.1} parent=1 // pred_fallthru
      _
    %6029 = vsyncpa [#allocation3], 1
    %6030 = vsyncpa [#allocation6], 1
    %6031 = vsyncpa [#allocation4], 1

</llo_original>
